<compile_context>
chip_gen: v7x
topology: tpu7x:2x2x1
jax: 0.10.0
libtpu: 0.0.40
codegen_flags: <defaults>
</compile_context>

<pallas_src>
import functools
import math

import jax
import jax.numpy as jnp
from jax.experimental import pallas as pl
from jax.experimental.pallas import tpu as pltpu


# --------------------------------------------------------------------------------------
# In-kernel / sizing helpers
# --------------------------------------------------------------------------------------
def _layernorm(x, gamma, beta, eps=1e-5):
    # x: (N, D) float32; gamma/beta: (D,) any dtype -> f32 result.
    mu = jnp.mean(x, axis=-1, keepdims=True)
    var = jnp.mean((x - mu) ** 2, axis=-1, keepdims=True)
    return ((x - mu) * jax.lax.rsqrt(var + eps) * gamma.astype(jnp.float32)
            + beta.astype(jnp.float32))


def _vmem_capacity_bytes():
    try:
        return int(pltpu.get_tpu_info().vmem_capacity_bytes)
    except Exception:  # pragma: no cover — conservative fallback (v7x-sized)
        return 64 << 20


def _vmem_limit(need_bytes, cap, headroom=4 << 20):
    # Generation-aware: never above physical VMEM, no fixed 128 MiB clamp.
    return int(min(cap, max(16 << 20, need_bytes + headroom)))


def _largest_fitting_divisor(B, need_fn, budget):
    for bb in sorted((d for d in range(1, B + 1) if B % d == 0), reverse=True):
        if need_fn(bb) <= budget:
            return bb
    return 1


# --------------------------------------------------------------------------------------
# Kernel 1: fused decoder stack — grid (batch_block, layer); the residual stream
#           stays resident in the (revisited) output VMEM block across the
#           (arbitrary) layer axis, weights stream once per batch block.
# --------------------------------------------------------------------------------------
def decoder_stack_kernel(x_ref, ln1g_ref, ln1b_ref, wqkv_ref, bqkv_ref, wo_ref,
                         bo_ref, ln2g_ref, ln2b_ref, w1_ref, b1_ref, w2_ref,
                         b2_ref, o_ref, *, heads):
    layer = pl.program_id(1)

    @pl.when(layer == 0)
    def _init():
        # Seed the resident residual stream from the embedded input.
        o_ref[...] = x_ref[...]

    cdt = wqkv_ref.dtype                         # matmul operand dtype (bf16-capable)
    xb = o_ref[...]
    Bb, T, D = xb.shape
    H = heads
    dh = D // H
    N = Bb * T
    G = Bb * H
    scale = dh ** -0.5

    x = xb.reshape(N, D).astype(jnp.float32)     # residual stream, f32 math

    # ---------------- pre-LN multi-head self-attention ----------------
    h = _layernorm(x, ln1g_ref[0, 0], ln1b_ref[0, 0]).astype(cdt)
    qkv = (jnp.dot(h, wqkv_ref[0], preferred_element_type=jnp.float32)
           + bqkv_ref[0, 0].astype(jnp.float32)).astype(cdt)          # (N, 3D) in cdt

    def to_heads(m):                             # (N, D) -> (Bb*H, T, dh)
        return m.reshape(Bb, T, H, dh).transpose(0, 2, 1, 3).reshape(G, T, dh)

    q = to_heads(qkv[:, 0 * D:1 * D])
    k = to_heads(qkv[:, 1 * D:2 * D])
    v = to_heads(qkv[:, 2 * D:3 * D])

    # TODO(synk): flash-style KV tiling (online softmax) — this materializes the
    # full (Bb*H, T, T) score tensor, which only fits VMEM for moderate T.
    s = jnp.einsum("gtd,gsd->gts", q, k,
                   preferred_element_type=jnp.float32) * scale        # (G, T, T) f32
    row = jax.lax.broadcasted_iota(jnp.int32, (T, T), 0)
    col = jax.lax.broadcasted_iota(jnp.int32, (T, T), 1)
    s = jnp.where((row >= col)[None, :, :], s, jnp.float32(-1e30))
    s = s - jnp.max(s, axis=-1, keepdims=True)
    p = jnp.exp(s)
    p = p * pl.reciprocal(jnp.sum(p, axis=-1, keepdims=True), approx=True)

    ctx = jnp.einsum("gts,gsd->gtd", p.astype(cdt), v,
                     preferred_element_type=jnp.float32)              # (G, T, dh)
    ctx = ctx.reshape(Bb, H, T, dh).transpose(0, 2, 1, 3).reshape(N, D)

    attn = (jnp.dot(ctx.astype(cdt), wo_ref[0], preferred_element_type=jnp.float32)
            + bo_ref[0, 0].astype(jnp.float32))
    x = x + attn

    # ---------------- pre-LN feed-forward ----------------
    # TODO(synk): K-tile wqkv/w1/w2 (inner grid axis / emit_pipeline) once D >= ~1024
    # for v7x's 64 MiB VMEM; whole-weight blocks are fine for v5e/v6e shapes.
    h = _layernorm(x, ln2g_ref[0, 0], ln2b_ref[0, 0]).astype(cdt)
    h = (jnp.dot(h, w1_ref[0], preferred_element_type=jnp.float32)
         + b1_ref[0, 0].astype(jnp.float32))
    h = jax.nn.gelu(h, approximate=True)         # TODO(synk): erf-exact GELU
    h = (jnp.dot(h.astype(cdt), w2_ref[0], preferred_element_type=jnp.float32)
         + b2_ref[0, 0].astype(jnp.float32))
    x = x + h

    o_ref[...] = x.reshape(Bb, T, D).astype(o_ref.dtype)


_LAYER_KEYS = ("ln1_g", "ln1_b", "wqkv", "bqkv", "wo", "bo",
               "ln2_g", "ln2_b", "w1", "b1", "w2", "b2")


def _decoder_need_bytes(Bb, T, D, heads, layer_bytes, x_item, c_item):
    """Rough per-step VMEM need: double-buffered blocks + in-kernel temporaries."""
    N, G = Bb * T, Bb * heads
    blocks = 2 * (N * D * x_item)                  # x-in block + resident residual block
    inter = (N * D * 4 * 8                         # residual / LN / ctx / attn f32 temps
             + N * 3 * D * (4 + 4 * c_item)        # qkv accum + cdt copy + q/k/v views
             + N * 4 * D * (4 + c_item)            # FFN hidden (f32 + cdt copy)
             + G * T * T * (8 + c_item))           # scores + exp (f32) + probs (cdt)
    return 2 * (blocks + layer_bytes) + inter


def decoder_stack(x, layers, *, heads, batch_block=None):
    """Run all decoder layers in ONE pallas_call; grid = (B // Bb, depth)."""
    B, T, D = x.shape
    depth = layers["wqkv"].shape[0]
    cap = _vmem_capacity_bytes()
    layer_bytes = sum(math.prod(layers[k].shape[1:]) * layers[k].dtype.itemsize
                      for k in _LAYER_KEYS)

    if batch_block is None:
        # Largest batch block that fits VMEM => weight HBM traffic divided by Bb.
        # TODO(synk): on v7x cap Bb so that B // Bb >= 2 (keep both TensorCores busy).
        need = lambda bb: _decoder_need_bytes(bb, T, D, heads, layer_bytes,
                                              x.dtype.itemsize,
                                              layers["wqkv"].dtype.itemsize)
        batch_block = _largest_fitting_divisor(B, need, int(0.85 * cap))
    Bb = batch_block
    assert B % Bb == 0, (B, Bb)

    in_specs = [pl.BlockSpec((Bb, T, D), lambda b, l: (b, 0, 0))]
    args = [x]
    for key in _LAYER_KEYS:
        arr = layers[key]
        blk = (1,) + arr.shape[1:]
        nz = arr.ndim - 1
        in_specs.append(pl.BlockSpec(blk, lambda b, l, _n=nz: (l,) + (0,) * _n))
        args.append(arr)

    need_bytes = _decoder_need_bytes(Bb, T, D, heads, layer_bytes,
                                     x.dtype.itemsize,
                                     layers["wqkv"].dtype.itemsize)
    return pl.pallas_call(
        functools.partial(decoder_stack_kernel, heads=heads),
        out_shape=jax.ShapeDtypeStruct((B, T, D), x.dtype),
        grid=(B // Bb, depth),
        in_specs=in_specs,
        out_specs=pl.BlockSpec((Bb, T, D), lambda b, l: (b, 0, 0)),
        compiler_params=pltpu.CompilerParams(
            dimension_semantics=("parallel", "arbitrary"),
            vmem_limit_bytes=_vmem_limit(need_bytes, cap)),
    )(*args)


# --------------------------------------------------------------------------------------
# Kernel 2: final LayerNorm + vocab projection.  LN is computed once per batch
#           block into VMEM scratch (j == 0) and reused across vocab tiles; the
#           vocab is padded to a multiple of the tile; batch rows share one
#           streaming pass over the projection weight.
# --------------------------------------------------------------------------------------
def head_kernel(x_ref, g_ref, b_ref, wp_ref, bp_ref, o_ref, h_ref):
    @pl.when(pl.program_id(1) == 0)
    def _():
        xb = x_ref[...]
        Bb, T, D = xb.shape
        xf = xb.reshape(Bb * T, D).astype(jnp.float32)
        h_ref[...] = _layernorm(xf, g_ref[0], b_ref[0]).astype(h_ref.dtype)

    logits = (jnp.dot(h_ref[...], wp_ref[...], preferred_element_type=jnp.float32)
              + bp_ref[0].astype(jnp.float32))
    o_ref[...] = logits.reshape(o_ref.shape).astype(o_ref.dtype)


def _head_need_bytes(Bb, T, D, tv, x_item, w_item, o_item):
    N = Bb * T
    blocks = N * D * x_item + (D + 1) * tv * w_item + 2 * D * w_item + N * tv * o_item
    scratch = N * D * (w_item + 4) + N * tv * 4
    return 2 * blocks + scratch


def head_block(x, gamma, beta, wp, bp, *, out_dtype=jnp.float32,
               batch_block=None, max_vocab_tile=2048):
    B, T, D = x.shape
    V = wp.shape[1]
    cap = _vmem_capacity_bytes()

    # Vocab tiling: pad V up to a multiple of a 128-aligned tile (never falls
    # back to a whole-vocab weight block for awkward vocab sizes e.g. 50257).
    if V <= max_vocab_tile:
        tv, Vp = V, V
    else:
        tv = (max_vocab_tile // 128) * 128
        Vp = -(-V // tv) * tv
    if Vp != V:
        wp = jnp.pad(wp, ((0, 0), (0, Vp - V)))
        bp = jnp.pad(bp, ((0, 0), (0, Vp - V)))
    n_vt = Vp // tv

    out_itemsize = jnp.dtype(out_dtype).itemsize
    if batch_block is None:
        # All batch rows per step when they fit => proj weight streamed once.
        need = lambda bb: _head_need_bytes(bb, T, D, tv, x.dtype.itemsize,
                                           wp.dtype.itemsize, out_itemsize)
        batch_block = _largest_fitting_divisor(B, need, int(0.85 * cap))
    Bb = batch_block
    assert B % Bb == 0, (B, Bb)

    need_bytes = _head_need_bytes(Bb, T, D, tv, x.dtype.itemsize,
                                  wp.dtype.itemsize, out_itemsize)
    out = pl.pallas_call(
        head_kernel,
        out_shape=jax.ShapeDtypeStruct((B, T, Vp), out_dtype),
        grid=(B // Bb, n_vt),
        in_specs=[
            pl.BlockSpec((Bb, T, D), lambda b, j: (b, 0, 0)),
            pl.BlockSpec(tuple(gamma.shape), lambda b, j: (0, 0)),
            pl.BlockSpec(tuple(beta.shape), lambda b, j: (0, 0)),
            pl.BlockSpec((D, tv), lambda b, j: (0, j)),
            pl.BlockSpec((1, tv), lambda b, j: (0, j)),
        ],
        out_specs=pl.BlockSpec((Bb, T, tv), lambda b, j: (b, 0, j)),
        scratch_shapes=[pltpu.VMEM((Bb * T, D), wp.dtype)],
        compiler_params=pltpu.CompilerParams(
            # Vocab axis must be "arbitrary": the hoisted-LN scratch relies on
            # sequential visitation starting at j == 0 within each batch block.
            dimension_semantics=("parallel", "arbitrary"),
            vmem_limit_bytes=_vmem_limit(need_bytes, cap)),
    )(x, gamma, beta, wp, bp)
    return out[:, :, :V] if Vp != V else out


# --------------------------------------------------------------------------------------
# Parameter construction (deterministic) and full forward
# --------------------------------------------------------------------------------------
def init_params(key, *, dim, depth, heads, vocab_size, max_length, dtype=jnp.bfloat16):
    ks = jax.random.split(key, 3 + depth)

    def nrm(k, shape):
        return (jax.random.normal(k, shape, jnp.float32) * 0.02).astype(dtype)

    layers = {
        "ln1_g": jnp.ones((depth, 1, dim), dtype),
        "ln1_b": jnp.zeros((depth, 1, dim), dtype),
        "bqkv": jnp.zeros((depth, 1, 3 * dim), dtype),
        "bo": jnp.zeros((depth, 1, dim), dtype),
        "ln2_g": jnp.ones((depth, 1, dim), dtype),
        "ln2_b": jnp.zeros((depth, 1, dim), dtype),
        "b1": jnp.zeros((depth, 1, 4 * dim), dtype),
        "b2": jnp.zeros((depth, 1, dim), dtype),
    }
    wqkv, wo, w1, w2 = [], [], [], []
    for l in range(depth):
        k0, k1, k2, k3 = jax.random.split(ks[3 + l], 4)
        wqkv.append(nrm(k0, (dim, 3 * dim)))
        wo.append(nrm(k1, (dim, dim)))
        w1.append(nrm(k2, (dim, 4 * dim)))
        w2.append(nrm(k3, (4 * dim, dim)))
    layers["wqkv"] = jnp.stack(wqkv)
    layers["wo"] = jnp.stack(wo)
    layers["w1"] = jnp.stack(w1)
    layers["w2"] = jnp.stack(w2)

    return {
        "tok_emb": nrm(ks[0], (vocab_size, dim)),
        "pos_emb": nrm(ks[1], (max_length, dim)),
        "final_ln_g": jnp.ones((1, dim), dtype),
        "final_ln_b": jnp.zeros((1, dim), dtype),
        "proj_w": nrm(ks[2], (dim, vocab_size)),
        "proj_b": jnp.zeros((1, vocab_size), dtype),
        "layers": layers,
    }


def autoregressive_forward(seq, params, *, heads):
    """seq: (B, T) int32 token ids -> logits (B, T, vocab_size) in f32."""
    B, T = seq.shape
    dim = params["tok_emb"].shape[1]
    # Glue (gather) in plain JAX: token embedding + scaled learned positional emb.
    emb = jnp.take(params["tok_emb"], seq, axis=0).astype(jnp.float32)    # (B, T, D)
    pos = params["pos_emb"][:T].astype(jnp.float32) * (dim ** -0.5)       # (T, D)
    x = (emb + pos[None, :, :]).astype(params["tok_emb"].dtype)
    # emb_dropout: identity (inference).
    x = decoder_stack(x, params["layers"], heads=heads)
    return head_block(x, params["final_ln_g"], params["final_ln_b"],
                      params["proj_w"], params["proj_b"], out_dtype=jnp.float32)


if __name__ == "__main__":
    # Small config consistent with the module's __init__.
    DIM, DEPTH, HEADS = 32, 2, 4
    VOCAB_SIZE, MAX_LENGTH = 32, 16
    B, T = 2, 8

    key = jax.random.PRNGKey(0)
    pkey, skey = jax.random.split(key)
    params = init_params(pkey, dim=DIM, depth=DEPTH, heads=HEADS,
                         vocab_size=VOCAB_SIZE, max_length=MAX_LENGTH,
                         dtype=jnp.bfloat16)   # bf16 params: full-rate MXU, halved weight DMA
    seq = jax.random.randint(skey, (B, T), 0, VOCAB_SIZE, dtype=jnp.int32)

    fwd = jax.jit(functools.partial(autoregressive_forward, heads=HEADS))
    logits = jax.block_until_ready(fwd(seq, params))

    assert logits.shape == (B, T, VOCAB_SIZE), logits.shape
    assert logits.dtype == jnp.float32
    assert bool(jnp.all(jnp.isfinite(logits)))
    print("KERNEL_OK")
</pallas_src>

<mosaic_0001>
module attributes {stable_mosaic.version = 11 : i64} {
  func.func @head_kernel(%arg0: i32, %arg1: i32, %arg2: memref<2x8x32xbf16, #tpu.memory_space<vmem>>, %arg3: memref<1x32xbf16, #tpu.memory_space<vmem>>, %arg4: memref<1x32xbf16, #tpu.memory_space<vmem>>, %arg5: memref<32x32xbf16, #tpu.memory_space<vmem>>, %arg6: memref<1x32xbf16, #tpu.memory_space<vmem>>, %arg7: memref<2x8x32xf32, #tpu.memory_space<vmem>>, %arg8: memref<16x32xbf16, #tpu.memory_space<vmem>>) attributes {dimension_semantics = [#tpu.dimension_semantics<parallel>, #tpu.dimension_semantics<arbitrary>], iteration_bounds = array<i64: 1, 1>, scalar_prefetch = 0 : i64, scratch_operands = 1 : i64, tpu.core_type = #tpu.core_type<tc>, window_params = [{transform_indices = @transform_0, window_bounds = array<i64: 2, 8, 32>}, {pipeline_mode = #tpu.pipeline_mode<synchronous>, transform_indices = @transform_1, window_bounds = array<i64: 1, 32>}, {pipeline_mode = #tpu.pipeline_mode<synchronous>, transform_indices = @transform_2, window_bounds = array<i64: 1, 32>}, {transform_indices = @transform_3, window_bounds = array<i64: 32, 32>}, {transform_indices = @transform_4, window_bounds = array<i64: 1, 32>}, {transform_indices = @transform_5, window_bounds = array<i64: 2, 8, 32>}]} {
    %c0_i32 = arith.constant 0 : i32
    %0 = arith.cmpi eq, %arg1, %c0_i32 : i32
    %1 = arith.extui %0 : i1 to i32
    %c0_i32_0 = arith.constant 0 : i32
    %2 = arith.cmpi ne, %1, %c0_i32_0 : i32
    scf.if %2 {
      %c0_9 = arith.constant 0 : index
      %c0_10 = arith.constant 0 : index
      %c0_11 = arith.constant 0 : index
      %14 = vector.load %arg2[%c0_9, %c0_10, %c0_11] : memref<2x8x32xbf16, #tpu.memory_space<vmem>>, vector<2x8x32xbf16>
      %15 = vector.shape_cast %14 : vector<2x8x32xbf16> to vector<16x32xbf16>
      %16 = arith.extf %15 : vector<16x32xbf16> to vector<16x32xf32>
      %c0_12 = arith.constant 0 : index
      %c0_13 = arith.constant 0 : index
      %17 = vector.load %arg3[%c0_12, %c0_13] : memref<1x32xbf16, #tpu.memory_space<vmem>>, vector<1x32xbf16>
      %18 = vector.shape_cast %17 : vector<1x32xbf16> to vector<32xbf16>
      %c0_14 = arith.constant 0 : index
      %c0_15 = arith.constant 0 : index
      %19 = vector.load %arg4[%c0_14, %c0_15] : memref<1x32xbf16, #tpu.memory_space<vmem>>, vector<1x32xbf16>
      %20 = vector.shape_cast %19 : vector<1x32xbf16> to vector<32xbf16>
      %cst_16 = arith.constant dense<0.000000e+00> : vector<16xf32>
      %21 = vector.multi_reduction <add>, %16, %cst_16 [1] : vector<16x32xf32> to vector<16xf32>
      %22 = vector.shape_cast %21 : vector<16xf32> to vector<16x1xf32>
      %cst_17 = arith.constant 3.200000e+01 : f32
      %23 = vector.broadcast %cst_17 : f32 to vector<16x1xf32>
      %24 = arith.divf %22, %23 : vector<16x1xf32>
      %25 = vector.broadcast %24 : vector<16x1xf32> to vector<16x32xf32>
      %26 = arith.subf %16, %25 : vector<16x32xf32>
      %27 = arith.mulf %26, %26 : vector<16x32xf32>
      %cst_18 = arith.constant dense<0.000000e+00> : vector<16xf32>
      %28 = vector.multi_reduction <add>, %27, %cst_18 [1] : vector<16x32xf32> to vector<16xf32>
      %29 = vector.shape_cast %28 : vector<16xf32> to vector<16x1xf32>
      %cst_19 = arith.constant 3.200000e+01 : f32
      %30 = vector.broadcast %cst_19 : f32 to vector<16x1xf32>
      %31 = arith.divf %29, %30 : vector<16x1xf32>
      %32 = vector.broadcast %24 : vector<16x1xf32> to vector<16x32xf32>
      %33 = arith.subf %16, %32 : vector<16x32xf32>
      %cst_20 = arith.constant 9.99999974E-6 : f32
      %34 = vector.broadcast %cst_20 : f32 to vector<16x1xf32>
      %35 = arith.addf %31, %34 : vector<16x1xf32>
      %36 = math.rsqrt %35 : vector<16x1xf32>
      %37 = vector.broadcast %36 : vector<16x1xf32> to vector<16x32xf32>
      %38 = arith.mulf %33, %37 : vector<16x32xf32>
      %39 = arith.extf %18 : vector<32xbf16> to vector<32xf32>
      %40 = vector.shape_cast %39 : vector<32xf32> to vector<1x32xf32>
      %41 = vector.broadcast %40 : vector<1x32xf32> to vector<16x32xf32>
      %42 = arith.mulf %38, %41 : vector<16x32xf32>
      %43 = arith.extf %20 : vector<32xbf16> to vector<32xf32>
      %44 = vector.shape_cast %43 : vector<32xf32> to vector<1x32xf32>
      %45 = vector.broadcast %44 : vector<1x32xf32> to vector<16x32xf32>
      %46 = arith.addf %42, %45 : vector<16x32xf32>
      %47 = arith.truncf %46 : vector<16x32xf32> to vector<16x32xbf16>
      %c0_21 = arith.constant 0 : index
      %c0_22 = arith.constant 0 : index
      %48 = vector.load %arg8[%c0_21, %c0_22] : memref<16x32xbf16, #tpu.memory_space<vmem>>, vector<16x32xbf16>
      tpu.vector_store %arg8[%c0_21, %c0_22], %47 {strides = array<i32>} : memref<16x32xbf16, #tpu.memory_space<vmem>>, vector<16x32xbf16>,
    } else {
    }
    %c0 = arith.constant 0 : index
    %c0_1 = arith.constant 0 : index
    %3 = vector.load %arg8[%c0, %c0_1] : memref<16x32xbf16, #tpu.memory_space<vmem>>, vector<16x32xbf16>
    %c0_2 = arith.constant 0 : index
    %c0_3 = arith.constant 0 : index
    %4 = vector.load %arg5[%c0_2, %c0_3] : memref<32x32xbf16, #tpu.memory_space<vmem>>, vector<32x32xbf16>
    %cst = arith.constant dense<0.000000e+00> : vector<16x32xf32>
    %5 = tpu.matmul %3, %4, %cst {dimension_numbers = #tpu.dot_dimension_numbers<[1], [0], [0], [1], [0, 0, 1, 1], [], []>} : vector<16x32xbf16>, vector<32x32xbf16>, vector<16x32xf32> -> vector<16x32xf32>
    %c0_4 = arith.constant 0 : index
    %c0_5 = arith.constant 0 : index
    %6 = vector.load %arg6[%c0_4, %c0_5] : memref<1x32xbf16, #tpu.memory_space<vmem>>, vector<1x32xbf16>
    %7 = vector.shape_cast %6 : vector<1x32xbf16> to vector<32xbf16>
    %8 = arith.extf %7 : vector<32xbf16> to vector<32xf32>
    %9 = vector.shape_cast %8 : vector<32xf32> to vector<1x32xf32>
    %10 = vector.broadcast %9 : vector<1x32xf32> to vector<16x32xf32>
    %11 = arith.addf %5, %10 : vector<16x32xf32>
    %12 = vector.shape_cast %11 : vector<16x32xf32> to vector<2x8x32xf32>
    %c0_6 = arith.constant 0 : index
    %c0_7 = arith.constant 0 : index
    %c0_8 = arith.constant 0 : index
    %13 = vector.load %arg7[%c0_6, %c0_7, %c0_8] : memref<2x8x32xf32, #tpu.memory_space<vmem>>, vector<2x8x32xf32>
    tpu.vector_store %arg7[%c0_6, %c0_7, %c0_8], %12 {strides = array<i32>} : memref<2x8x32xf32, #tpu.memory_space<vmem>>, vector<2x8x32xf32>,
    return
  }
  func.func @transform_0(%arg0: i32, %arg1: i32) -> (i32, i32, i32) {
    %c0_i32 = arith.constant 0 : i32
    %c0_i32_0 = arith.constant 0 : i32
    %c0_i32_1 = arith.constant 0 : i32
    return %arg0, %c0_i32, %c0_i32_0 : i32, i32, i32
  }
  func.func @transform_1(%arg0: i32, %arg1: i32) -> (i32, i32) {
    %c0_i32 = arith.constant 0 : i32
    %c0_i32_0 = arith.constant 0 : i32
    %c0_i32_1 = arith.constant 0 : i32
    return %c0_i32, %c0_i32_0 : i32, i32
  }
  func.func @transform_2(%arg0: i32, %arg1: i32) -> (i32, i32) {
    %c0_i32 = arith.constant 0 : i32
    %c0_i32_0 = arith.constant 0 : i32
    %c0_i32_1 = arith.constant 0 : i32
    return %c0_i32, %c0_i32_0 : i32, i32
  }
  func.func @transform_3(%arg0: i32, %arg1: i32) -> (i32, i32) {
    %c0_i32 = arith.constant 0 : i32
    %c0_i32_0 = arith.constant 0 : i32
    return %c0_i32, %arg1 : i32, i32
  }
  func.func @transform_4(%arg0: i32, %arg1: i32) -> (i32, i32) {
    %c0_i32 = arith.constant 0 : i32
    %c0_i32_0 = arith.constant 0 : i32
    return %c0_i32, %arg1 : i32, i32
  }
  func.func @transform_5(%arg0: i32, %arg1: i32) -> (i32, i32, i32) {
    %c0_i32 = arith.constant 0 : i32
    %c0_i32_0 = arith.constant 0 : i32
    return %arg0, %c0_i32, %arg1 : i32, i32, i32
  }
}

module attributes {stable_mosaic.version = 11 : i64} {
  func.func @decoder_stack_kernel(%arg0: i32, %arg1: i32, %arg2: memref<2x8x32xbf16, #tpu.memory_space<vmem>>, %arg3: memref<1x1x32xbf16, #tpu.memory_space<vmem>>, %arg4: memref<1x1x32xbf16, #tpu.memory_space<vmem>>, %arg5: memref<1x32x96xbf16, #tpu.memory_space<vmem>>, %arg6: memref<1x1x96xbf16, #tpu.memory_space<vmem>>, %arg7: memref<1x32x32xbf16, #tpu.memory_space<vmem>>, %arg8: memref<1x1x32xbf16, #tpu.memory_space<vmem>>, %arg9: memref<1x1x32xbf16, #tpu.memory_space<vmem>>, %arg10: memref<1x1x32xbf16, #tpu.memory_space<vmem>>, %arg11: memref<1x32x128xbf16, #tpu.memory_space<vmem>>, %arg12: memref<1x1x128xbf16, #tpu.memory_space<vmem>>, %arg13: memref<1x128x32xbf16, #tpu.memory_space<vmem>>, %arg14: memref<1x1x32xbf16, #tpu.memory_space<vmem>>, %arg15: memref<2x8x32xbf16, #tpu.memory_space<vmem>>) attributes {dimension_semantics = [#tpu.dimension_semantics<parallel>, #tpu.dimension_semantics<arbitrary>], iteration_bounds = array<i64: 1, 2>, scalar_prefetch = 0 : i64, scratch_operands = 0 : i64, tpu.core_type = #tpu.core_type<tc>, window_params = [{transform_indices = @transform_0, window_bounds = array<i64: 2, 8, 32>}, {transform_indices = @transform_1, window_bounds = array<i64: 1, 1, 32>}, {transform_indices = @transform_2, window_bounds = array<i64: 1, 1, 32>}, {transform_indices = @transform_3, window_bounds = array<i64: 1, 32, 96>}, {transform_indices = @transform_4, window_bounds = array<i64: 1, 1, 96>}, {transform_indices = @transform_5, window_bounds = array<i64: 1, 32, 32>}, {transform_indices = @transform_6, window_bounds = array<i64: 1, 1, 32>}, {transform_indices = @transform_7, window_bounds = array<i64: 1, 1, 32>}, {transform_indices = @transform_8, window_bounds = array<i64: 1, 1, 32>}, {transform_indices = @transform_9, window_bounds = array<i64: 1, 32, 128>}, {transform_indices = @transform_10, window_bounds = array<i64: 1, 1, 128>}, {transform_indices = @transform_11, window_bounds = array<i64: 1, 128, 32>}, {transform_indices = @transform_12, window_bounds = array<i64: 1, 1, 32>}, {transform_indices = @transform_13, window_bounds = array<i64: 2, 8, 32>}]} {
    %c0_i32 = arith.constant 0 : i32
    %0 = arith.cmpi eq, %arg1, %c0_i32 : i32
    %1 = arith.extui %0 : i1 to i32
    %c0_i32_0 = arith.constant 0 : i32
    %2 = arith.cmpi ne, %1, %c0_i32_0 : i32
    scf.if %2 {
      %c0_65 = arith.constant 0 : index
      %c0_66 = arith.constant 0 : index
      %c0_67 = arith.constant 0 : index
      %163 = vector.load %arg2[%c0_65, %c0_66, %c0_67] : memref<2x8x32xbf16, #tpu.memory_space<vmem>>, vector<2x8x32xbf16>
      %c0_68 = arith.constant 0 : index
      %c0_69 = arith.constant 0 : index
      %c0_70 = arith.constant 0 : index
      %164 = vector.load %arg15[%c0_68, %c0_69, %c0_70] : memref<2x8x32xbf16, #tpu.memory_space<vmem>>, vector<2x8x32xbf16>
      tpu.vector_store %arg15[%c0_68, %c0_69, %c0_70], %163 {strides = array<i32>} : memref<2x8x32xbf16, #tpu.memory_space<vmem>>, vector<2x8x32xbf16>,
    } else {
    }
    %c0 = arith.constant 0 : index
    %c0_1 = arith.constant 0 : index
    %c0_2 = arith.constant 0 : index
    %3 = vector.load %arg15[%c0, %c0_1, %c0_2] : memref<2x8x32xbf16, #tpu.memory_space<vmem>>, vector<2x8x32xbf16>
    %4 = vector.shape_cast %3 : vector<2x8x32xbf16> to vector<16x32xbf16>
    %5 = arith.extf %4 : vector<16x32xbf16> to vector<16x32xf32>
    %c0_3 = arith.constant 0 : index
    %c0_4 = arith.constant 0 : index
    %c0_5 = arith.constant 0 : index
    %6 = vector.load %arg3[%c0_3, %c0_4, %c0_5] : memref<1x1x32xbf16, #tpu.memory_space<vmem>>, vector<1x1x32xbf16>
    %7 = vector.shape_cast %6 : vector<1x1x32xbf16> to vector<32xbf16>
    %c0_6 = arith.constant 0 : index
    %c0_7 = arith.constant 0 : index
    %c0_8 = arith.constant 0 : index
    %8 = vector.load %arg4[%c0_6, %c0_7, %c0_8] : memref<1x1x32xbf16, #tpu.memory_space<vmem>>, vector<1x1x32xbf16>
    %9 = vector.shape_cast %8 : vector<1x1x32xbf16> to vector<32xbf16>
    %cst = arith.constant dense<0.000000e+00> : vector<16xf32>
    %10 = vector.multi_reduction <add>, %5, %cst [1] : vector<16x32xf32> to vector<16xf32>
    %11 = vector.shape_cast %10 : vector<16xf32> to vector<16x1xf32>
    %cst_9 = arith.constant 3.200000e+01 : f32
    %12 = vector.broadcast %cst_9 : f32 to vector<16x1xf32>
    %13 = arith.divf %11, %12 : vector<16x1xf32>
    %14 = vector.broadcast %13 : vector<16x1xf32> to vector<16x32xf32>
    %15 = arith.subf %5, %14 : vector<16x32xf32>
    %16 = arith.mulf %15, %15 : vector<16x32xf32>
    %cst_10 = arith.constant dense<0.000000e+00> : vector<16xf32>
    %17 = vector.multi_reduction <add>, %16, %cst_10 [1] : vector<16x32xf32> to vector<16xf32>
    %18 = vector.shape_cast %17 : vector<16xf32> to vector<16x1xf32>
    %cst_11 = arith.constant 3.200000e+01 : f32
    %19 = vector.broadcast %cst_11 : f32 to vector<16x1xf32>
    %20 = arith.divf %18, %19 : vector<16x1xf32>
    %21 = vector.broadcast %13 : vector<16x1xf32> to vector<16x32xf32>
    %22 = arith.subf %5, %21 : vector<16x32xf32>
    %cst_12 = arith.constant 9.99999974E-6 : f32
    %23 = vector.broadcast %cst_12 : f32 to vector<16x1xf32>
    %24 = arith.addf %20, %23 : vector<16x1xf32>
    %25 = math.rsqrt %24 : vector<16x1xf32>
    %26 = vector.broadcast %25 : vector<16x1xf32> to vector<16x32xf32>
    %27 = arith.mulf %22, %26 : vector<16x32xf32>
    %28 = arith.extf %7 : vector<32xbf16> to vector<32xf32>
    %29 = vector.shape_cast %28 : vector<32xf32> to vector<1x32xf32>
    %30 = vector.broadcast %29 : vector<1x32xf32> to vector<16x32xf32>
    %31 = arith.mulf %27, %30 : vector<16x32xf32>
    %32 = arith.extf %9 : vector<32xbf16> to vector<32xf32>
    %33 = vector.shape_cast %32 : vector<32xf32> to vector<1x32xf32>
    %34 = vector.broadcast %33 : vector<1x32xf32> to vector<16x32xf32>
    %35 = arith.addf %31, %34 : vector<16x32xf32>
    %36 = arith.truncf %35 : vector<16x32xf32> to vector<16x32xbf16>
    %c0_13 = arith.constant 0 : index
    %c0_14 = arith.constant 0 : index
    %c0_15 = arith.constant 0 : index
    %37 = vector.load %arg5[%c0_13, %c0_14, %c0_15] : memref<1x32x96xbf16, #tpu.memory_space<vmem>>, vector<1x32x96xbf16>
    %38 = vector.shape_cast %37 : vector<1x32x96xbf16> to vector<32x96xbf16>
    %cst_16 = arith.constant dense<0.000000e+00> : vector<16x96xf32>
    %39 = tpu.matmul %36, %38, %cst_16 {dimension_numbers = #tpu.dot_dimension_numbers<[1], [0], [0], [1], [0, 0, 1, 1], [], []>} : vector<16x32xbf16>, vector<32x96xbf16>, vector<16x96xf32> -> vector<16x96xf32>
    %c0_17 = arith.constant 0 : index
    %c0_18 = arith.constant 0 : index
    %c0_19 = arith.constant 0 : index
    %40 = vector.load %arg6[%c0_17, %c0_18, %c0_19] : memref<1x1x96xbf16, #tpu.memory_space<vmem>>, vector<1x1x96xbf16>
    %41 = vector.shape_cast %40 : vector<1x1x96xbf16> to vector<96xbf16>
    %42 = arith.extf %41 : vector<96xbf16> to vector<96xf32>
    %43 = vector.shape_cast %42 : vector<96xf32> to vector<1x96xf32>
    %44 = vector.broadcast %43 : vector<1x96xf32> to vector<16x96xf32>
    %45 = arith.addf %39, %44 : vector<16x96xf32>
    %46 = arith.truncf %45 : vector<16x96xf32> to vector<16x96xbf16>
    %47 = vector.extract_strided_slice %46 {offsets = [0, 0], sizes = [16, 32], strides = [1, 1]} : vector<16x96xbf16> to vector<16x32xbf16>
    %48 = vector.shape_cast %47 : vector<16x32xbf16> to vector<2x8x4x8xbf16>
    %49 = tpu.transpose %48, [0, 2, 1, 3] : vector<2x8x4x8xbf16> -> vector<2x4x8x8xbf16>
    %50 = vector.shape_cast %49 : vector<2x4x8x8xbf16> to vector<8x8x8xbf16>
    %51 = vector.extract_strided_slice %46 {offsets = [0, 32], sizes = [16, 32], strides = [1, 1]} : vector<16x96xbf16> to vector<16x32xbf16>
    %52 = vector.shape_cast %51 : vector<16x32xbf16> to vector<2x8x4x8xbf16>
    %53 = tpu.transpose %52, [0, 2, 1, 3] : vector<2x8x4x8xbf16> -> vector<2x4x8x8xbf16>
    %54 = vector.shape_cast %53 : vector<2x4x8x8xbf16> to vector<8x8x8xbf16>
    %55 = vector.extract_strided_slice %46 {offsets = [0, 64], sizes = [16, 32], strides = [1, 1]} : vector<16x96xbf16> to vector<16x32xbf16>
    %56 = vector.shape_cast %55 : vector<16x32xbf16> to vector<2x8x4x8xbf16>
    %57 = tpu.transpose %56, [0, 2, 1, 3] : vector<2x8x4x8xbf16> -> vector<2x4x8x8xbf16>
    %58 = vector.shape_cast %57 : vector<2x4x8x8xbf16> to vector<8x8x8xbf16>
    "tpu.trace_start"() <{level = 10 : i32, message = "gtd,gsd->gts"}> : () -> ()
    %cst_20 = arith.constant dense<0.000000e+00> : vector<8x8x8xf32>
    %59 = tpu.matmul %50, %54, %cst_20 {dimension_numbers = #tpu.dot_dimension_numbers<[2], [2], [1], [1], [0, 0, 0, 1, 1, 1], [0], [0]>} : vector<8x8x8xbf16>, vector<8x8x8xbf16>, vector<8x8x8xf32> -> vector<8x8x8xf32>
    "tpu.trace_stop"() : () -> ()
    %cst_21 = arith.constant 0.353553385 : f32
    %60 = vector.broadcast %cst_21 : f32 to vector<8x8x8xf32>
    %61 = arith.mulf %59, %60 : vector<8x8x8xf32>
    %62 = tpu.iota {dimensions = array<i32: 0>} : vector<8x8xi32>
    %63 = tpu.iota {dimensions = array<i32: 1>} : vector<8x8xi32>
    %64 = arith.cmpi sge, %62, %63 : vector<8x8xi32>
    %65 = vector.shape_cast %64 : vector<8x8xi1> to vector<1x8x8xi1>
    %cst_22 = arith.constant -1.000000e+30 : f32
    %66 = vector.shape_cast %65 : vector<1x8x8xi1> to vector<1x8x8xi1>
    %67 = vector.broadcast %66 : vector<1x8x8xi1> to vector<8x8x8xi1>
    %68 = vector.broadcast %cst_22 : f32 to vector<8x8x8xf32>
    %69 = arith.select %67, %61, %68 : vector<8x8x8xi1>, vector<8x8x8xf32>
    %cst_23 = arith.constant dense<0xFF800000> : vector<8x8xf32>
    %70 = vector.multi_reduction <maximumf>, %69, %cst_23 [2] : vector<8x8x8xf32> to vector<8x8xf32>
    %71 = vector.shape_cast %70 : vector<8x8xf32> to vector<8x8x1xf32>
    %72 = vector.broadcast %71 : vector<8x8x1xf32> to vector<8x8x8xf32>
    %73 = arith.subf %69, %72 : vector<8x8x8xf32>
    %74 = math.exp %73 : vector<8x8x8xf32>
    %cst_24 = arith.constant dense<0.000000e+00> : vector<8x8xf32>
    %75 = vector.multi_reduction <add>, %74, %cst_24 [2] : vector<8x8x8xf32> to vector<8x8xf32>
    %76 = vector.shape_cast %75 : vector<8x8xf32> to vector<8x8x1xf32>
    %77 = tpu.reciprocal %76 {approx = true} : vector<8x8x1xf32> -> vector<8x8x1xf32>
    %78 = vector.broadcast %77 : vector<8x8x1xf32> to vector<8x8x8xf32>
    %79 = arith.mulf %74, %78 : vector<8x8x8xf32>
    %80 = arith.truncf %79 : vector<8x8x8xf32> to vector<8x8x8xbf16>
    "tpu.trace_start"() <{level = 10 : i32, message = "gts,gsd->gtd"}> : () -> ()
    %cst_25 = arith.constant dense<0.000000e+00> : vector<8x8x8xf32>
    %81 = tpu.matmul %80, %58, %cst_25 {dimension_numbers = #tpu.dot_dimension_numbers<[2], [1], [1], [2], [0, 0, 0, 1, 1, 2], [0], [0]>} : vector<8x8x8xbf16>, vector<8x8x8xbf16>, vector<8x8x8xf32> -> vector<8x8x8xf32>
    "tpu.trace_stop"() : () -> ()
    %82 = vector.shape_cast %81 : vector<8x8x8xf32> to vector<2x4x8x8xf32>
    %83 = tpu.transpose %82, [0, 2, 1, 3] : vector<2x4x8x8xf32> -> vector<2x8x4x8xf32>
    %84 = vector.shape_cast %83 : vector<2x8x4x8xf32> to vector<16x32xf32>
    %85 = arith.truncf %84 : vector<16x32xf32> to vector<16x32xbf16>
    %c0_26 = arith.constant 0 : index
    %c0_27 = arith.constant 0 : index
    %c0_28 = arith.constant 0 : index
    %86 = vector.load %arg7[%c0_26, %c0_27, %c0_28] : memref<1x32x32xbf16, #tpu.memory_space<vmem>>, vector<1x32x32xbf16>
    %87 = vector.shape_cast %86 : vector<1x32x32xbf16> to vector<32x32xbf16>
    %cst_29 = arith.constant dense<0.000000e+00> : vector<16x32xf32>
    %88 = tpu.matmul %85, %87, %cst_29 {dimension_numbers = #tpu.dot_dimension_numbers<[1], [0], [0], [1], [0, 0, 1, 1], [], []>} : vector<16x32xbf16>, vector<32x32xbf16>, vector<16x32xf32> -> vector<16x32xf32>
    %c0_30 = arith.constant 0 : index
    %c0_31 = arith.constant 0 : index
    %c0_32 = arith.constant 0 : index
    %89 = vector.load %arg8[%c0_30, %c0_31, %c0_32] : memref<1x1x32xbf16, #tpu.memory_space<vmem>>, vector<1x1x32xbf16>
    %90 = vector.shape_cast %89 : vector<1x1x32xbf16> to vector<32xbf16>
    %91 = arith.extf %90 : vector<32xbf16> to vector<32xf32>
    %92 = vector.shape_cast %91 : vector<32xf32> to vector<1x32xf32>
    %93 = vector.broadcast %92 : vector<1x32xf32> to vector<16x32xf32>
    %94 = arith.addf %88, %93 : vector<16x32xf32>
    %95 = arith.addf %5, %94 : vector<16x32xf32>
    %c0_33 = arith.constant 0 : index
    %c0_34 = arith.constant 0 : index
    %c0_35 = arith.constant 0 : index
    %96 = vector.load %arg9[%c0_33, %c0_34, %c0_35] : memref<1x1x32xbf16, #tpu.memory_space<vmem>>, vector<1x1x32xbf16>
    %97 = vector.shape_cast %96 : vector<1x1x32xbf16> to vector<32xbf16>
    %c0_36 = arith.constant 0 : index
    %c0_37 = arith.constant 0 : index
    %c0_38 = arith.constant 0 : index
    %98 = vector.load %arg10[%c0_36, %c0_37, %c0_38] : memref<1x1x32xbf16, #tpu.memory_space<vmem>>, vector<1x1x32xbf16>
    %99 = vector.shape_cast %98 : vector<1x1x32xbf16> to vector<32xbf16>
    %cst_39 = arith.constant dense<0.000000e+00> : vector<16xf32>
    %100 = vector.multi_reduction <add>, %95, %cst_39 [1] : vector<16x32xf32> to vector<16xf32>
    %101 = vector.shape_cast %100 : vector<16xf32> to vector<16x1xf32>
    %cst_40 = arith.constant 3.200000e+01 : f32
    %102 = vector.broadcast %cst_40 : f32 to vector<16x1xf32>
    %103 = arith.divf %101, %102 : vector<16x1xf32>
    %104 = vector.broadcast %103 : vector<16x1xf32> to vector<16x32xf32>
    %105 = arith.subf %95, %104 : vector<16x32xf32>
    %106 = arith.mulf %105, %105 : vector<16x32xf32>
    %cst_41 = arith.constant dense<0.000000e+00> : vector<16xf32>
    %107 = vector.multi_reduction <add>, %106, %cst_41 [1] : vector<16x32xf32> to vector<16xf32>
    %108 = vector.shape_cast %107 : vector<16xf32> to vector<16x1xf32>
    %cst_42 = arith.constant 3.200000e+01 : f32
    %109 = vector.broadcast %cst_42 : f32 to vector<16x1xf32>
    %110 = arith.divf %108, %109 : vector<16x1xf32>
    %111 = vector.broadcast %103 : vector<16x1xf32> to vector<16x32xf32>
    %112 = arith.subf %95, %111 : vector<16x32xf32>
    %cst_43 = arith.constant 9.99999974E-6 : f32
    %113 = vector.broadcast %cst_43 : f32 to vector<16x1xf32>
    %114 = arith.addf %110, %113 : vector<16x1xf32>
    %115 = math.rsqrt %114 : vector<16x1xf32>
    %116 = vector.broadcast %115 : vector<16x1xf32> to vector<16x32xf32>
    %117 = arith.mulf %112, %116 : vector<16x32xf32>
    %118 = arith.extf %97 : vector<32xbf16> to vector<32xf32>
    %119 = vector.shape_cast %118 : vector<32xf32> to vector<1x32xf32>
    %120 = vector.broadcast %119 : vector<1x32xf32> to vector<16x32xf32>
    %121 = arith.mulf %117, %120 : vector<16x32xf32>
    %122 = arith.extf %99 : vector<32xbf16> to vector<32xf32>
    %123 = vector.shape_cast %122 : vector<32xf32> to vector<1x32xf32>
    %124 = vector.broadcast %123 : vector<1x32xf32> to vector<16x32xf32>
    %125 = arith.addf %121, %124 : vector<16x32xf32>
    %126 = arith.truncf %125 : vector<16x32xf32> to vector<16x32xbf16>
    %c0_44 = arith.constant 0 : index
    %c0_45 = arith.constant 0 : index
    %c0_46 = arith.constant 0 : index
    %127 = vector.load %arg11[%c0_44, %c0_45, %c0_46] : memref<1x32x128xbf16, #tpu.memory_space<vmem>>, vector<1x32x128xbf16>
    %128 = vector.shape_cast %127 : vector<1x32x128xbf16> to vector<32x128xbf16>
    %cst_47 = arith.constant dense<0.000000e+00> : vector<16x128xf32>
    %129 = tpu.matmul %126, %128, %cst_47 {dimension_numbers = #tpu.dot_dimension_numbers<[1], [0], [0], [1], [0, 0, 1, 1], [], []>} : vector<16x32xbf16>, vector<32x128xbf16>, vector<16x128xf32> -> vector<16x128xf32>
    %c0_48 = arith.constant 0 : index
    %c0_49 = arith.constant 0 : index
    %c0_50 = arith.constant 0 : index
    %130 = vector.load %arg12[%c0_48, %c0_49, %c0_50] : memref<1x1x128xbf16, #tpu.memory_space<vmem>>, vector<1x1x128xbf16>
    %131 = vector.shape_cast %130 : vector<1x1x128xbf16> to vector<128xbf16>
    %132 = arith.extf %131 : vector<128xbf16> to vector<128xf32>
    %133 = vector.shape_cast %132 : vector<128xf32> to vector<1x128xf32>
    %134 = vector.broadcast %133 : vector<1x128xf32> to vector<16x128xf32>
    %135 = arith.addf %129, %134 : vector<16x128xf32>
    %136 = arith.mulf %135, %135 : vector<16x128xf32>
    %137 = arith.mulf %135, %136 : vector<16x128xf32>
    %cst_51 = arith.constant 4.471500e-02 : f32
    %138 = vector.broadcast %cst_51 : f32 to vector<16x128xf32>
    %139 = arith.mulf %138, %137 : vector<16x128xf32>
    %140 = arith.addf %135, %139 : vector<16x128xf32>
    %cst_52 = arith.constant 0.797884583 : f32
    %141 = vector.broadcast %cst_52 : f32 to vector<16x128xf32>
    %142 = arith.mulf %141, %140 : vector<16x128xf32>
    %143 = math.tanh %142 : vector<16x128xf32>
    %cst_53 = arith.constant 1.000000e+00 : f32
    %144 = vector.broadcast %cst_53 : f32 to vector<16x128xf32>
    %145 = arith.addf %144, %143 : vector<16x128xf32>
    %cst_54 = arith.constant 5.000000e-01 : f32
    %146 = vector.broadcast %cst_54 : f32 to vector<16x128xf32>
    %147 = arith.mulf %146, %145 : vector<16x128xf32>
    %148 = arith.mulf %135, %147 : vector<16x128xf32>
    %149 = arith.truncf %148 : vector<16x128xf32> to vector<16x128xbf16>
    %c0_55 = arith.constant 0 : index
    %c0_56 = arith.constant 0 : index
    %c0_57 = arith.constant 0 : index
    %150 = vector.load %arg13[%c0_55, %c0_56, %c0_57] : memref<1x128x32xbf16, #tpu.memory_space<vmem>>, vector<1x128x32xbf16>
    %151 = vector.shape_cast %150 : vector<1x128x32xbf16> to vector<128x32xbf16>
    %cst_58 = arith.constant dense<0.000000e+00> : vector<16x32xf32>
    %152 = tpu.matmul %149, %151, %cst_58 {dimension_numbers = #tpu.dot_dimension_numbers<[1], [0], [0], [1], [0, 0, 1, 1], [], []>} : vector<16x128xbf16>, vector<128x32xbf16>, vector<16x32xf32> -> vector<16x32xf32>
    %c0_59 = arith.constant 0 : index
    %c0_60 = arith.constant 0 : index
    %c0_61 = arith.constant 0 : index
    %153 = vector.load %arg14[%c0_59, %c0_60, %c0_61] : memref<1x1x32xbf16, #tpu.memory_space<vmem>>, vector<1x1x32xbf16>
    %154 = vector.shape_cast %153 : vector<1x1x32xbf16> to vector<32xbf16>
    %155 = arith.extf %154 : vector<32xbf16> to vector<32xf32>
    %156 = vector.shape_cast %155 : vector<32xf32> to vector<1x32xf32>
    %157 = vector.broadcast %156 : vector<1x32xf32> to vector<16x32xf32>
    %158 = arith.addf %152, %157 : vector<16x32xf32>
    %159 = arith.addf %95, %158 : vector<16x32xf32>
    %160 = vector.shape_cast %159 : vector<16x32xf32> to vector<2x8x32xf32>
    %161 = arith.truncf %160 : vector<2x8x32xf32> to vector<2x8x32xbf16>
    %c0_62 = arith.constant 0 : index
    %c0_63 = arith.constant 0 : index
    %c0_64 = arith.constant 0 : index
    %162 = vector.load %arg15[%c0_62, %c0_63, %c0_64] : memref<2x8x32xbf16, #tpu.memory_space<vmem>>, vector<2x8x32xbf16>
    tpu.vector_store %arg15[%c0_62, %c0_63, %c0_64], %161 {strides = array<i32>} : memref<2x8x32xbf16, #tpu.memory_space<vmem>>, vector<2x8x32xbf16>,
    return
  }
  func.func @transform_0(%arg0: i32, %arg1: i32) -> (i32, i32, i32) {
    %c0_i32 = arith.constant 0 : i32
    %c0_i32_0 = arith.constant 0 : i32
    %c0_i32_1 = arith.constant 0 : i32
    return %arg0, %c0_i32, %c0_i32_0 : i32, i32, i32
  }
  func.func @transform_1(%arg0: i32, %arg1: i32) -> (i32, i32, i32) {
    %c0_i32 = arith.constant 0 : i32
    %c0_i32_0 = arith.constant 0 : i32
    %c0_i32_1 = arith.constant 0 : i32
    return %arg1, %c0_i32, %c0_i32_0 : i32, i32, i32
  }
  func.func @transform_2(%arg0: i32, %arg1: i32) -> (i32, i32, i32) {
    %c0_i32 = arith.constant 0 : i32
    %c0_i32_0 = arith.constant 0 : i32
    %c0_i32_1 = arith.constant 0 : i32
    return %arg1, %c0_i32, %c0_i32_0 : i32, i32, i32
  }
  func.func @transform_3(%arg0: i32, %arg1: i32) -> (i32, i32, i32) {
    %c0_i32 = arith.constant 0 : i32
    %c0_i32_0 = arith.constant 0 : i32
    %c0_i32_1 = arith.constant 0 : i32
    return %arg1, %c0_i32, %c0_i32_0 : i32, i32, i32
  }
  func.func @transform_4(%arg0: i32, %arg1: i32) -> (i32, i32, i32) {
    %c0_i32 = arith.constant 0 : i32
    %c0_i32_0 = arith.constant 0 : i32
    %c0_i32_1 = arith.constant 0 : i32
    return %arg1, %c0_i32, %c0_i32_0 : i32, i32, i32
  }
  func.func @transform_5(%arg0: i32, %arg1: i32) -> (i32, i32, i32) {
    %c0_i32 = arith.constant 0 : i32
    %c0_i32_0 = arith.constant 0 : i32
    %c0_i32_1 = arith.constant 0 : i32
    return %arg1, %c0_i32, %c0_i32_0 : i32, i32, i32
  }
  func.func @transform_6(%arg0: i32, %arg1: i32) -> (i32, i32, i32) {
    %c0_i32 = arith.constant 0 : i32
    %c0_i32_0 = arith.constant 0 : i32
    %c0_i32_1 = arith.constant 0 : i32
    return %arg1, %c0_i32, %c0_i32_0 : i32, i32, i32
  }
  func.func @transform_7(%arg0: i32, %arg1: i32) -> (i32, i32, i32) {
    %c0_i32 = arith.constant 0 : i32
    %c0_i32_0 = arith.constant 0 : i32
    %c0_i32_1 = arith.constant 0 : i32
    return %arg1, %c0_i32, %c0_i32_0 : i32, i32, i32
  }
  func.func @transform_8(%arg0: i32, %arg1: i32) -> (i32, i32, i32) {
    %c0_i32 = arith.constant 0 : i32
    %c0_i32_0 = arith.constant 0 : i32
    %c0_i32_1 = arith.constant 0 : i32
    return %arg1, %c0_i32, %c0_i32_0 : i32, i32, i32
  }
  func.func @transform_9(%arg0: i32, %arg1: i32) -> (i32, i32, i32) {
    %c0_i32 = arith.constant 0 : i32
    %c0_i32_0 = arith.constant 0 : i32
    %c0_i32_1 = arith.constant 0 : i32
    return %arg1, %c0_i32, %c0_i32_0 : i32, i32, i32
  }
  func.func @transform_10(%arg0: i32, %arg1: i32) -> (i32, i32, i32) {
    %c0_i32 = arith.constant 0 : i32
    %c0_i32_0 = arith.constant 0 : i32
    %c0_i32_1 = arith.constant 0 : i32
    return %arg1, %c0_i32, %c0_i32_0 : i32, i32, i32
  }
  func.func @transform_11(%arg0: i32, %arg1: i32) -> (i32, i32, i32) {
    %c0_i32 = arith.constant 0 : i32
    %c0_i32_0 = arith.constant 0 : i32
    %c0_i32_1 = arith.constant 0 : i32
    return %arg1, %c0_i32, %c0_i32_0 : i32, i32, i32
  }
  func.func @transform_12(%arg0: i32, %arg1: i32) -> (i32, i32, i32) {
    %c0_i32 = arith.constant 0 : i32
    %c0_i32_0 = arith.constant 0 : i32
    %c0_i32_1 = arith.constant 0 : i32
    return %arg1, %c0_i32, %c0_i32_0 : i32, i32, i32
  }
  func.func @transform_13(%arg0: i32, %arg1: i32) -> (i32, i32, i32) {
    %c0_i32 = arith.constant 0 : i32
    %c0_i32_0 = arith.constant 0 : i32
    %c0_i32_1 = arith.constant 0 : i32
    return %arg0, %c0_i32, %c0_i32_0 : i32, i32, i32
  }
}

</mosaic_0001>

<llo_original>
// kernel: autoregressive_forward.3
$region0: #{autoregressive_forward.3}
  #allocation0 [shape = 'u32[]', space=smem, size = 0x4, offset = 0x4, fixed_abs, tag = 'smem constant byte address 0x4 - core index']
  #allocation1 [shape = 'u32[144,128]{1,0:T(1,128)}', space=vmem, size = 0x12000, scoped, tag = 'internal scratch']
  #allocation2 [shape = 'bf16[16,32]{1,0:T(16,128)(2,1)}', space=vmem, size = 0x1000, scoped, tag = 'scratch operand']
  %s0 = inlined_call_operand.vmem [shape: bf16[2,8,32], index: 0, kind: input, shape index: {}]
  %s1 = inlined_call_operand.vmem [shape: bf16[1,32], index: 1, kind: input, shape index: {}]
  %s2 = inlined_call_operand.vmem [shape: bf16[1,32], index: 2, kind: input, shape index: {}]
  %s3 = inlined_call_operand.vmem [shape: bf16[32,32], index: 3, kind: input, shape index: {}]
  %s4 = inlined_call_operand.vmem [shape: bf16[1,32], index: 4, kind: input, shape index: {}]
  %s5 = inlined_call_operand.hbm [shape: f32[2,8,32], index: 5, kind: output, shape index: {}]
  %s6 = sld [smem:[#allocation0]]
  $region34: #{autoregressive_forward.3} parent=0
    _
  %s8 = ssub.s32 1, %s6
  %s9 = scalar_select 0, %s8, %s6
  $region1: #{autoregressive_forward.3} parent=0
    #allocation3 [shape = 'u8[8192]{0}', space=vmem, size = 0x2000, scoped, tag = 'output window, operand 0, single buffered']
    #allocation4 [shape = 's32[1]{0}', space=sflag, size = 0x4, scoped, tag = 'scoped memory for autoregressive_forward.3']
    %10 = vsyncpa [#allocation4], 0
    // Predicated region
    $region2: #{autoregressive_forward.3} parent=1 // pred_check
      _
    $region3: #{autoregressive_forward.3} parent=1 // pred_check_branch
      %12 = sbr.rel (0) target = $region5
    $region4: #{autoregressive_forward.3} parent=1 // pred_region
      _
    $region5: #{autoregressive_forward.3} parent=1 // pred_fallthru
      _
    // Predicated region
    $region6: #{autoregressive_forward.3} parent=1 // pred_check
      _
    $region7: #{autoregressive_forward.3} parent=1 // pred_check_branch
      %14 = sbr.rel (0) target = $region9
    $region8: #{autoregressive_forward.3} parent=1 // pred_region
      _
    $region9: #{autoregressive_forward.3} parent=1 // pred_fallthru
      _
    // Predicated region
    $region10: #{autoregressive_forward.3} parent=1 // pred_check
      _
    $region11: #{autoregressive_forward.3} parent=1 // pred_check_branch
      %16 = sbr.rel (0) target = $region13
    $region12: #{autoregressive_forward.3} parent=1 // pred_region
      _
    $region13: #{autoregressive_forward.3} parent=1 // pred_fallthru
      _
    // Predicated region
    $region14: #{autoregressive_forward.3} parent=1 // pred_check
      _
    $region15: #{autoregressive_forward.3} parent=1 // pred_check_branch
      %18 = sbr.rel (0) target = $region17
    $region16: #{autoregressive_forward.3} parent=1 // pred_region
      _
    $region17: #{autoregressive_forward.3} parent=1 // pred_fallthru
      _
    // Predicated region
    $region18: #{autoregressive_forward.3} parent=1 // pred_check
      _
    $region19: #{autoregressive_forward.3} parent=1 // pred_check_branch
      %20 = sbr.rel (0) target = $region21
    $region20: #{autoregressive_forward.3} parent=1 // pred_region
      _
    $region21: #{autoregressive_forward.3} parent=1 // pred_fallthru
      _
    %p22 = scmp.eq.s32.totalorder 0, 0
    // Predicated region
    $region22: #{autoregressive_forward.3} parent=1 // pred_check
      %p23 = pneg %p22
    $region23: #{autoregressive_forward.3} parent=1 // pred_check_branch
      %25 = sbr.rel (%p23) target = $region25
    $region24: #{autoregressive_forward.3} parent=1 // pred_region
      %v26 = vld [vmem:[%s0] sm:$0xf]
      %v27 = vld [vmem:[%s0 + $0x4] sm:$0xf]
      %v28 = vunpack.c.l.bf16 %v26
      %v29 = vunpack.c.l.bf16 %v27
      %v30 = vld [vmem:[%s1] sm:$0x1]
      %v31 = vld [vmem:[%s2] sm:$0x1]
      %vm32 = vcmask 261120
      %v33 = vsel %vm32, %v28, 0.0
      %34 = vadd.xlane.f32.xlu0 %v33
      %v35 = vpop.xlane.xlu0 %34
      %v36 = vsel %vm32, %v29, 0.0
      %37 = vadd.xlane.f32.xlu0 %v36
      %v38 = vpop.xlane.xlu0 %37
      %v39 = vrcp.pop 32.0
      %v40 = vmul.f32 %v35, %v39
      %v41 = vmul.f32 %v38, %v39
      %v42 = vsub.f32 %v28, %v40
      %v43 = vsub.f32 %v29, %v41
      %v44 = vmul.f32 %v42, %v42
      %v45 = vmul.f32 %v43, %v43
      %v46 = vsel %vm32, %v44, 0.0
      %47 = vadd.xlane.f32.xlu0 %v46
      %v48 = vpop.xlane.xlu0 %47
      %v49 = vsel %vm32, %v45, 0.0
      %50 = vadd.xlane.f32.xlu0 %v49
      %v51 = vpop.xlane.xlu0 %50
      %v52 = vmul.f32 %v48, %v39
      %v53 = vmul.f32 %v51, %v39
      %v54 = vadd.f32 %v52, 1e-05
      %v55 = vadd.f32 %v53, 1e-05
      %v56 = vrsqrt.pop %v54
      %v57 = vrsqrt.pop %v55
      %v58 = vmul.f32 %v42, %v56
      %v59 = vmul.f32 %v43, %v57
      %v60 = vunpack.c.l.bf16 %v30
      %v61 = vlaneseq
      %v62 = vshrl.u32 %v61, 7
      %v63 = vsub.s32 0, %v62
      %v64 = vrot.slane %v60, %v63
      %v65 = vmul.f32 %v58, %v64
      %v66 = vmul.f32 %v59, %v64
      %v67 = vunpack.c.l.bf16 %v31
      %v68 = vlaneseq
      %v69 = vshrl.u32 %v68, 7
      %v70 = vsub.s32 0, %v69
      %v71 = vrot.slane %v67, %v70
      %v72 = vadd.f32 %v65, %v71
      %v73 = vadd.f32 %v66, %v71
      %v74 = vpack.c.bf16 %v73, %v72
      %75 = vst.msk [vmem:[#allocation2] sm:$0xff] %vm32, %v74
    $region25: #{autoregressive_forward.3} parent=1 // pred_fallthru
      _
    %v76 = vld [vmem:[#allocation2] sm:$0xff]
    %v77 = vld [vmem:[%s3] sm:$0xf]
    %v78 = vld [vmem:[%s3 + $0x4] sm:$0xf]
    %v79 = vld [vmem:[%s3 + $0x8] sm:$0xf]
    %v80 = vld [vmem:[%s3 + $0xc] sm:$0xf]
    %v81 = vld [vmem:[%s4] sm:$0x1]
    %v82 = vunpack.c.l.bf16 %v81
    %v83 = vlaneseq
    %v84 = vshrl.u32 %v83, 7
    %v85 = vsub.s32 0, %v84
    %v86 = vrot.slane %v82, %v85
    %v91 = vunpack.c.l.b16 %v77
    %v92 = vunpack.c.l.b16 %v78
    %v93 = vunpack.c.l.b16 %v79
    %v94 = vunpack.c.l.b16 %v80
    %v95 = vpack.c.b16 %v92, %v91
    %v96 = vpack.c.b16 %v94, %v93
    %vm99 = vcmask 261120
    %v101 = vsel %vm99, %v76, 0
    %103 = vmatprep.subr.bf16.mxu0 0
    %104 = vmatpush1.bf16.msra.mxu0 %v95
    %105 = vmatprep.subr.bf16.mxu0 0
    %106 = vmatpush1.bf16.msra.mxu0 %v96
    %107 = vmatprep.subr.bf16.mxu0 0
    %108 = vmatpush1.bf16.msra.mxu0 0
    %109 = vmatprep.subr.bf16.mxu0 0
    %110 = vmatpush1.bf16.msra.mxu0 0
    %111 = vmatprep.subr.bf16.mxu0 0
    %112 = vmatpush1.bf16.msra.mxu0 0
    %113 = vmatprep.subr.bf16.mxu0 0
    %114 = vmatpush1.bf16.msra.mxu0 0
    %115 = vmatprep.subr.bf16.mxu0 0
    %116 = vmatpush1.bf16.msra.mxu0 0
    %117 = vmatprep.subr.bf16.mxu0 0
    %118 = vmatpush1.bf16.msra.mxu0 0
    %119 = vmatprep.subr.bf16.mxu0 0
    %120 = vmatpush1.bf16.msra.mxu0 0
    %121 = vmatprep.subr.bf16.mxu0 0
    %122 = vmatpush1.bf16.msra.mxu0 0
    %123 = vmatprep.subr.bf16.mxu0 0
    %124 = vmatpush1.bf16.msra.mxu0 0
    %125 = vmatprep.subr.bf16.mxu0 0
    %126 = vmatpush1.bf16.msra.mxu0 0
    %127 = vmatprep.subr.bf16.mxu0 0
    %128 = vmatpush1.bf16.msra.mxu0 0
    %129 = vmatprep.subr.bf16.mxu0 0
    %130 = vmatpush1.bf16.msra.mxu0 0
    %131 = vmatprep.subr.bf16.mxu0 0
    %132 = vmatpush1.bf16.msra.mxu0 0
    %133 = vmatprep.subr.bf16.mxu0 0
    %134 = vmatpush1.bf16.msra.mxu0 0
    %135 = vmatprep.mubr.bf16.mxu0 0
    %136 = vmatmul.mubr.bf16.gmra.mrb[0].mxu0 %v101
    %v137 = vpop.f32.mrb[0].mxu0
    %v138 = vadd.f32 %v86, %v137
    %v139 = vpop.f32.mrb[0].mxu0
    %v140 = vpop.f32.mrb[0].mxu0
    %v141 = vadd.f32 %v86, %v140
    %v142 = vpop.f32.mrb[0].mxu0
    %143 = vdwg.mxu0
    %144 = vst.msk [vmem:[#allocation3] sm:$0xff] %vm99, %v138
    %145 = vst.msk [vmem:[#allocation3 + $0x8] sm:$0xff] %vm99, %v141
    // Predicated region
    $region26: #{autoregressive_forward.3} parent=1 // pred_check
      _
    $region27: #{autoregressive_forward.3} parent=1 // pred_check_branch
      %147 = sbr.rel (0) target = $region29
    $region28: #{autoregressive_forward.3} parent=1 // pred_region
      %s149 = ssub.s32 256, 256
      %150 = vsyncadd [#allocation4], %s149
      %s151 = sshll.u32 [#allocation3], 4
      %s152 = int_to_ptr.vmem [resolvable:$true] %s151
      %157 = dma.vmem_to_hbm [thread:$0]  %s152, 256, %s5, [#allocation4], 128, 128, 8
    $region29: #{autoregressive_forward.3} parent=1 // pred_fallthru
      _
    // Predicated region
    $region30: #{autoregressive_forward.3} parent=1 // pred_check
      _
    $region31: #{autoregressive_forward.3} parent=1 // pred_check_branch
      %159 = sbr.rel (0) target = $region33
    $region32: #{autoregressive_forward.3} parent=1 // pred_region
      %160 = dma.done [#allocation4], 256
    $region33: #{autoregressive_forward.3} parent=1 // pred_fallthru
      _
    %161 = vsyncpa [#allocation4], 1

// kernel: autoregressive_forward.2
$region0: #{autoregressive_forward.2}
  #allocation0 [shape = 'u32[]', space=smem, size = 0x4, offset = 0x4, fixed_abs, tag = 'smem constant byte address 0x4 - core index']
  #allocation1 [shape = 'u32[144,128]{1,0:T(1,128)}', space=vmem, size = 0x12000, scoped, tag = 'internal scratch']
  %s0 = inlined_call_operand.vmem [shape: bf16[2,8,32], index: 0, kind: input, shape index: {}]
  %s1 = inlined_call_operand.vmem [shape: bf16[2,1,32], index: 1, kind: input, shape index: {}]
  %s2 = inlined_call_operand.vmem [shape: bf16[2,1,32], index: 2, kind: input, shape index: {}]
  %s3 = inlined_call_operand.vmem [shape: bf16[2,32,96], index: 3, kind: input, shape index: {}]
  %s4 = inlined_call_operand.vmem [shape: bf16[2,1,96], index: 4, kind: input, shape index: {}]
  %s5 = inlined_call_operand.vmem [shape: bf16[2,32,32], index: 5, kind: input, shape index: {}]
  %s6 = inlined_call_operand.vmem [shape: bf16[2,1,32], index: 6, kind: input, shape index: {}]
  %s7 = inlined_call_operand.vmem [shape: bf16[2,1,32], index: 7, kind: input, shape index: {}]
  %s8 = inlined_call_operand.vmem [shape: bf16[2,1,32], index: 8, kind: input, shape index: {}]
  %s9 = inlined_call_operand.vmem [shape: bf16[2,32,128], index: 9, kind: input, shape index: {}]
  %s10 = inlined_call_operand.vmem [shape: bf16[2,1,128], index: 10, kind: input, shape index: {}]
  %s11 = inlined_call_operand.vmem [shape: bf16[2,128,32], index: 11, kind: input, shape index: {}]
  %s12 = inlined_call_operand.vmem [shape: bf16[2,1,32], index: 12, kind: input, shape index: {}]
  %s13 = inlined_call_operand.vmem [shape: bf16[2,8,32], index: 13, kind: output, shape index: {}]
  %s14 = sld [smem:[#allocation0]]
  $region89: #{autoregressive_forward.2} parent=0
    _
  %s16 = ssub.s32 1, %s14
  %s17 = scalar_select 0, %s16, %s14
  loop: start=0, step=1, limit=4
  $region2: #{autoregressive_forward.2} parent=0 // loop_pre_header
    _
  $region3: #{autoregressive_forward.2} parent=0 // loop_header
    %s19 = sphi 0, %s23
    %p20 = scmp.ge.s32.totalorder %s19, 4
    %s26 = sphi 0, %s38
    %s27 = sphi 0, %s34
    %s28 = sphi 0, %s26
    %s29 = sphi 0, %s27
    %s30 = sphi 0, %s28
    %s31 = sphi 0, %s29
    %s41 = sphi 0, %s43
    %s44 = sphi 0, %s41
    %s45 = sphi 0, %s44
    %s61 = sphi 0, %s45
    %s67 = sphi 0, %s69
    %s70 = sphi 0, %s67
    %s71 = sphi 0, %s70
    %s87 = sphi 0, %s71
    %s93 = sphi 0, %s95
    %s96 = sphi 0, %s93
    %s97 = sphi 0, %s96
    %s113 = sphi 0, %s97
    %s119 = sphi 0, %s121
    %s122 = sphi 0, %s119
    %s123 = sphi 0, %s122
    %s139 = sphi 0, %s123
    %s145 = sphi 0, %s147
    %s148 = sphi 0, %s145
    %s149 = sphi 0, %s148
    %s165 = sphi 0, %s149
    %s171 = sphi 0, %s173
    %s174 = sphi 0, %s171
    %s175 = sphi 0, %s174
    %s191 = sphi 0, %s175
    %s197 = sphi 0, %s199
    %s200 = sphi 0, %s197
    %s201 = sphi 0, %s200
    %s217 = sphi 0, %s201
    %s223 = sphi 0, %s225
    %s226 = sphi 0, %s223
    %s227 = sphi 0, %s226
    %s243 = sphi 0, %s227
    %s249 = sphi 0, %s251
    %s252 = sphi 0, %s249
    %s253 = sphi 0, %s252
    %s269 = sphi 0, %s253
    %s275 = sphi 0, %s277
    %s278 = sphi 0, %s275
    %s279 = sphi 0, %s278
    %s295 = sphi 0, %s279
    %s301 = sphi 0, %s303
    %s304 = sphi 0, %s301
    %s305 = sphi 0, %s304
    %s321 = sphi 0, %s305
    %s327 = sphi 0, %s329
    %s330 = sphi 0, %s327
    %s331 = sphi 0, %s330
    %s347 = sphi 0, %s331
    %s353 = sphi 0, %s355
    %s356 = sphi 0, %s353
    %s357 = sphi 0, %s356
    %s373 = sphi 0, %s357
    %s379 = sphi 0, %s381
    %s382 = sphi 0, %s379
    %s383 = sphi 0, %s382
    %s399 = sphi 0, %s383
  $region4: #{autoregressive_forward.2} parent=0 // loop_header_branch
    %22 = sbr.rel (%p20) target = $region8
  $region5: #{autoregressive_forward.2} parent=0 // loop_body
    %s24 = ssub.s32 %s19, 1
    %s25 = ssub.s32 %s19, 2
    %s32 = sadd.s32 1, %s27
    %p33 = scmp.ge.s32.totalorder %s32, 2
    %s34 = scalar_select %p33, 0, %s32
    %s35 = sadd.s32 1, %s26
    %s36 = scalar_select %p33, %s35, %s26
    %p37 = scmp.ge.s32.totalorder %s36, 1
    %s38 = scalar_select %p37, 0, %s36
    %s39 = ssub.s32 %s26, %s38
    %p40 = scmp.eq.s32.totalorder %s39, 0
    %s42 = sadd.s32 %s41, 1
    %s43 = scalar_select %p40, %s41, %s42
    %p46 = pneg %p40
    %p47 = scmp.eq.s32.totalorder %s19, 1
    %p48 = por %p46, %p47
    %p49 = scmp.ne.s32.totalorder %s41, %s44
    %p50 = scmp.eq.s32.totalorder %s19, 0
    %p51 = por %p49, %p50
    %p52 = scmp.ne.s32.totalorder %s41, %s44
    %p53 = scmp.eq.s32.totalorder %s24, 1
    %p54 = por %p52, %p53
    %p55 = scmp.ne.s32.totalorder %s44, %s45
    %p56 = scmp.eq.s32.totalorder %s24, 0
    %p57 = por %p55, %p56
    %p58 = scmp.ne.s32.totalorder %s44, %s45
    %p59 = scmp.eq.s32.totalorder %s25, 1
    %p60 = por %p58, %p59
    %p62 = scmp.ne.s32.totalorder %s45, %s61
    %p63 = scmp.eq.s32.totalorder %s25, 0
    %p64 = por %p62, %p63
    %s65 = ssub.s32 %s27, %s34
    %p66 = scmp.eq.s32.totalorder %s65, 0
    %s68 = sadd.s32 %s67, 1
    %s69 = scalar_select %p66, %s67, %s68
    %p72 = pneg %p66
    %p73 = scmp.eq.s32.totalorder %s19, 1
    %p74 = por %p72, %p73
    %p75 = scmp.ne.s32.totalorder %s67, %s70
    %p76 = scmp.eq.s32.totalorder %s19, 0
    %p77 = por %p75, %p76
    %p78 = scmp.ne.s32.totalorder %s67, %s70
    %p79 = scmp.eq.s32.totalorder %s24, 1
    %p80 = por %p78, %p79
    %p81 = scmp.ne.s32.totalorder %s70, %s71
    %p82 = scmp.eq.s32.totalorder %s24, 0
    %p83 = por %p81, %p82
    %p84 = scmp.ne.s32.totalorder %s70, %s71
    %p85 = scmp.eq.s32.totalorder %s25, 1
    %p86 = por %p84, %p85
    %p88 = scmp.ne.s32.totalorder %s71, %s87
    %p89 = scmp.eq.s32.totalorder %s25, 0
    %p90 = por %p88, %p89
    %s91 = ssub.s32 %s27, %s34
    %p92 = scmp.eq.s32.totalorder %s91, 0
    %s94 = sadd.s32 %s93, 1
    %s95 = scalar_select %p92, %s93, %s94
    %p98 = pneg %p92
    %p99 = scmp.eq.s32.totalorder %s19, 1
    %p100 = por %p98, %p99
    %p101 = scmp.ne.s32.totalorder %s93, %s96
    %p102 = scmp.eq.s32.totalorder %s19, 0
    %p103 = por %p101, %p102
    %p104 = scmp.ne.s32.totalorder %s93, %s96
    %p105 = scmp.eq.s32.totalorder %s24, 1
    %p106 = por %p104, %p105
    %p107 = scmp.ne.s32.totalorder %s96, %s97
    %p108 = scmp.eq.s32.totalorder %s24, 0
    %p109 = por %p107, %p108
    %p110 = scmp.ne.s32.totalorder %s96, %s97
    %p111 = scmp.eq.s32.totalorder %s25, 1
    %p112 = por %p110, %p111
    %p114 = scmp.ne.s32.totalorder %s97, %s113
    %p115 = scmp.eq.s32.totalorder %s25, 0
    %p116 = por %p114, %p115
    %s117 = ssub.s32 %s27, %s34
    %p118 = scmp.eq.s32.totalorder %s117, 0
    %s120 = sadd.s32 %s119, 1
    %s121 = scalar_select %p118, %s119, %s120
    %p124 = pneg %p118
    %p125 = scmp.eq.s32.totalorder %s19, 1
    %p126 = por %p124, %p125
    %p127 = scmp.ne.s32.totalorder %s119, %s122
    %p128 = scmp.eq.s32.totalorder %s19, 0
    %p129 = por %p127, %p128
    %p130 = scmp.ne.s32.totalorder %s119, %s122
    %p131 = scmp.eq.s32.totalorder %s24, 1
    %p132 = por %p130, %p131
    %p133 = scmp.ne.s32.totalorder %s122, %s123
    %p134 = scmp.eq.s32.totalorder %s24, 0
    %p135 = por %p133, %p134
    %p136 = scmp.ne.s32.totalorder %s122, %s123
    %p137 = scmp.eq.s32.totalorder %s25, 1
    %p138 = por %p136, %p137
    %p140 = scmp.ne.s32.totalorder %s123, %s139
    %p141 = scmp.eq.s32.totalorder %s25, 0
    %p142 = por %p140, %p141
    %s143 = ssub.s32 %s27, %s34
    %p144 = scmp.eq.s32.totalorder %s143, 0
    %s146 = sadd.s32 %s145, 1
    %s147 = scalar_select %p144, %s145, %s146
    %p150 = pneg %p144
    %p151 = scmp.eq.s32.totalorder %s19, 1
    %p152 = por %p150, %p151
    %p153 = scmp.ne.s32.totalorder %s145, %s148
    %p154 = scmp.eq.s32.totalorder %s19, 0
    %p155 = por %p153, %p154
    %p156 = scmp.ne.s32.totalorder %s145, %s148
    %p157 = scmp.eq.s32.totalorder %s24, 1
    %p158 = por %p156, %p157
    %p159 = scmp.ne.s32.totalorder %s148, %s149
    %p160 = scmp.eq.s32.totalorder %s24, 0
    %p161 = por %p159, %p160
    %p162 = scmp.ne.s32.totalorder %s148, %s149
    %p163 = scmp.eq.s32.totalorder %s25, 1
    %p164 = por %p162, %p163
    %p166 = scmp.ne.s32.totalorder %s149, %s165
    %p167 = scmp.eq.s32.totalorder %s25, 0
    %p168 = por %p166, %p167
    %s169 = ssub.s32 %s27, %s34
    %p170 = scmp.eq.s32.totalorder %s169, 0
    %s172 = sadd.s32 %s171, 1
    %s173 = scalar_select %p170, %s171, %s172
    %p176 = pneg %p170
    %p177 = scmp.eq.s32.totalorder %s19, 1
    %p178 = por %p176, %p177
    %p179 = scmp.ne.s32.totalorder %s171, %s174
    %p180 = scmp.eq.s32.totalorder %s19, 0
    %p181 = por %p179, %p180
    %p182 = scmp.ne.s32.totalorder %s171, %s174
    %p183 = scmp.eq.s32.totalorder %s24, 1
    %p184 = por %p182, %p183
    %p185 = scmp.ne.s32.totalorder %s174, %s175
    %p186 = scmp.eq.s32.totalorder %s24, 0
    %p187 = por %p185, %p186
    %p188 = scmp.ne.s32.totalorder %s174, %s175
    %p189 = scmp.eq.s32.totalorder %s25, 1
    %p190 = por %p188, %p189
    %p192 = scmp.ne.s32.totalorder %s175, %s191
    %p193 = scmp.eq.s32.totalorder %s25, 0
    %p194 = por %p192, %p193
    %s195 = ssub.s32 %s27, %s34
    %p196 = scmp.eq.s32.totalorder %s195, 0
    %s198 = sadd.s32 %s197, 1
    %s199 = scalar_select %p196, %s197, %s198
    %p202 = pneg %p196
    %p203 = scmp.eq.s32.totalorder %s19, 1
    %p204 = por %p202, %p203
    %p205 = scmp.ne.s32.totalorder %s197, %s200
    %p206 = scmp.eq.s32.totalorder %s19, 0
    %p207 = por %p205, %p206
    %p208 = scmp.ne.s32.totalorder %s197, %s200
    %p209 = scmp.eq.s32.totalorder %s24, 1
    %p210 = por %p208, %p209
    %p211 = scmp.ne.s32.totalorder %s200, %s201
    %p212 = scmp.eq.s32.totalorder %s24, 0
    %p213 = por %p211, %p212
    %p214 = scmp.ne.s32.totalorder %s200, %s201
    %p215 = scmp.eq.s32.totalorder %s25, 1
    %p216 = por %p214, %p215
    %p218 = scmp.ne.s32.totalorder %s201, %s217
    %p219 = scmp.eq.s32.totalorder %s25, 0
    %p220 = por %p218, %p219
    %s221 = ssub.s32 %s27, %s34
    %p222 = scmp.eq.s32.totalorder %s221, 0
    %s224 = sadd.s32 %s223, 1
    %s225 = scalar_select %p222, %s223, %s224
    %p228 = pneg %p222
    %p229 = scmp.eq.s32.totalorder %s19, 1
    %p230 = por %p228, %p229
    %p231 = scmp.ne.s32.totalorder %s223, %s226
    %p232 = scmp.eq.s32.totalorder %s19, 0
    %p233 = por %p231, %p232
    %p234 = scmp.ne.s32.totalorder %s223, %s226
    %p235 = scmp.eq.s32.totalorder %s24, 1
    %p236 = por %p234, %p235
    %p237 = scmp.ne.s32.totalorder %s226, %s227
    %p238 = scmp.eq.s32.totalorder %s24, 0
    %p239 = por %p237, %p238
    %p240 = scmp.ne.s32.totalorder %s226, %s227
    %p241 = scmp.eq.s32.totalorder %s25, 1
    %p242 = por %p240, %p241
    %p244 = scmp.ne.s32.totalorder %s227, %s243
    %p245 = scmp.eq.s32.totalorder %s25, 0
    %p246 = por %p244, %p245
    %s247 = ssub.s32 %s27, %s34
    %p248 = scmp.eq.s32.totalorder %s247, 0
    %s250 = sadd.s32 %s249, 1
    %s251 = scalar_select %p248, %s249, %s250
    %p254 = pneg %p248
    %p255 = scmp.eq.s32.totalorder %s19, 1
    %p256 = por %p254, %p255
    %p257 = scmp.ne.s32.totalorder %s249, %s252
    %p258 = scmp.eq.s32.totalorder %s19, 0
    %p259 = por %p257, %p258
    %p260 = scmp.ne.s32.totalorder %s249, %s252
    %p261 = scmp.eq.s32.totalorder %s24, 1
    %p262 = por %p260, %p261
    %p263 = scmp.ne.s32.totalorder %s252, %s253
    %p264 = scmp.eq.s32.totalorder %s24, 0
    %p265 = por %p263, %p264
    %p266 = scmp.ne.s32.totalorder %s252, %s253
    %p267 = scmp.eq.s32.totalorder %s25, 1
    %p268 = por %p266, %p267
    %p270 = scmp.ne.s32.totalorder %s253, %s269
    %p271 = scmp.eq.s32.totalorder %s25, 0
    %p272 = por %p270, %p271
    %s273 = ssub.s32 %s27, %s34
    %p274 = scmp.eq.s32.totalorder %s273, 0
    %s276 = sadd.s32 %s275, 1
    %s277 = scalar_select %p274, %s275, %s276
    %p280 = pneg %p274
    %p281 = scmp.eq.s32.totalorder %s19, 1
    %p282 = por %p280, %p281
    %p283 = scmp.ne.s32.totalorder %s275, %s278
    %p284 = scmp.eq.s32.totalorder %s19, 0
    %p285 = por %p283, %p284
    %p286 = scmp.ne.s32.totalorder %s275, %s278
    %p287 = scmp.eq.s32.totalorder %s24, 1
    %p288 = por %p286, %p287
    %p289 = scmp.ne.s32.totalorder %s278, %s279
    %p290 = scmp.eq.s32.totalorder %s24, 0
    %p291 = por %p289, %p290
    %p292 = scmp.ne.s32.totalorder %s278, %s279
    %p293 = scmp.eq.s32.totalorder %s25, 1
    %p294 = por %p292, %p293
    %p296 = scmp.ne.s32.totalorder %s279, %s295
    %p297 = scmp.eq.s32.totalorder %s25, 0
    %p298 = por %p296, %p297
    %s299 = ssub.s32 %s27, %s34
    %p300 = scmp.eq.s32.totalorder %s299, 0
    %s302 = sadd.s32 %s301, 1
    %s303 = scalar_select %p300, %s301, %s302
    %p306 = pneg %p300
    %p307 = scmp.eq.s32.totalorder %s19, 1
    %p308 = por %p306, %p307
    %p309 = scmp.ne.s32.totalorder %s301, %s304
    %p310 = scmp.eq.s32.totalorder %s19, 0
    %p311 = por %p309, %p310
    %p312 = scmp.ne.s32.totalorder %s301, %s304
    %p313 = scmp.eq.s32.totalorder %s24, 1
    %p314 = por %p312, %p313
    %p315 = scmp.ne.s32.totalorder %s304, %s305
    %p316 = scmp.eq.s32.totalorder %s24, 0
    %p317 = por %p315, %p316
    %p318 = scmp.ne.s32.totalorder %s304, %s305
    %p319 = scmp.eq.s32.totalorder %s25, 1
    %p320 = por %p318, %p319
    %p322 = scmp.ne.s32.totalorder %s305, %s321
    %p323 = scmp.eq.s32.totalorder %s25, 0
    %p324 = por %p322, %p323
    %s325 = ssub.s32 %s27, %s34
    %p326 = scmp.eq.s32.totalorder %s325, 0
    %s328 = sadd.s32 %s327, 1
    %s329 = scalar_select %p326, %s327, %s328
    %p332 = pneg %p326
    %p333 = scmp.eq.s32.totalorder %s19, 1
    %p334 = por %p332, %p333
    %p335 = scmp.ne.s32.totalorder %s327, %s330
    %p336 = scmp.eq.s32.totalorder %s19, 0
    %p337 = por %p335, %p336
    %p338 = scmp.ne.s32.totalorder %s327, %s330
    %p339 = scmp.eq.s32.totalorder %s24, 1
    %p340 = por %p338, %p339
    %p341 = scmp.ne.s32.totalorder %s330, %s331
    %p342 = scmp.eq.s32.totalorder %s24, 0
    %p343 = por %p341, %p342
    %p344 = scmp.ne.s32.totalorder %s330, %s331
    %p345 = scmp.eq.s32.totalorder %s25, 1
    %p346 = por %p344, %p345
    %p348 = scmp.ne.s32.totalorder %s331, %s347
    %p349 = scmp.eq.s32.totalorder %s25, 0
    %p350 = por %p348, %p349
    %s351 = ssub.s32 %s27, %s34
    %p352 = scmp.eq.s32.totalorder %s351, 0
    %s354 = sadd.s32 %s353, 1
    %s355 = scalar_select %p352, %s353, %s354
    %p358 = pneg %p352
    %p359 = scmp.eq.s32.totalorder %s19, 1
    %p360 = por %p358, %p359
    %p361 = scmp.ne.s32.totalorder %s353, %s356
    %p362 = scmp.eq.s32.totalorder %s19, 0
    %p363 = por %p361, %p362
    %p364 = scmp.ne.s32.totalorder %s353, %s356
    %p365 = scmp.eq.s32.totalorder %s24, 1
    %p366 = por %p364, %p365
    %p367 = scmp.ne.s32.totalorder %s356, %s357
    %p368 = scmp.eq.s32.totalorder %s24, 0
    %p369 = por %p367, %p368
    %p370 = scmp.ne.s32.totalorder %s356, %s357
    %p371 = scmp.eq.s32.totalorder %s25, 1
    %p372 = por %p370, %p371
    %p374 = scmp.ne.s32.totalorder %s357, %s373
    %p375 = scmp.eq.s32.totalorder %s25, 0
    %p376 = por %p374, %p375
    %s377 = ssub.s32 %s26, %s38
    %p378 = scmp.eq.s32.totalorder %s377, 0
    %s380 = sadd.s32 %s379, 1
    %s381 = scalar_select %p378, %s379, %s380
    %p384 = pneg %p378
    %p385 = scmp.eq.s32.totalorder %s19, 1
    %p386 = por %p384, %p385
    %p387 = scmp.ne.s32.totalorder %s379, %s382
    %p388 = scmp.eq.s32.totalorder %s19, 0
    %p389 = por %p387, %p388
    %p390 = scmp.ne.s32.totalorder %s379, %s382
    %p391 = scmp.eq.s32.totalorder %s24, 1
    %p392 = por %p390, %p391
    %p393 = scmp.ne.s32.totalorder %s382, %s383
    %p394 = scmp.eq.s32.totalorder %s24, 0
    %p395 = por %p393, %p394
    %p396 = scmp.ne.s32.totalorder %s382, %s383
    %p397 = scmp.eq.s32.totalorder %s25, 1
    %p398 = por %p396, %p397
    %p400 = scmp.ne.s32.totalorder %s383, %s399
    %p401 = scmp.eq.s32.totalorder %s25, 0
    %p402 = por %p400, %p401
    %p403 = scmp.le.s32.totalorder 1, %s19
    %p404 = scmp.lt.s32.totalorder %s19, 3
    %p405 = pnand %p403, %p404
    %p406 = pneg %p405
    // Predicated region
    $region9: #{autoregressive_forward.2} parent=5 // pred_check
      _
    $region10: #{autoregressive_forward.2} parent=5 // pred_check_branch
      %408 = sbr.rel (%p405) target = $region12
    $region11: #{autoregressive_forward.2} parent=5 // pred_region
      %s409 = ssub.s32 %s19, 1
      // Predicated region
      $region13: #{autoregressive_forward.2} parent=11 // pred_check
        %p410 = pneg %p57
      $region14: #{autoregressive_forward.2} parent=11 // pred_check_branch
        %412 = sbr.rel (%p410) target = $region16
      $region15: #{autoregressive_forward.2} parent=11 // pred_region
        %s413 = smul.u32 2, %s28
        %p414 = scmp.lt.s32.totalorder %s413, 1
        %s415 = scalar_select %p414, %s413, 1
        %s416 = smul.addr %s415, 4
        %s417 = scalar_lea.vmem %s0, %s416
        %s418 = smul.u32 2, %s28
      $region16: #{autoregressive_forward.2} parent=11 // pred_fallthru
        _
    $region12: #{autoregressive_forward.2} parent=5 // pred_fallthru
      _
    %p419 = scmp.lt.s32.totalorder %s19, 2
    // Predicated region
    $region17: #{autoregressive_forward.2} parent=5 // pred_check
      %p420 = pneg %p419
    $region18: #{autoregressive_forward.2} parent=5 // pred_check_branch
      %422 = sbr.rel (%p420) target = $region20
    $region19: #{autoregressive_forward.2} parent=5 // pred_region
      // Predicated region
      $region21: #{autoregressive_forward.2} parent=19 // pred_check
        %p423 = pneg %p77
      $region22: #{autoregressive_forward.2} parent=19 // pred_check_branch
        %425 = sbr.rel (%p423) target = $region24
      $region23: #{autoregressive_forward.2} parent=19 // pred_region
        %p426 = scmp.lt.s32.totalorder %s27, 1
        %s427 = scalar_select %p426, %s27, 1
        %s428 = scalar_lea.vmem %s1, %s427
      $region24: #{autoregressive_forward.2} parent=19 // pred_fallthru
        _
      // Predicated region
      $region25: #{autoregressive_forward.2} parent=19 // pred_check
        %p429 = pneg %p103
      $region26: #{autoregressive_forward.2} parent=19 // pred_check_branch
        %431 = sbr.rel (%p429) target = $region28
      $region27: #{autoregressive_forward.2} parent=19 // pred_region
        %p432 = scmp.lt.s32.totalorder %s27, 1
        %s433 = scalar_select %p432, %s27, 1
        %s434 = scalar_lea.vmem %s2, %s433
      $region28: #{autoregressive_forward.2} parent=19 // pred_fallthru
        _
      // Predicated region
      $region29: #{autoregressive_forward.2} parent=19 // pred_check
        %p435 = pneg %p129
      $region30: #{autoregressive_forward.2} parent=19 // pred_check_branch
        %437 = sbr.rel (%p435) target = $region32
      $region31: #{autoregressive_forward.2} parent=19 // pred_region
        %p438 = scmp.lt.s32.totalorder %s27, 1
        %s439 = scalar_select %p438, %s27, 1
        %s440 = smul.addr %s439, 4
        %s441 = smul.addr %s440, 4
        %s442 = scalar_lea.vmem %s3, %s441
      $region32: #{autoregressive_forward.2} parent=19 // pred_fallthru
        _
      // Predicated region
      $region33: #{autoregressive_forward.2} parent=19 // pred_check
        %p443 = pneg %p155
      $region34: #{autoregressive_forward.2} parent=19 // pred_check_branch
        %445 = sbr.rel (%p443) target = $region36
      $region35: #{autoregressive_forward.2} parent=19 // pred_region
        %p446 = scmp.lt.s32.totalorder %s27, 1
        %s447 = scalar_select %p446, %s27, 1
        %s448 = scalar_lea.vmem %s4, %s447
      $region36: #{autoregressive_forward.2} parent=19 // pred_fallthru
        _
      // Predicated region
      $region37: #{autoregressive_forward.2} parent=19 // pred_check
        %p449 = pneg %p181
      $region38: #{autoregressive_forward.2} parent=19 // pred_check_branch
        %451 = sbr.rel (%p449) target = $region40
      $region39: #{autoregressive_forward.2} parent=19 // pred_region
        %p452 = scmp.lt.s32.totalorder %s27, 1
        %s453 = scalar_select %p452, %s27, 1
        %s454 = smul.addr %s453, 4
        %s455 = smul.addr %s454, 4
        %s456 = scalar_lea.vmem %s5, %s455
      $region40: #{autoregressive_forward.2} parent=19 // pred_fallthru
        _
      // Predicated region
      $region41: #{autoregressive_forward.2} parent=19 // pred_check
        %p457 = pneg %p207
      $region42: #{autoregressive_forward.2} parent=19 // pred_check_branch
        %459 = sbr.rel (%p457) target = $region44
      $region43: #{autoregressive_forward.2} parent=19 // pred_region
        %p460 = scmp.lt.s32.totalorder %s27, 1
        %s461 = scalar_select %p460, %s27, 1
        %s462 = scalar_lea.vmem %s6, %s461
      $region44: #{autoregressive_forward.2} parent=19 // pred_fallthru
        _
      // Predicated region
      $region45: #{autoregressive_forward.2} parent=19 // pred_check
        %p463 = pneg %p233
      $region46: #{autoregressive_forward.2} parent=19 // pred_check_branch
        %465 = sbr.rel (%p463) target = $region48
      $region47: #{autoregressive_forward.2} parent=19 // pred_region
        %p466 = scmp.lt.s32.totalorder %s27, 1
        %s467 = scalar_select %p466, %s27, 1
        %s468 = scalar_lea.vmem %s7, %s467
      $region48: #{autoregressive_forward.2} parent=19 // pred_fallthru
        _
      // Predicated region
      $region49: #{autoregressive_forward.2} parent=19 // pred_check
        %p469 = pneg %p259
      $region50: #{autoregressive_forward.2} parent=19 // pred_check_branch
        %471 = sbr.rel (%p469) target = $region52
      $region51: #{autoregressive_forward.2} parent=19 // pred_region
        %p472 = scmp.lt.s32.totalorder %s27, 1
        %s473 = scalar_select %p472, %s27, 1
        %s474 = scalar_lea.vmem %s8, %s473
      $region52: #{autoregressive_forward.2} parent=19 // pred_fallthru
        _
      // Predicated region
      $region53: #{autoregressive_forward.2} parent=19 // pred_check
        %p475 = pneg %p285
      $region54: #{autoregressive_forward.2} parent=19 // pred_check_branch
        %477 = sbr.rel (%p475) target = $region56
      $region55: #{autoregressive_forward.2} parent=19 // pred_region
        %p478 = scmp.lt.s32.totalorder %s27, 1
        %s479 = scalar_select %p478, %s27, 1
        %s480 = smul.addr %s479, 4
        %s481 = smul.addr %s480, 4
        %s482 = scalar_lea.vmem %s9, %s481
      $region56: #{autoregressive_forward.2} parent=19 // pred_fallthru
        _
      // Predicated region
      $region57: #{autoregressive_forward.2} parent=19 // pred_check
        %p483 = pneg %p311
      $region58: #{autoregressive_forward.2} parent=19 // pred_check_branch
        %485 = sbr.rel (%p483) target = $region60
      $region59: #{autoregressive_forward.2} parent=19 // pred_region
        %p486 = scmp.lt.s32.totalorder %s27, 1
        %s487 = scalar_select %p486, %s27, 1
        %s488 = scalar_lea.vmem %s10, %s487
      $region60: #{autoregressive_forward.2} parent=19 // pred_fallthru
        _
      // Predicated region
      $region61: #{autoregressive_forward.2} parent=19 // pred_check
        %p489 = pneg %p337
      $region62: #{autoregressive_forward.2} parent=19 // pred_check_branch
        %491 = sbr.rel (%p489) target = $region64
      $region63: #{autoregressive_forward.2} parent=19 // pred_region
        %p492 = scmp.lt.s32.totalorder %s27, 1
        %s493 = scalar_select %p492, %s27, 1
        %s494 = smul.addr %s493, 16
        %s495 = smul.addr %s494, 4
        %s496 = scalar_lea.vmem %s11, %s495
      $region64: #{autoregressive_forward.2} parent=19 // pred_fallthru
        _
      // Predicated region
      $region65: #{autoregressive_forward.2} parent=19 // pred_check
        %p497 = pneg %p363
      $region66: #{autoregressive_forward.2} parent=19 // pred_check_branch
        %499 = sbr.rel (%p497) target = $region68
      $region67: #{autoregressive_forward.2} parent=19 // pred_region
        %p500 = scmp.lt.s32.totalorder %s27, 1
        %s501 = scalar_select %p500, %s27, 1
        %s502 = scalar_lea.vmem %s12, %s501
      $region68: #{autoregressive_forward.2} parent=19 // pred_fallthru
        _
    $region20: #{autoregressive_forward.2} parent=5 // pred_fallthru
      _
    %p503 = scmp.le.s32.totalorder 1, %s19
    %p504 = scmp.lt.s32.totalorder %s19, 3
    %p505 = pnand %p503, %p504
    %p506 = pneg %p505
    // Predicated region
    $region69: #{autoregressive_forward.2} parent=5 // pred_check
      _
    $region70: #{autoregressive_forward.2} parent=5 // pred_check_branch
      %508 = sbr.rel (%p505) target = $region72
    $region71: #{autoregressive_forward.2} parent=5 // pred_region
      %s509 = ssub.s32 %s19, 1
      %s510 = smul.u32 2, %s28
      %p511 = scmp.lt.s32.totalorder %s510, 1
      %s512 = scalar_select %p511, %s510, 1
      %s513 = smul.addr %s512, 4
      %s514 = scalar_lea.vmem %s0, %s513
      %p515 = pneg %p57
      %p516 = pneg %p54
      %p517 = scmp.lt.s32.totalorder %s29, 1
      %s518 = scalar_select %p517, %s29, 1
      %s519 = scalar_lea.vmem %s1, %s518
      %p520 = pneg %p83
      %p521 = pneg %p80
      %p522 = scmp.lt.s32.totalorder %s29, 1
      %s523 = scalar_select %p522, %s29, 1
      %s524 = scalar_lea.vmem %s2, %s523
      %p525 = pneg %p109
      %p526 = pneg %p106
      %p527 = scmp.lt.s32.totalorder %s29, 1
      %s528 = scalar_select %p527, %s29, 1
      %s529 = smul.addr %s528, 4
      %s530 = smul.addr %s529, 4
      %s531 = scalar_lea.vmem %s3, %s530
      %p532 = pneg %p135
      %p533 = pneg %p132
      %p534 = scmp.lt.s32.totalorder %s29, 1
      %s535 = scalar_select %p534, %s29, 1
      %s536 = scalar_lea.vmem %s4, %s535
      %p537 = pneg %p161
      %p538 = pneg %p158
      %p539 = scmp.lt.s32.totalorder %s29, 1
      %s540 = scalar_select %p539, %s29, 1
      %s541 = smul.addr %s540, 4
      %s542 = smul.addr %s541, 4
      %s543 = scalar_lea.vmem %s5, %s542
      %p544 = pneg %p187
      %p545 = pneg %p184
      %p546 = scmp.lt.s32.totalorder %s29, 1
      %s547 = scalar_select %p546, %s29, 1
      %s548 = scalar_lea.vmem %s6, %s547
      %p549 = pneg %p213
      %p550 = pneg %p210
      %p551 = scmp.lt.s32.totalorder %s29, 1
      %s552 = scalar_select %p551, %s29, 1
      %s553 = scalar_lea.vmem %s7, %s552
      %p554 = pneg %p239
      %p555 = pneg %p236
      %p556 = scmp.lt.s32.totalorder %s29, 1
      %s557 = scalar_select %p556, %s29, 1
      %s558 = scalar_lea.vmem %s8, %s557
      %p559 = pneg %p265
      %p560 = pneg %p262
      %p561 = scmp.lt.s32.totalorder %s29, 1
      %s562 = scalar_select %p561, %s29, 1
      %s563 = smul.addr %s562, 4
      %s564 = smul.addr %s563, 4
      %s565 = scalar_lea.vmem %s9, %s564
      %p566 = pneg %p291
      %p567 = pneg %p288
      %p568 = scmp.lt.s32.totalorder %s29, 1
      %s569 = scalar_select %p568, %s29, 1
      %s570 = scalar_lea.vmem %s10, %s569
      %p571 = pneg %p317
      %p572 = pneg %p314
      %p573 = scmp.lt.s32.totalorder %s29, 1
      %s574 = scalar_select %p573, %s29, 1
      %s575 = smul.addr %s574, 16
      %s576 = smul.addr %s575, 4
      %s577 = scalar_lea.vmem %s11, %s576
      %p578 = pneg %p343
      %p579 = pneg %p340
      %p580 = scmp.lt.s32.totalorder %s29, 1
      %s581 = scalar_select %p580, %s29, 1
      %s582 = scalar_lea.vmem %s12, %s581
      %p583 = pneg %p369
      %p584 = pneg %p366
      %p585 = pneg %p395
      %p586 = pneg %p392
      %s587 = smul.u32 2, %s28
      %p588 = scmp.lt.s32.totalorder %s587, 1
      %s589 = scalar_select %p588, %s587, 1
      %s590 = smul.addr %s589, 4
      %s591 = scalar_lea.vmem %s13, %s590
      %s592 = smul.u32 2, %s28
      %p593 = scmp.lt.s32.totalorder %s592, 1
      %s594 = scalar_select %p593, %s592, 1
      %s595 = smul.addr %s594, 4
      %s596 = scalar_lea.vmem %s0, %s595
      %s597 = smul.u32 2, %s28
      %p598 = scmp.lt.s32.totalorder %s29, 1
      %s599 = scalar_select %p598, %s29, 1
      %s600 = scalar_lea.vmem %s1, %s599
      %p601 = scmp.lt.s32.totalorder %s29, 1
      %s602 = scalar_select %p601, %s29, 1
      %s603 = scalar_lea.vmem %s2, %s602
      %p604 = scmp.lt.s32.totalorder %s29, 1
      %s605 = scalar_select %p604, %s29, 1
      %s606 = smul.addr %s605, 4
      %s607 = smul.addr %s606, 4
      %s608 = scalar_lea.vmem %s3, %s607
      %p609 = scmp.lt.s32.totalorder %s29, 1
      %s610 = scalar_select %p609, %s29, 1
      %s611 = scalar_lea.vmem %s4, %s610
      %p612 = scmp.lt.s32.totalorder %s29, 1
      %s613 = scalar_select %p612, %s29, 1
      %s614 = smul.addr %s613, 4
      %s615 = smul.addr %s614, 4
      %s616 = scalar_lea.vmem %s5, %s615
      %p617 = scmp.lt.s32.totalorder %s29, 1
      %s618 = scalar_select %p617, %s29, 1
      %s619 = scalar_lea.vmem %s6, %s618
      %p620 = scmp.lt.s32.totalorder %s29, 1
      %s621 = scalar_select %p620, %s29, 1
      %s622 = scalar_lea.vmem %s7, %s621
      %p623 = scmp.lt.s32.totalorder %s29, 1
      %s624 = scalar_select %p623, %s29, 1
      %s625 = scalar_lea.vmem %s8, %s624
      %p626 = scmp.lt.s32.totalorder %s29, 1
      %s627 = scalar_select %p626, %s29, 1
      %s628 = smul.addr %s627, 4
      %s629 = smul.addr %s628, 4
      %s630 = scalar_lea.vmem %s9, %s629
      %p631 = scmp.lt.s32.totalorder %s29, 1
      %s632 = scalar_select %p631, %s29, 1
      %s633 = scalar_lea.vmem %s10, %s632
      %p634 = scmp.lt.s32.totalorder %s29, 1
      %s635 = scalar_select %p634, %s29, 1
      %s636 = smul.addr %s635, 16
      %s637 = smul.addr %s636, 4
      %s638 = scalar_lea.vmem %s11, %s637
      %p639 = scmp.lt.s32.totalorder %s29, 1
      %s640 = scalar_select %p639, %s29, 1
      %s641 = scalar_lea.vmem %s12, %s640
      %s642 = smul.u32 2, %s28
      %p643 = scmp.lt.s32.totalorder %s642, 1
      %s644 = scalar_select %p643, %s642, 1
      %s645 = smul.addr %s644, 4
      %s646 = scalar_lea.vmem %s13, %s645
      %s647 = smul.u32 2, %s28
      %p649 = scmp.eq.s32.totalorder %s29, 0
      // Predicated region
      $region73: #{autoregressive_forward.2} parent=71 // pred_check
        %p650 = pneg %p649
      $region74: #{autoregressive_forward.2} parent=71 // pred_check_branch
        %652 = sbr.rel (%p650) target = $region76
      $region75: #{autoregressive_forward.2} parent=71 // pred_region
        %v653 = vld [vmem:[%s596] sm:$0xf]
        %v654 = vld [vmem:[%s596 + $0x4] sm:$0xf]
        %vm655 = vcmask 257024
        %656 = vst.msk [vmem:[%s646] sm:$0xf] %vm655, %v653
        %657 = vst.msk [vmem:[%s646 + $0x4] sm:$0xf] %vm655, %v654
      $region76: #{autoregressive_forward.2} parent=71 // pred_fallthru
        _
      %v658 = vld [vmem:[%s646] sm:$0xf]
      %v659 = vld [vmem:[%s646 + $0x4] sm:$0xf]
      %v660 = vunpack.c.l.bf16 %v658
      %v661 = vunpack.c.l.bf16 %v659
      %v662 = vld [vmem:[%s600] sm:$0x1]
      %v663 = vld [vmem:[%s603] sm:$0x1]
      %vm664 = vcmask 261120
      %v665 = vsel %vm664, %v660, 0.0
      %666 = vadd.xlane.f32.xlu0 %v665
      %v667 = vpop.xlane.xlu0 %666
      %v668 = vsel %vm664, %v661, 0.0
      %669 = vadd.xlane.f32.xlu0 %v668
      %v670 = vpop.xlane.xlu0 %669
      %v671 = vrcp.pop 32.0
      %v672 = vmul.f32 %v667, %v671
      %v673 = vmul.f32 %v670, %v671
      %v674 = vsub.f32 %v660, %v672
      %v675 = vsub.f32 %v661, %v673
      %v676 = vmul.f32 %v674, %v674
      %v677 = vmul.f32 %v675, %v675
      %v678 = vsel %vm664, %v676, 0.0
      %679 = vadd.xlane.f32.xlu0 %v678
      %v680 = vpop.xlane.xlu0 %679
      %v681 = vsel %vm664, %v677, 0.0
      %682 = vadd.xlane.f32.xlu0 %v681
      %v683 = vpop.xlane.xlu0 %682
      %v684 = vmul.f32 %v680, %v671
      %v685 = vmul.f32 %v683, %v671
      %v686 = vadd.f32 %v684, 1e-05
      %v687 = vadd.f32 %v685, 1e-05
      %v688 = vrsqrt.pop %v686
      %v689 = vrsqrt.pop %v687
      %v690 = vmul.f32 %v674, %v688
      %v691 = vmul.f32 %v675, %v689
      %v692 = vunpack.c.l.bf16 %v662
      %v693 = vlaneseq
      %v694 = vshrl.u32 %v693, 7
      %v695 = vsub.s32 0, %v694
      %v696 = vrot.slane %v692, %v695
      %v697 = vmul.f32 %v690, %v696
      %v698 = vmul.f32 %v691, %v696
      %v699 = vunpack.c.l.bf16 %v663
      %v700 = vlaneseq
      %v701 = vshrl.u32 %v700, 7
      %v702 = vsub.s32 0, %v701
      %v703 = vrot.slane %v699, %v702
      %v704 = vadd.f32 %v697, %v703
      %v705 = vadd.f32 %v698, %v703
      %v706 = vpack.c.bf16 %v705, %v704
      %v707 = vld [vmem:[%s608] sm:$0xf]
      %v708 = vld [vmem:[%s608 + $0x4] sm:$0xf]
      %v709 = vld [vmem:[%s608 + $0x8] sm:$0xf]
      %v710 = vld [vmem:[%s608 + $0xc] sm:$0xf]
      %v711 = vld [vmem:[%s611] sm:$0x1]
      %v712 = vunpack.c.l.bf16 %v711
      %v713 = vlaneseq
      %v714 = vshrl.u32 %v713, 7
      %v715 = vsub.s32 0, %v714
      %v716 = vrot.slane %v712, %v715
      %v721 = vunpack.c.l.b16 %v707
      %v722 = vunpack.c.l.b16 %v708
      %v723 = vunpack.c.l.b16 %v709
      %v724 = vunpack.c.l.b16 %v710
      %v725 = vpack.c.b16 %v722, %v721
      %v726 = vpack.c.b16 %v724, %v723
      %v730 = vsel %vm664, %v706, 0
      %732 = vmatprep.subr.bf16.mxu0 0
      %733 = vmatpush1.bf16.msra.mxu0 %v725
      %734 = vmatprep.subr.bf16.mxu0 0
      %735 = vmatpush1.bf16.msra.mxu0 %v726
      %736 = vmatprep.subr.bf16.mxu0 0
      %737 = vmatpush1.bf16.msra.mxu0 0
      %738 = vmatprep.subr.bf16.mxu0 0
      %739 = vmatpush1.bf16.msra.mxu0 0
      %740 = vmatprep.subr.bf16.mxu0 0
      %741 = vmatpush1.bf16.msra.mxu0 0
      %742 = vmatprep.subr.bf16.mxu0 0
      %743 = vmatpush1.bf16.msra.mxu0 0
      %744 = vmatprep.subr.bf16.mxu0 0
      %745 = vmatpush1.bf16.msra.mxu0 0
      %746 = vmatprep.subr.bf16.mxu0 0
      %747 = vmatpush1.bf16.msra.mxu0 0
      %748 = vmatprep.subr.bf16.mxu0 0
      %749 = vmatpush1.bf16.msra.mxu0 0
      %750 = vmatprep.subr.bf16.mxu0 0
      %751 = vmatpush1.bf16.msra.mxu0 0
      %752 = vmatprep.subr.bf16.mxu0 0
      %753 = vmatpush1.bf16.msra.mxu0 0
      %754 = vmatprep.subr.bf16.mxu0 0
      %755 = vmatpush1.bf16.msra.mxu0 0
      %756 = vmatprep.subr.bf16.mxu0 0
      %757 = vmatpush1.bf16.msra.mxu0 0
      %758 = vmatprep.subr.bf16.mxu0 0
      %759 = vmatpush1.bf16.msra.mxu0 0
      %760 = vmatprep.subr.bf16.mxu0 0
      %761 = vmatpush1.bf16.msra.mxu0 0
      %762 = vmatprep.subr.bf16.mxu0 0
      %763 = vmatpush1.bf16.msra.mxu0 0
      %764 = vmatprep.mubr.bf16.mxu0 0
      %765 = vmatmul.mubr.bf16.gmra.mrb[0].mxu0 %v730
      %v766 = vpop.f32.mrb[0].mxu0
      %v767 = vadd.f32 %v716, %v766
      %v768 = vpop.f32.mrb[0].mxu0
      %v769 = vpop.f32.mrb[0].mxu0
      %v770 = vadd.f32 %v716, %v769
      %v771 = vpop.f32.mrb[0].mxu0
      %772 = vdwg.mxu0
      %v773 = vpack.c.bf16 %v770, %v767
      %775 = vrot.lane.b32.xlu0 %v773, 120
      %v776 = vpop.permute.xlu0 %775
      %777 = vrot.lane.b32.xlu0 %v773, 112
      %v778 = vpop.permute.xlu0 %777
      %779 = vrot.lane.b32.xlu0 %v773, 104
      %v780 = vpop.permute.xlu0 %779
      %v783 = vpack.i.b16 %v776, %v773
      %v785 = vshrl.u32 %v773, 16
      %v786 = vshrl.u32 %v776, 16
      %v787 = vpack.i.b16 %v786, %v785
      %v791 = vpack.i.b16 %v780, %v778
      %v793 = vshrl.u32 %v778, 16
      %v794 = vshrl.u32 %v780, 16
      %v795 = vpack.i.b16 %v794, %v793
      %v798 = vpack.i.b16 0, 0
      %v800 = vshrl.u32 0, 16
      %v801 = vpack.i.b16 %v800, %v800
      %v803 = vcombine.high %v783, %v798
      %v805 = vunpack.c.l.s4 1983009808
      %v806 = vunpack.c.0.s8 %v805
      %v807 = vlaneseq
      %v808 = vshrl.u32 %v807, 7
      %v809 = vsub.s32 %v806, %v808
      %v810 = vrot.slane %v783, %v809
      %v812 = vunpack.c.l.s4 1983009808
      %v813 = vunpack.c.0.s8 %v812
      %v814 = vlaneseq
      %v815 = vshrl.u32 %v814, 7
      %v816 = vsub.s32 %v813, %v815
      %v817 = vrot.slane %v803, %v816
      %v818 = vcombine.high %v791, %v798
      %v820 = vunpack.c.l.s4 1983009808
      %v821 = vunpack.c.0.s8 %v820
      %v822 = vlaneseq
      %v823 = vshrl.u32 %v822, 7
      %v824 = vsub.s32 %v821, %v823
      %v825 = vrot.slane %v791, %v824
      %v827 = vunpack.c.l.s4 1983009808
      %v828 = vunpack.c.0.s8 %v827
      %v829 = vlaneseq
      %v830 = vshrl.u32 %v829, 7
      %v831 = vsub.s32 %v828, %v830
      %v832 = vrot.slane %v818, %v831
      %v833 = vcombine.low %v810, %v825
      %v834 = vcombine.high %v810, %v825
      %v836 = vunpack.c.l.s4 1934713408
      %v837 = vunpack.c.0.s8 %v836
      %v838 = vlaneseq
      %v839 = vshrl.u32 %v838, 7
      %v840 = vsub.s32 %v837, %v839
      %v841 = vrot.slane %v833, %v840
      %v843 = vunpack.c.l.s4 1934713408
      %v844 = vunpack.c.0.s8 %v843
      %v845 = vlaneseq
      %v846 = vshrl.u32 %v845, 7
      %v847 = vsub.s32 %v844, %v846
      %v848 = vrot.slane %v834, %v847
      %v849 = vcombine.low %v817, %v832
      %v850 = vcombine.high %v817, %v832
      %v852 = vunpack.c.l.s4 1934713408
      %v853 = vunpack.c.0.s8 %v852
      %v854 = vlaneseq
      %v855 = vshrl.u32 %v854, 7
      %v856 = vsub.s32 %v853, %v855
      %v857 = vrot.slane %v849, %v856
      %v859 = vunpack.c.l.s4 1934713408
      %v860 = vunpack.c.0.s8 %v859
      %v861 = vlaneseq
      %v862 = vshrl.u32 %v861, 7
      %v863 = vsub.s32 %v860, %v862
      %v864 = vrot.slane %v850, %v863
      %v865 = vcombine.high %v841, 0
      %v866 = vcombine.high %v848, 0
      %v867 = vcombine.high %v857, 0
      %v868 = vcombine.high %v864, 0
      %v869 = vcombine.high %v787, %v801
      %v871 = vunpack.c.l.s4 1983009808
      %v872 = vunpack.c.0.s8 %v871
      %v873 = vlaneseq
      %v874 = vshrl.u32 %v873, 7
      %v875 = vsub.s32 %v872, %v874
      %v876 = vrot.slane %v787, %v875
      %v878 = vunpack.c.l.s4 1983009808
      %v879 = vunpack.c.0.s8 %v878
      %v880 = vlaneseq
      %v881 = vshrl.u32 %v880, 7
      %v882 = vsub.s32 %v879, %v881
      %v883 = vrot.slane %v869, %v882
      %v884 = vcombine.high %v795, %v801
      %v886 = vunpack.c.l.s4 1983009808
      %v887 = vunpack.c.0.s8 %v886
      %v888 = vlaneseq
      %v889 = vshrl.u32 %v888, 7
      %v890 = vsub.s32 %v887, %v889
      %v891 = vrot.slane %v795, %v890
      %v893 = vunpack.c.l.s4 1983009808
      %v894 = vunpack.c.0.s8 %v893
      %v895 = vlaneseq
      %v896 = vshrl.u32 %v895, 7
      %v897 = vsub.s32 %v894, %v896
      %v898 = vrot.slane %v884, %v897
      %v899 = vcombine.low %v876, %v891
      %v900 = vcombine.high %v876, %v891
      %v902 = vunpack.c.l.s4 1934713408
      %v903 = vunpack.c.0.s8 %v902
      %v904 = vlaneseq
      %v905 = vshrl.u32 %v904, 7
      %v906 = vsub.s32 %v903, %v905
      %v907 = vrot.slane %v899, %v906
      %v909 = vunpack.c.l.s4 1934713408
      %v910 = vunpack.c.0.s8 %v909
      %v911 = vlaneseq
      %v912 = vshrl.u32 %v911, 7
      %v913 = vsub.s32 %v910, %v912
      %v914 = vrot.slane %v900, %v913
      %v915 = vcombine.low %v883, %v898
      %v916 = vcombine.high %v883, %v898
      %v918 = vunpack.c.l.s4 1934713408
      %v919 = vunpack.c.0.s8 %v918
      %v920 = vlaneseq
      %v921 = vshrl.u32 %v920, 7
      %v922 = vsub.s32 %v919, %v921
      %v923 = vrot.slane %v915, %v922
      %v925 = vunpack.c.l.s4 1934713408
      %v926 = vunpack.c.0.s8 %v925
      %v927 = vlaneseq
      %v928 = vshrl.u32 %v927, 7
      %v929 = vsub.s32 %v926, %v928
      %v930 = vrot.slane %v916, %v929
      %v931 = vcombine.high %v907, 0
      %v932 = vcombine.high %v914, 0
      %v933 = vcombine.high %v923, 0
      %v934 = vcombine.high %v930, 0
      %v935 = vcombine.low %v841, %v848
      %v937 = vunpack.c.l.s4 1983009808
      %v938 = vunpack.c.0.s8 %v937
      %v939 = vlaneseq
      %v940 = vshrl.u32 %v939, 7
      %v941 = vsub.s32 %v938, %v940
      %v942 = vrot.slane %v935, %v941
      %v943 = vcombine.low %v865, %v866
      %v945 = vunpack.c.l.s4 1983009808
      %v946 = vunpack.c.0.s8 %v945
      %v947 = vlaneseq
      %v948 = vshrl.u32 %v947, 7
      %v949 = vsub.s32 %v946, %v948
      %v950 = vrot.slane %v943, %v949
      %v951 = vcombine.low %v942, %v950
      %v953 = vunpack.c.l.s4 1934713408
      %v954 = vunpack.c.0.s8 %v953
      %v955 = vlaneseq
      %v956 = vshrl.u32 %v955, 7
      %v957 = vsub.s32 %v954, %v956
      %v958 = vrot.slane %v951, %v957
      %v959 = vcombine.high %v958, 0
      %v960 = vcombine.low %v907, %v914
      %v962 = vunpack.c.l.s4 1983009808
      %v963 = vunpack.c.0.s8 %v962
      %v964 = vlaneseq
      %v965 = vshrl.u32 %v964, 7
      %v966 = vsub.s32 %v963, %v965
      %v967 = vrot.slane %v960, %v966
      %v968 = vcombine.low %v931, %v932
      %v970 = vunpack.c.l.s4 1983009808
      %v971 = vunpack.c.0.s8 %v970
      %v972 = vlaneseq
      %v973 = vshrl.u32 %v972, 7
      %v974 = vsub.s32 %v971, %v973
      %v975 = vrot.slane %v968, %v974
      %v976 = vcombine.low %v967, %v975
      %v978 = vunpack.c.l.s4 1934713408
      %v979 = vunpack.c.0.s8 %v978
      %v980 = vlaneseq
      %v981 = vshrl.u32 %v980, 7
      %v982 = vsub.s32 %v979, %v981
      %v983 = vrot.slane %v976, %v982
      %v984 = vcombine.high %v983, 0
      %v985 = vcombine.low %v857, %v864
      %v987 = vunpack.c.l.s4 1983009808
      %v988 = vunpack.c.0.s8 %v987
      %v989 = vlaneseq
      %v990 = vshrl.u32 %v989, 7
      %v991 = vsub.s32 %v988, %v990
      %v992 = vrot.slane %v985, %v991
      %v993 = vcombine.low %v867, %v868
      %v995 = vunpack.c.l.s4 1983009808
      %v996 = vunpack.c.0.s8 %v995
      %v997 = vlaneseq
      %v998 = vshrl.u32 %v997, 7
      %v999 = vsub.s32 %v996, %v998
      %v1000 = vrot.slane %v993, %v999
      %v1001 = vcombine.low %v992, %v1000
      %v1003 = vunpack.c.l.s4 1934713408
      %v1004 = vunpack.c.0.s8 %v1003
      %v1005 = vlaneseq
      %v1006 = vshrl.u32 %v1005, 7
      %v1007 = vsub.s32 %v1004, %v1006
      %v1008 = vrot.slane %v1001, %v1007
      %v1009 = vcombine.high %v1008, 0
      %v1010 = vcombine.low %v923, %v930
      %v1012 = vunpack.c.l.s4 1983009808
      %v1013 = vunpack.c.0.s8 %v1012
      %v1014 = vlaneseq
      %v1015 = vshrl.u32 %v1014, 7
      %v1016 = vsub.s32 %v1013, %v1015
      %v1017 = vrot.slane %v1010, %v1016
      %v1018 = vcombine.low %v933, %v934
      %v1020 = vunpack.c.l.s4 1983009808
      %v1021 = vunpack.c.0.s8 %v1020
      %v1022 = vlaneseq
      %v1023 = vshrl.u32 %v1022, 7
      %v1024 = vsub.s32 %v1021, %v1023
      %v1025 = vrot.slane %v1018, %v1024
      %v1026 = vcombine.low %v1017, %v1025
      %v1028 = vunpack.c.l.s4 1934713408
      %v1029 = vunpack.c.0.s8 %v1028
      %v1030 = vlaneseq
      %v1031 = vshrl.u32 %v1030, 7
      %v1032 = vsub.s32 %v1029, %v1031
      %v1033 = vrot.slane %v1026, %v1032
      %v1034 = vcombine.high %v1033, 0
      %v1037 = vpack.i.b16 %v983, %v958
      %v1038 = vshrl.u32 %v958, 16
      %v1039 = vshrl.u32 %v983, 16
      %v1040 = vpack.i.b16 %v1039, %v1038
      %v1043 = vpack.i.b16 %v984, %v959
      %v1044 = vshrl.u32 %v959, 16
      %v1045 = vshrl.u32 %v984, 16
      %v1046 = vpack.i.b16 %v1045, %v1044
      %v1049 = vpack.i.b16 %v1033, %v1008
      %v1050 = vshrl.u32 %v1008, 16
      %v1051 = vshrl.u32 %v1033, 16
      %v1052 = vpack.i.b16 %v1051, %v1050
      %v1055 = vpack.i.b16 %v1034, %v1009
      %v1056 = vshrl.u32 %v1009, 16
      %v1057 = vshrl.u32 %v1034, 16
      %v1058 = vpack.i.b16 %v1057, %v1056
      %1059 = vrot.lane.b32.xlu0 %v773, 96
      %v1060 = vpop.permute.xlu0 %1059
      %1061 = vrot.lane.b32.xlu0 %v776, 96
      %v1062 = vpop.permute.xlu0 %1061
      %1063 = vrot.lane.b32.xlu0 %v778, 96
      %v1064 = vpop.permute.xlu0 %1063
      %1065 = vrot.lane.b32.xlu0 %v780, 96
      %v1066 = vpop.permute.xlu0 %1065
      %v1069 = vpack.i.b16 %v1062, %v1060
      %v1071 = vshrl.u32 %v1060, 16
      %v1072 = vshrl.u32 %v1062, 16
      %v1073 = vpack.i.b16 %v1072, %v1071
      %v1077 = vpack.i.b16 %v1066, %v1064
      %v1079 = vshrl.u32 %v1064, 16
      %v1080 = vshrl.u32 %v1066, 16
      %v1081 = vpack.i.b16 %v1080, %v1079
      %v1083 = vcombine.high %v1069, %v798
      %v1085 = vunpack.c.l.s4 1983009808
      %v1086 = vunpack.c.0.s8 %v1085
      %v1087 = vlaneseq
      %v1088 = vshrl.u32 %v1087, 7
      %v1089 = vsub.s32 %v1086, %v1088
      %v1090 = vrot.slane %v1069, %v1089
      %v1092 = vunpack.c.l.s4 1983009808
      %v1093 = vunpack.c.0.s8 %v1092
      %v1094 = vlaneseq
      %v1095 = vshrl.u32 %v1094, 7
      %v1096 = vsub.s32 %v1093, %v1095
      %v1097 = vrot.slane %v1083, %v1096
      %v1098 = vcombine.high %v1077, %v798
      %v1100 = vunpack.c.l.s4 1983009808
      %v1101 = vunpack.c.0.s8 %v1100
      %v1102 = vlaneseq
      %v1103 = vshrl.u32 %v1102, 7
      %v1104 = vsub.s32 %v1101, %v1103
      %v1105 = vrot.slane %v1077, %v1104
      %v1107 = vunpack.c.l.s4 1983009808
      %v1108 = vunpack.c.0.s8 %v1107
      %v1109 = vlaneseq
      %v1110 = vshrl.u32 %v1109, 7
      %v1111 = vsub.s32 %v1108, %v1110
      %v1112 = vrot.slane %v1098, %v1111
      %v1113 = vcombine.low %v1090, %v1105
      %v1114 = vcombine.high %v1090, %v1105
      %v1116 = vunpack.c.l.s4 1934713408
      %v1117 = vunpack.c.0.s8 %v1116
      %v1118 = vlaneseq
      %v1119 = vshrl.u32 %v1118, 7
      %v1120 = vsub.s32 %v1117, %v1119
      %v1121 = vrot.slane %v1113, %v1120
      %v1123 = vunpack.c.l.s4 1934713408
      %v1124 = vunpack.c.0.s8 %v1123
      %v1125 = vlaneseq
      %v1126 = vshrl.u32 %v1125, 7
      %v1127 = vsub.s32 %v1124, %v1126
      %v1128 = vrot.slane %v1114, %v1127
      %v1129 = vcombine.low %v1097, %v1112
      %v1130 = vcombine.high %v1097, %v1112
      %v1132 = vunpack.c.l.s4 1934713408
      %v1133 = vunpack.c.0.s8 %v1132
      %v1134 = vlaneseq
      %v1135 = vshrl.u32 %v1134, 7
      %v1136 = vsub.s32 %v1133, %v1135
      %v1137 = vrot.slane %v1129, %v1136
      %v1139 = vunpack.c.l.s4 1934713408
      %v1140 = vunpack.c.0.s8 %v1139
      %v1141 = vlaneseq
      %v1142 = vshrl.u32 %v1141, 7
      %v1143 = vsub.s32 %v1140, %v1142
      %v1144 = vrot.slane %v1130, %v1143
      %v1145 = vcombine.high %v1121, 0
      %v1146 = vcombine.high %v1128, 0
      %v1147 = vcombine.high %v1137, 0
      %v1148 = vcombine.high %v1144, 0
      %v1149 = vcombine.high %v1073, %v801
      %v1151 = vunpack.c.l.s4 1983009808
      %v1152 = vunpack.c.0.s8 %v1151
      %v1153 = vlaneseq
      %v1154 = vshrl.u32 %v1153, 7
      %v1155 = vsub.s32 %v1152, %v1154
      %v1156 = vrot.slane %v1073, %v1155
      %v1158 = vunpack.c.l.s4 1983009808
      %v1159 = vunpack.c.0.s8 %v1158
      %v1160 = vlaneseq
      %v1161 = vshrl.u32 %v1160, 7
      %v1162 = vsub.s32 %v1159, %v1161
      %v1163 = vrot.slane %v1149, %v1162
      %v1164 = vcombine.high %v1081, %v801
      %v1166 = vunpack.c.l.s4 1983009808
      %v1167 = vunpack.c.0.s8 %v1166
      %v1168 = vlaneseq
      %v1169 = vshrl.u32 %v1168, 7
      %v1170 = vsub.s32 %v1167, %v1169
      %v1171 = vrot.slane %v1081, %v1170
      %v1173 = vunpack.c.l.s4 1983009808
      %v1174 = vunpack.c.0.s8 %v1173
      %v1175 = vlaneseq
      %v1176 = vshrl.u32 %v1175, 7
      %v1177 = vsub.s32 %v1174, %v1176
      %v1178 = vrot.slane %v1164, %v1177
      %v1179 = vcombine.low %v1156, %v1171
      %v1180 = vcombine.high %v1156, %v1171
      %v1182 = vunpack.c.l.s4 1934713408
      %v1183 = vunpack.c.0.s8 %v1182
      %v1184 = vlaneseq
      %v1185 = vshrl.u32 %v1184, 7
      %v1186 = vsub.s32 %v1183, %v1185
      %v1187 = vrot.slane %v1179, %v1186
      %v1189 = vunpack.c.l.s4 1934713408
      %v1190 = vunpack.c.0.s8 %v1189
      %v1191 = vlaneseq
      %v1192 = vshrl.u32 %v1191, 7
      %v1193 = vsub.s32 %v1190, %v1192
      %v1194 = vrot.slane %v1180, %v1193
      %v1195 = vcombine.low %v1163, %v1178
      %v1196 = vcombine.high %v1163, %v1178
      %v1198 = vunpack.c.l.s4 1934713408
      %v1199 = vunpack.c.0.s8 %v1198
      %v1200 = vlaneseq
      %v1201 = vshrl.u32 %v1200, 7
      %v1202 = vsub.s32 %v1199, %v1201
      %v1203 = vrot.slane %v1195, %v1202
      %v1205 = vunpack.c.l.s4 1934713408
      %v1206 = vunpack.c.0.s8 %v1205
      %v1207 = vlaneseq
      %v1208 = vshrl.u32 %v1207, 7
      %v1209 = vsub.s32 %v1206, %v1208
      %v1210 = vrot.slane %v1196, %v1209
      %v1211 = vcombine.high %v1187, 0
      %v1212 = vcombine.high %v1194, 0
      %v1213 = vcombine.high %v1203, 0
      %v1214 = vcombine.high %v1210, 0
      %v1215 = vcombine.low %v1121, %v1128
      %v1217 = vunpack.c.l.s4 1983009808
      %v1218 = vunpack.c.0.s8 %v1217
      %v1219 = vlaneseq
      %v1220 = vshrl.u32 %v1219, 7
      %v1221 = vsub.s32 %v1218, %v1220
      %v1222 = vrot.slane %v1215, %v1221
      %v1223 = vcombine.low %v1145, %v1146
      %v1225 = vunpack.c.l.s4 1983009808
      %v1226 = vunpack.c.0.s8 %v1225
      %v1227 = vlaneseq
      %v1228 = vshrl.u32 %v1227, 7
      %v1229 = vsub.s32 %v1226, %v1228
      %v1230 = vrot.slane %v1223, %v1229
      %v1231 = vcombine.low %v1222, %v1230
      %v1233 = vunpack.c.l.s4 1934713408
      %v1234 = vunpack.c.0.s8 %v1233
      %v1235 = vlaneseq
      %v1236 = vshrl.u32 %v1235, 7
      %v1237 = vsub.s32 %v1234, %v1236
      %v1238 = vrot.slane %v1231, %v1237
      %v1239 = vcombine.high %v1238, 0
      %v1240 = vcombine.low %v1187, %v1194
      %v1242 = vunpack.c.l.s4 1983009808
      %v1243 = vunpack.c.0.s8 %v1242
      %v1244 = vlaneseq
      %v1245 = vshrl.u32 %v1244, 7
      %v1246 = vsub.s32 %v1243, %v1245
      %v1247 = vrot.slane %v1240, %v1246
      %v1248 = vcombine.low %v1211, %v1212
      %v1250 = vunpack.c.l.s4 1983009808
      %v1251 = vunpack.c.0.s8 %v1250
      %v1252 = vlaneseq
      %v1253 = vshrl.u32 %v1252, 7
      %v1254 = vsub.s32 %v1251, %v1253
      %v1255 = vrot.slane %v1248, %v1254
      %v1256 = vcombine.low %v1247, %v1255
      %v1258 = vunpack.c.l.s4 1934713408
      %v1259 = vunpack.c.0.s8 %v1258
      %v1260 = vlaneseq
      %v1261 = vshrl.u32 %v1260, 7
      %v1262 = vsub.s32 %v1259, %v1261
      %v1263 = vrot.slane %v1256, %v1262
      %v1264 = vcombine.high %v1263, 0
      %v1265 = vcombine.low %v1137, %v1144
      %v1267 = vunpack.c.l.s4 1983009808
      %v1268 = vunpack.c.0.s8 %v1267
      %v1269 = vlaneseq
      %v1270 = vshrl.u32 %v1269, 7
      %v1271 = vsub.s32 %v1268, %v1270
      %v1272 = vrot.slane %v1265, %v1271
      %v1273 = vcombine.low %v1147, %v1148
      %v1275 = vunpack.c.l.s4 1983009808
      %v1276 = vunpack.c.0.s8 %v1275
      %v1277 = vlaneseq
      %v1278 = vshrl.u32 %v1277, 7
      %v1279 = vsub.s32 %v1276, %v1278
      %v1280 = vrot.slane %v1273, %v1279
      %v1281 = vcombine.low %v1272, %v1280
      %v1283 = vunpack.c.l.s4 1934713408
      %v1284 = vunpack.c.0.s8 %v1283
      %v1285 = vlaneseq
      %v1286 = vshrl.u32 %v1285, 7
      %v1287 = vsub.s32 %v1284, %v1286
      %v1288 = vrot.slane %v1281, %v1287
      %v1289 = vcombine.high %v1288, 0
      %v1290 = vcombine.low %v1203, %v1210
      %v1292 = vunpack.c.l.s4 1983009808
      %v1293 = vunpack.c.0.s8 %v1292
      %v1294 = vlaneseq
      %v1295 = vshrl.u32 %v1294, 7
      %v1296 = vsub.s32 %v1293, %v1295
      %v1297 = vrot.slane %v1290, %v1296
      %v1298 = vcombine.low %v1213, %v1214
      %v1300 = vunpack.c.l.s4 1983009808
      %v1301 = vunpack.c.0.s8 %v1300
      %v1302 = vlaneseq
      %v1303 = vshrl.u32 %v1302, 7
      %v1304 = vsub.s32 %v1301, %v1303
      %v1305 = vrot.slane %v1298, %v1304
      %v1306 = vcombine.low %v1297, %v1305
      %v1308 = vunpack.c.l.s4 1934713408
      %v1309 = vunpack.c.0.s8 %v1308
      %v1310 = vlaneseq
      %v1311 = vshrl.u32 %v1310, 7
      %v1312 = vsub.s32 %v1309, %v1311
      %v1313 = vrot.slane %v1306, %v1312
      %v1314 = vcombine.high %v1313, 0
      %v1317 = vpack.i.b16 %v1263, %v1238
      %v1318 = vshrl.u32 %v1238, 16
      %v1319 = vshrl.u32 %v1263, 16
      %v1320 = vpack.i.b16 %v1319, %v1318
      %v1323 = vpack.i.b16 %v1264, %v1239
      %v1324 = vshrl.u32 %v1239, 16
      %v1325 = vshrl.u32 %v1264, 16
      %v1326 = vpack.i.b16 %v1325, %v1324
      %v1329 = vpack.i.b16 %v1313, %v1288
      %v1330 = vshrl.u32 %v1288, 16
      %v1331 = vshrl.u32 %v1313, 16
      %v1332 = vpack.i.b16 %v1331, %v1330
      %v1335 = vpack.i.b16 %v1314, %v1289
      %v1336 = vshrl.u32 %v1289, 16
      %v1337 = vshrl.u32 %v1314, 16
      %v1338 = vpack.i.b16 %v1337, %v1336
      %1339 = vrot.lane.b32.xlu0 %v773, 64
      %v1340 = vpop.permute.xlu0 %1339
      %1341 = vrot.lane.b32.xlu0 %v776, 64
      %v1342 = vpop.permute.xlu0 %1341
      %1343 = vrot.lane.b32.xlu0 %v778, 64
      %v1344 = vpop.permute.xlu0 %1343
      %1345 = vrot.lane.b32.xlu0 %v780, 64
      %v1346 = vpop.permute.xlu0 %1345
      %v1349 = vpack.i.b16 %v1342, %v1340
      %v1351 = vshrl.u32 %v1340, 16
      %v1352 = vshrl.u32 %v1342, 16
      %v1353 = vpack.i.b16 %v1352, %v1351
      %v1357 = vpack.i.b16 %v1346, %v1344
      %v1359 = vshrl.u32 %v1344, 16
      %v1360 = vshrl.u32 %v1346, 16
      %v1361 = vpack.i.b16 %v1360, %v1359
      %v1363 = vcombine.high %v1349, %v798
      %v1365 = vunpack.c.l.s4 1983009808
      %v1366 = vunpack.c.0.s8 %v1365
      %v1367 = vlaneseq
      %v1368 = vshrl.u32 %v1367, 7
      %v1369 = vsub.s32 %v1366, %v1368
      %v1370 = vrot.slane %v1349, %v1369
      %v1372 = vunpack.c.l.s4 1983009808
      %v1373 = vunpack.c.0.s8 %v1372
      %v1374 = vlaneseq
      %v1375 = vshrl.u32 %v1374, 7
      %v1376 = vsub.s32 %v1373, %v1375
      %v1377 = vrot.slane %v1363, %v1376
      %v1378 = vcombine.high %v1357, %v798
      %v1380 = vunpack.c.l.s4 1983009808
      %v1381 = vunpack.c.0.s8 %v1380
      %v1382 = vlaneseq
      %v1383 = vshrl.u32 %v1382, 7
      %v1384 = vsub.s32 %v1381, %v1383
      %v1385 = vrot.slane %v1357, %v1384
      %v1387 = vunpack.c.l.s4 1983009808
      %v1388 = vunpack.c.0.s8 %v1387
      %v1389 = vlaneseq
      %v1390 = vshrl.u32 %v1389, 7
      %v1391 = vsub.s32 %v1388, %v1390
      %v1392 = vrot.slane %v1378, %v1391
      %v1393 = vcombine.low %v1370, %v1385
      %v1394 = vcombine.high %v1370, %v1385
      %v1396 = vunpack.c.l.s4 1934713408
      %v1397 = vunpack.c.0.s8 %v1396
      %v1398 = vlaneseq
      %v1399 = vshrl.u32 %v1398, 7
      %v1400 = vsub.s32 %v1397, %v1399
      %v1401 = vrot.slane %v1393, %v1400
      %v1403 = vunpack.c.l.s4 1934713408
      %v1404 = vunpack.c.0.s8 %v1403
      %v1405 = vlaneseq
      %v1406 = vshrl.u32 %v1405, 7
      %v1407 = vsub.s32 %v1404, %v1406
      %v1408 = vrot.slane %v1394, %v1407
      %v1409 = vcombine.low %v1377, %v1392
      %v1410 = vcombine.high %v1377, %v1392
      %v1412 = vunpack.c.l.s4 1934713408
      %v1413 = vunpack.c.0.s8 %v1412
      %v1414 = vlaneseq
      %v1415 = vshrl.u32 %v1414, 7
      %v1416 = vsub.s32 %v1413, %v1415
      %v1417 = vrot.slane %v1409, %v1416
      %v1419 = vunpack.c.l.s4 1934713408
      %v1420 = vunpack.c.0.s8 %v1419
      %v1421 = vlaneseq
      %v1422 = vshrl.u32 %v1421, 7
      %v1423 = vsub.s32 %v1420, %v1422
      %v1424 = vrot.slane %v1410, %v1423
      %v1425 = vcombine.high %v1401, 0
      %v1426 = vcombine.high %v1408, 0
      %v1427 = vcombine.high %v1417, 0
      %v1428 = vcombine.high %v1424, 0
      %v1429 = vcombine.high %v1353, %v801
      %v1431 = vunpack.c.l.s4 1983009808
      %v1432 = vunpack.c.0.s8 %v1431
      %v1433 = vlaneseq
      %v1434 = vshrl.u32 %v1433, 7
      %v1435 = vsub.s32 %v1432, %v1434
      %v1436 = vrot.slane %v1353, %v1435
      %v1438 = vunpack.c.l.s4 1983009808
      %v1439 = vunpack.c.0.s8 %v1438
      %v1440 = vlaneseq
      %v1441 = vshrl.u32 %v1440, 7
      %v1442 = vsub.s32 %v1439, %v1441
      %v1443 = vrot.slane %v1429, %v1442
      %v1444 = vcombine.high %v1361, %v801
      %v1446 = vunpack.c.l.s4 1983009808
      %v1447 = vunpack.c.0.s8 %v1446
      %v1448 = vlaneseq
      %v1449 = vshrl.u32 %v1448, 7
      %v1450 = vsub.s32 %v1447, %v1449
      %v1451 = vrot.slane %v1361, %v1450
      %v1453 = vunpack.c.l.s4 1983009808
      %v1454 = vunpack.c.0.s8 %v1453
      %v1455 = vlaneseq
      %v1456 = vshrl.u32 %v1455, 7
      %v1457 = vsub.s32 %v1454, %v1456
      %v1458 = vrot.slane %v1444, %v1457
      %v1459 = vcombine.low %v1436, %v1451
      %v1460 = vcombine.high %v1436, %v1451
      %v1462 = vunpack.c.l.s4 1934713408
      %v1463 = vunpack.c.0.s8 %v1462
      %v1464 = vlaneseq
      %v1465 = vshrl.u32 %v1464, 7
      %v1466 = vsub.s32 %v1463, %v1465
      %v1467 = vrot.slane %v1459, %v1466
      %v1469 = vunpack.c.l.s4 1934713408
      %v1470 = vunpack.c.0.s8 %v1469
      %v1471 = vlaneseq
      %v1472 = vshrl.u32 %v1471, 7
      %v1473 = vsub.s32 %v1470, %v1472
      %v1474 = vrot.slane %v1460, %v1473
      %v1475 = vcombine.low %v1443, %v1458
      %v1476 = vcombine.high %v1443, %v1458
      %v1478 = vunpack.c.l.s4 1934713408
      %v1479 = vunpack.c.0.s8 %v1478
      %v1480 = vlaneseq
      %v1481 = vshrl.u32 %v1480, 7
      %v1482 = vsub.s32 %v1479, %v1481
      %v1483 = vrot.slane %v1475, %v1482
      %v1485 = vunpack.c.l.s4 1934713408
      %v1486 = vunpack.c.0.s8 %v1485
      %v1487 = vlaneseq
      %v1488 = vshrl.u32 %v1487, 7
      %v1489 = vsub.s32 %v1486, %v1488
      %v1490 = vrot.slane %v1476, %v1489
      %v1491 = vcombine.high %v1467, 0
      %v1492 = vcombine.high %v1474, 0
      %v1493 = vcombine.high %v1483, 0
      %v1494 = vcombine.high %v1490, 0
      %v1495 = vcombine.low %v1401, %v1408
      %v1497 = vunpack.c.l.s4 1983009808
      %v1498 = vunpack.c.0.s8 %v1497
      %v1499 = vlaneseq
      %v1500 = vshrl.u32 %v1499, 7
      %v1501 = vsub.s32 %v1498, %v1500
      %v1502 = vrot.slane %v1495, %v1501
      %v1503 = vcombine.low %v1425, %v1426
      %v1505 = vunpack.c.l.s4 1983009808
      %v1506 = vunpack.c.0.s8 %v1505
      %v1507 = vlaneseq
      %v1508 = vshrl.u32 %v1507, 7
      %v1509 = vsub.s32 %v1506, %v1508
      %v1510 = vrot.slane %v1503, %v1509
      %v1511 = vcombine.low %v1502, %v1510
      %v1513 = vunpack.c.l.s4 1934713408
      %v1514 = vunpack.c.0.s8 %v1513
      %v1515 = vlaneseq
      %v1516 = vshrl.u32 %v1515, 7
      %v1517 = vsub.s32 %v1514, %v1516
      %v1518 = vrot.slane %v1511, %v1517
      %v1519 = vcombine.high %v1518, 0
      %v1520 = vcombine.low %v1467, %v1474
      %v1522 = vunpack.c.l.s4 1983009808
      %v1523 = vunpack.c.0.s8 %v1522
      %v1524 = vlaneseq
      %v1525 = vshrl.u32 %v1524, 7
      %v1526 = vsub.s32 %v1523, %v1525
      %v1527 = vrot.slane %v1520, %v1526
      %v1528 = vcombine.low %v1491, %v1492
      %v1530 = vunpack.c.l.s4 1983009808
      %v1531 = vunpack.c.0.s8 %v1530
      %v1532 = vlaneseq
      %v1533 = vshrl.u32 %v1532, 7
      %v1534 = vsub.s32 %v1531, %v1533
      %v1535 = vrot.slane %v1528, %v1534
      %v1536 = vcombine.low %v1527, %v1535
      %v1538 = vunpack.c.l.s4 1934713408
      %v1539 = vunpack.c.0.s8 %v1538
      %v1540 = vlaneseq
      %v1541 = vshrl.u32 %v1540, 7
      %v1542 = vsub.s32 %v1539, %v1541
      %v1543 = vrot.slane %v1536, %v1542
      %v1544 = vcombine.high %v1543, 0
      %v1545 = vcombine.low %v1417, %v1424
      %v1547 = vunpack.c.l.s4 1983009808
      %v1548 = vunpack.c.0.s8 %v1547
      %v1549 = vlaneseq
      %v1550 = vshrl.u32 %v1549, 7
      %v1551 = vsub.s32 %v1548, %v1550
      %v1552 = vrot.slane %v1545, %v1551
      %v1553 = vcombine.low %v1427, %v1428
      %v1555 = vunpack.c.l.s4 1983009808
      %v1556 = vunpack.c.0.s8 %v1555
      %v1557 = vlaneseq
      %v1558 = vshrl.u32 %v1557, 7
      %v1559 = vsub.s32 %v1556, %v1558
      %v1560 = vrot.slane %v1553, %v1559
      %v1561 = vcombine.low %v1552, %v1560
      %v1563 = vunpack.c.l.s4 1934713408
      %v1564 = vunpack.c.0.s8 %v1563
      %v1565 = vlaneseq
      %v1566 = vshrl.u32 %v1565, 7
      %v1567 = vsub.s32 %v1564, %v1566
      %v1568 = vrot.slane %v1561, %v1567
      %v1569 = vcombine.high %v1568, 0
      %v1570 = vcombine.low %v1483, %v1490
      %v1572 = vunpack.c.l.s4 1983009808
      %v1573 = vunpack.c.0.s8 %v1572
      %v1574 = vlaneseq
      %v1575 = vshrl.u32 %v1574, 7
      %v1576 = vsub.s32 %v1573, %v1575
      %v1577 = vrot.slane %v1570, %v1576
      %v1578 = vcombine.low %v1493, %v1494
      %v1580 = vunpack.c.l.s4 1983009808
      %v1581 = vunpack.c.0.s8 %v1580
      %v1582 = vlaneseq
      %v1583 = vshrl.u32 %v1582, 7
      %v1584 = vsub.s32 %v1581, %v1583
      %v1585 = vrot.slane %v1578, %v1584
      %v1586 = vcombine.low %v1577, %v1585
      %v1588 = vunpack.c.l.s4 1934713408
      %v1589 = vunpack.c.0.s8 %v1588
      %v1590 = vlaneseq
      %v1591 = vshrl.u32 %v1590, 7
      %v1592 = vsub.s32 %v1589, %v1591
      %v1593 = vrot.slane %v1586, %v1592
      %v1594 = vcombine.high %v1593, 0
      %v1597 = vpack.i.b16 %v1543, %v1518
      %v1598 = vshrl.u32 %v1518, 16
      %v1599 = vshrl.u32 %v1543, 16
      %v1600 = vpack.i.b16 %v1599, %v1598
      %v1603 = vpack.i.b16 %v1544, %v1519
      %v1604 = vshrl.u32 %v1519, 16
      %v1605 = vshrl.u32 %v1544, 16
      %v1606 = vpack.i.b16 %v1605, %v1604
      %v1609 = vpack.i.b16 %v1593, %v1568
      %v1610 = vshrl.u32 %v1568, 16
      %v1611 = vshrl.u32 %v1593, 16
      %v1612 = vpack.i.b16 %v1611, %v1610
      %v1615 = vpack.i.b16 %v1594, %v1569
      %v1616 = vshrl.u32 %v1569, 16
      %v1617 = vshrl.u32 %v1594, 16
      %v1618 = vpack.i.b16 %v1617, %v1616
      %vm1619 = vcmask 64512
      %v1621 = vsel %vm1619, %v1037, 0
      %v1624 = vsel %vm1619, %v1317, 0
      %1626 = vmatprep.subr.bf16.mxu0 0
      %1627 = vmatpush1.bf16.xpose.msra.mxu0 %v1624
      %1628 = vmatprep.subr.bf16.mxu0 0
      %1629 = vmatpush1.bf16.xpose.msra.mxu0 0
      %1630 = vmatprep.subr.bf16.mxu0 0
      %1631 = vmatpush1.bf16.xpose.msra.mxu0 0
      %1632 = vmatprep.subr.bf16.mxu0 0
      %1633 = vmatpush1.bf16.xpose.msra.mxu0 0
      %1634 = vmatprep.subr.bf16.mxu0 0
      %1635 = vmatpush1.bf16.xpose.msra.mxu0 0
      %1636 = vmatprep.subr.bf16.mxu0 0
      %1637 = vmatpush1.bf16.xpose.msra.mxu0 0
      %1638 = vmatprep.subr.bf16.mxu0 0
      %1639 = vmatpush1.bf16.xpose.msra.mxu0 0
      %1640 = vmatprep.subr.bf16.mxu0 0
      %1641 = vmatpush1.bf16.xpose.msra.mxu0 0
      %1642 = vmatprep.subr.bf16.mxu0 0
      %1643 = vmatpush1.bf16.xpose.msra.mxu0 0
      %1644 = vmatprep.subr.bf16.mxu0 0
      %1645 = vmatpush1.bf16.xpose.msra.mxu0 0
      %1646 = vmatprep.subr.bf16.mxu0 0
      %1647 = vmatpush1.bf16.xpose.msra.mxu0 0
      %1648 = vmatprep.subr.bf16.mxu0 0
      %1649 = vmatpush1.bf16.xpose.msra.mxu0 0
      %1650 = vmatprep.subr.bf16.mxu0 0
      %1651 = vmatpush1.bf16.xpose.msra.mxu0 0
      %1652 = vmatprep.subr.bf16.mxu0 0
      %1653 = vmatpush1.bf16.xpose.msra.mxu0 0
      %1654 = vmatprep.subr.bf16.mxu0 0
      %1655 = vmatpush1.bf16.xpose.msra.mxu0 0
      %1656 = vmatprep.subr.bf16.mxu0 0
      %1657 = vmatpush1.bf16.xpose.msra.mxu0 0
      %1658 = vmatprep.mubr.bf16.mxu0 0
      %1659 = vmatmul.mubr.bf16.gmra.mrb[0].mxu0 %v1621
      %v1660 = vpop.f32.mrb[0].mxu0
      %v1661 = vadd.f32 0.0, %v1660
      %v1662 = vpop.f32.mrb[0].mxu0
      %v1663 = vpop.f32.mrb[0].mxu0
      %v1664 = vpop.f32.mrb[0].mxu0
      %1665 = vdwg.mxu0
      %v1667 = vsel %vm1619, %v1040, 0
      %v1670 = vsel %vm1619, %v1320, 0
      %1672 = vmatprep.subr.bf16.mxu0 0
      %1673 = vmatpush1.bf16.xpose.msra.mxu0 %v1670
      %1674 = vmatprep.subr.bf16.mxu0 0
      %1675 = vmatpush1.bf16.xpose.msra.mxu0 0
      %1676 = vmatprep.subr.bf16.mxu0 0
      %1677 = vmatpush1.bf16.xpose.msra.mxu0 0
      %1678 = vmatprep.subr.bf16.mxu0 0
      %1679 = vmatpush1.bf16.xpose.msra.mxu0 0
      %1680 = vmatprep.subr.bf16.mxu0 0
      %1681 = vmatpush1.bf16.xpose.msra.mxu0 0
      %1682 = vmatprep.subr.bf16.mxu0 0
      %1683 = vmatpush1.bf16.xpose.msra.mxu0 0
      %1684 = vmatprep.subr.bf16.mxu0 0
      %1685 = vmatpush1.bf16.xpose.msra.mxu0 0
      %1686 = vmatprep.subr.bf16.mxu0 0
      %1687 = vmatpush1.bf16.xpose.msra.mxu0 0
      %1688 = vmatprep.subr.bf16.mxu0 0
      %1689 = vmatpush1.bf16.xpose.msra.mxu0 0
      %1690 = vmatprep.subr.bf16.mxu0 0
      %1691 = vmatpush1.bf16.xpose.msra.mxu0 0
      %1692 = vmatprep.subr.bf16.mxu0 0
      %1693 = vmatpush1.bf16.xpose.msra.mxu0 0
      %1694 = vmatprep.subr.bf16.mxu0 0
      %1695 = vmatpush1.bf16.xpose.msra.mxu0 0
      %1696 = vmatprep.subr.bf16.mxu0 0
      %1697 = vmatpush1.bf16.xpose.msra.mxu0 0
      %1698 = vmatprep.subr.bf16.mxu0 0
      %1699 = vmatpush1.bf16.xpose.msra.mxu0 0
      %1700 = vmatprep.subr.bf16.mxu0 0
      %1701 = vmatpush1.bf16.xpose.msra.mxu0 0
      %1702 = vmatprep.subr.bf16.mxu0 0
      %1703 = vmatpush1.bf16.xpose.msra.mxu0 0
      %1704 = vmatprep.mubr.bf16.mxu0 0
      %1705 = vmatmul.mubr.bf16.gmra.mrb[0].mxu0 %v1667
      %v1706 = vpop.f32.mrb[0].mxu0
      %v1707 = vadd.f32 0.0, %v1706
      %v1708 = vpop.f32.mrb[0].mxu0
      %v1709 = vpop.f32.mrb[0].mxu0
      %v1710 = vpop.f32.mrb[0].mxu0
      %1711 = vdwg.mxu0
      %v1713 = vsel %vm1619, %v1043, 0
      %v1716 = vsel %vm1619, %v1323, 0
      %1718 = vmatprep.subr.bf16.mxu0 0
      %1719 = vmatpush1.bf16.xpose.msra.mxu0 %v1716
      %1720 = vmatprep.subr.bf16.mxu0 0
      %1721 = vmatpush1.bf16.xpose.msra.mxu0 0
      %1722 = vmatprep.subr.bf16.mxu0 0
      %1723 = vmatpush1.bf16.xpose.msra.mxu0 0
      %1724 = vmatprep.subr.bf16.mxu0 0
      %1725 = vmatpush1.bf16.xpose.msra.mxu0 0
      %1726 = vmatprep.subr.bf16.mxu0 0
      %1727 = vmatpush1.bf16.xpose.msra.mxu0 0
      %1728 = vmatprep.subr.bf16.mxu0 0
      %1729 = vmatpush1.bf16.xpose.msra.mxu0 0
      %1730 = vmatprep.subr.bf16.mxu0 0
      %1731 = vmatpush1.bf16.xpose.msra.mxu0 0
      %1732 = vmatprep.subr.bf16.mxu0 0
      %1733 = vmatpush1.bf16.xpose.msra.mxu0 0
      %1734 = vmatprep.subr.bf16.mxu0 0
      %1735 = vmatpush1.bf16.xpose.msra.mxu0 0
      %1736 = vmatprep.subr.bf16.mxu0 0
      %1737 = vmatpush1.bf16.xpose.msra.mxu0 0
      %1738 = vmatprep.subr.bf16.mxu0 0
      %1739 = vmatpush1.bf16.xpose.msra.mxu0 0
      %1740 = vmatprep.subr.bf16.mxu0 0
      %1741 = vmatpush1.bf16.xpose.msra.mxu0 0
      %1742 = vmatprep.subr.bf16.mxu0 0
      %1743 = vmatpush1.bf16.xpose.msra.mxu0 0
      %1744 = vmatprep.subr.bf16.mxu0 0
      %1745 = vmatpush1.bf16.xpose.msra.mxu0 0
      %1746 = vmatprep.subr.bf16.mxu0 0
      %1747 = vmatpush1.bf16.xpose.msra.mxu0 0
      %1748 = vmatprep.subr.bf16.mxu0 0
      %1749 = vmatpush1.bf16.xpose.msra.mxu0 0
      %1750 = vmatprep.mubr.bf16.mxu0 0
      %1751 = vmatmul.mubr.bf16.gmra.mrb[0].mxu0 %v1713
      %v1752 = vpop.f32.mrb[0].mxu0
      %v1753 = vadd.f32 0.0, %v1752
      %v1754 = vpop.f32.mrb[0].mxu0
      %v1755 = vpop.f32.mrb[0].mxu0
      %v1756 = vpop.f32.mrb[0].mxu0
      %1757 = vdwg.mxu0
      %v1759 = vsel %vm1619, %v1046, 0
      %v1762 = vsel %vm1619, %v1326, 0
      %1764 = vmatprep.subr.bf16.mxu0 0
      %1765 = vmatpush1.bf16.xpose.msra.mxu0 %v1762
      %1766 = vmatprep.subr.bf16.mxu0 0
      %1767 = vmatpush1.bf16.xpose.msra.mxu0 0
      %1768 = vmatprep.subr.bf16.mxu0 0
      %1769 = vmatpush1.bf16.xpose.msra.mxu0 0
      %1770 = vmatprep.subr.bf16.mxu0 0
      %1771 = vmatpush1.bf16.xpose.msra.mxu0 0
      %1772 = vmatprep.subr.bf16.mxu0 0
      %1773 = vmatpush1.bf16.xpose.msra.mxu0 0
      %1774 = vmatprep.subr.bf16.mxu0 0
      %1775 = vmatpush1.bf16.xpose.msra.mxu0 0
      %1776 = vmatprep.subr.bf16.mxu0 0
      %1777 = vmatpush1.bf16.xpose.msra.mxu0 0
      %1778 = vmatprep.subr.bf16.mxu0 0
      %1779 = vmatpush1.bf16.xpose.msra.mxu0 0
      %1780 = vmatprep.subr.bf16.mxu0 0
      %1781 = vmatpush1.bf16.xpose.msra.mxu0 0
      %1782 = vmatprep.subr.bf16.mxu0 0
      %1783 = vmatpush1.bf16.xpose.msra.mxu0 0
      %1784 = vmatprep.subr.bf16.mxu0 0
      %1785 = vmatpush1.bf16.xpose.msra.mxu0 0
      %1786 = vmatprep.subr.bf16.mxu0 0
      %1787 = vmatpush1.bf16.xpose.msra.mxu0 0
      %1788 = vmatprep.subr.bf16.mxu0 0
      %1789 = vmatpush1.bf16.xpose.msra.mxu0 0
      %1790 = vmatprep.subr.bf16.mxu0 0
      %1791 = vmatpush1.bf16.xpose.msra.mxu0 0
      %1792 = vmatprep.subr.bf16.mxu0 0
      %1793 = vmatpush1.bf16.xpose.msra.mxu0 0
      %1794 = vmatprep.subr.bf16.mxu0 0
      %1795 = vmatpush1.bf16.xpose.msra.mxu0 0
      %1796 = vmatprep.mubr.bf16.mxu0 0
      %1797 = vmatmul.mubr.bf16.gmra.mrb[0].mxu0 %v1759
      %v1798 = vpop.f32.mrb[0].mxu0
      %v1799 = vadd.f32 0.0, %v1798
      %v1800 = vpop.f32.mrb[0].mxu0
      %v1801 = vpop.f32.mrb[0].mxu0
      %v1802 = vpop.f32.mrb[0].mxu0
      %1803 = vdwg.mxu0
      %v1805 = vsel %vm1619, %v1049, 0
      %v1808 = vsel %vm1619, %v1329, 0
      %1810 = vmatprep.subr.bf16.mxu0 0
      %1811 = vmatpush1.bf16.xpose.msra.mxu0 %v1808
      %1812 = vmatprep.subr.bf16.mxu0 0
      %1813 = vmatpush1.bf16.xpose.msra.mxu0 0
      %1814 = vmatprep.subr.bf16.mxu0 0
      %1815 = vmatpush1.bf16.xpose.msra.mxu0 0
      %1816 = vmatprep.subr.bf16.mxu0 0
      %1817 = vmatpush1.bf16.xpose.msra.mxu0 0
      %1818 = vmatprep.subr.bf16.mxu0 0
      %1819 = vmatpush1.bf16.xpose.msra.mxu0 0
      %1820 = vmatprep.subr.bf16.mxu0 0
      %1821 = vmatpush1.bf16.xpose.msra.mxu0 0
      %1822 = vmatprep.subr.bf16.mxu0 0
      %1823 = vmatpush1.bf16.xpose.msra.mxu0 0
      %1824 = vmatprep.subr.bf16.mxu0 0
      %1825 = vmatpush1.bf16.xpose.msra.mxu0 0
      %1826 = vmatprep.subr.bf16.mxu0 0
      %1827 = vmatpush1.bf16.xpose.msra.mxu0 0
      %1828 = vmatprep.subr.bf16.mxu0 0
      %1829 = vmatpush1.bf16.xpose.msra.mxu0 0
      %1830 = vmatprep.subr.bf16.mxu0 0
      %1831 = vmatpush1.bf16.xpose.msra.mxu0 0
      %1832 = vmatprep.subr.bf16.mxu0 0
      %1833 = vmatpush1.bf16.xpose.msra.mxu0 0
      %1834 = vmatprep.subr.bf16.mxu0 0
      %1835 = vmatpush1.bf16.xpose.msra.mxu0 0
      %1836 = vmatprep.subr.bf16.mxu0 0
      %1837 = vmatpush1.bf16.xpose.msra.mxu0 0
      %1838 = vmatprep.subr.bf16.mxu0 0
      %1839 = vmatpush1.bf16.xpose.msra.mxu0 0
      %1840 = vmatprep.subr.bf16.mxu0 0
      %1841 = vmatpush1.bf16.xpose.msra.mxu0 0
      %1842 = vmatprep.mubr.bf16.mxu0 0
      %1843 = vmatmul.mubr.bf16.gmra.mrb[0].mxu0 %v1805
      %v1844 = vpop.f32.mrb[0].mxu0
      %v1845 = vadd.f32 0.0, %v1844
      %v1846 = vpop.f32.mrb[0].mxu0
      %v1847 = vpop.f32.mrb[0].mxu0
      %v1848 = vpop.f32.mrb[0].mxu0
      %1849 = vdwg.mxu0
      %v1851 = vsel %vm1619, %v1052, 0
      %v1854 = vsel %vm1619, %v1332, 0
      %1856 = vmatprep.subr.bf16.mxu0 0
      %1857 = vmatpush1.bf16.xpose.msra.mxu0 %v1854
      %1858 = vmatprep.subr.bf16.mxu0 0
      %1859 = vmatpush1.bf16.xpose.msra.mxu0 0
      %1860 = vmatprep.subr.bf16.mxu0 0
      %1861 = vmatpush1.bf16.xpose.msra.mxu0 0
      %1862 = vmatprep.subr.bf16.mxu0 0
      %1863 = vmatpush1.bf16.xpose.msra.mxu0 0
      %1864 = vmatprep.subr.bf16.mxu0 0
      %1865 = vmatpush1.bf16.xpose.msra.mxu0 0
      %1866 = vmatprep.subr.bf16.mxu0 0
      %1867 = vmatpush1.bf16.xpose.msra.mxu0 0
      %1868 = vmatprep.subr.bf16.mxu0 0
      %1869 = vmatpush1.bf16.xpose.msra.mxu0 0
      %1870 = vmatprep.subr.bf16.mxu0 0
      %1871 = vmatpush1.bf16.xpose.msra.mxu0 0
      %1872 = vmatprep.subr.bf16.mxu0 0
      %1873 = vmatpush1.bf16.xpose.msra.mxu0 0
      %1874 = vmatprep.subr.bf16.mxu0 0
      %1875 = vmatpush1.bf16.xpose.msra.mxu0 0
      %1876 = vmatprep.subr.bf16.mxu0 0
      %1877 = vmatpush1.bf16.xpose.msra.mxu0 0
      %1878 = vmatprep.subr.bf16.mxu0 0
      %1879 = vmatpush1.bf16.xpose.msra.mxu0 0
      %1880 = vmatprep.subr.bf16.mxu0 0
      %1881 = vmatpush1.bf16.xpose.msra.mxu0 0
      %1882 = vmatprep.subr.bf16.mxu0 0
      %1883 = vmatpush1.bf16.xpose.msra.mxu0 0
      %1884 = vmatprep.subr.bf16.mxu0 0
      %1885 = vmatpush1.bf16.xpose.msra.mxu0 0
      %1886 = vmatprep.subr.bf16.mxu0 0
      %1887 = vmatpush1.bf16.xpose.msra.mxu0 0
      %1888 = vmatprep.mubr.bf16.mxu0 0
      %1889 = vmatmul.mubr.bf16.gmra.mrb[0].mxu0 %v1851
      %v1890 = vpop.f32.mrb[0].mxu0
      %v1891 = vadd.f32 0.0, %v1890
      %v1892 = vpop.f32.mrb[0].mxu0
      %v1893 = vpop.f32.mrb[0].mxu0
      %v1894 = vpop.f32.mrb[0].mxu0
      %1895 = vdwg.mxu0
      %v1897 = vsel %vm1619, %v1055, 0
      %v1900 = vsel %vm1619, %v1335, 0
      %1902 = vmatprep.subr.bf16.mxu0 0
      %1903 = vmatpush1.bf16.xpose.msra.mxu0 %v1900
      %1904 = vmatprep.subr.bf16.mxu0 0
      %1905 = vmatpush1.bf16.xpose.msra.mxu0 0
      %1906 = vmatprep.subr.bf16.mxu0 0
      %1907 = vmatpush1.bf16.xpose.msra.mxu0 0
      %1908 = vmatprep.subr.bf16.mxu0 0
      %1909 = vmatpush1.bf16.xpose.msra.mxu0 0
      %1910 = vmatprep.subr.bf16.mxu0 0
      %1911 = vmatpush1.bf16.xpose.msra.mxu0 0
      %1912 = vmatprep.subr.bf16.mxu0 0
      %1913 = vmatpush1.bf16.xpose.msra.mxu0 0
      %1914 = vmatprep.subr.bf16.mxu0 0
      %1915 = vmatpush1.bf16.xpose.msra.mxu0 0
      %1916 = vmatprep.subr.bf16.mxu0 0
      %1917 = vmatpush1.bf16.xpose.msra.mxu0 0
      %1918 = vmatprep.subr.bf16.mxu0 0
      %1919 = vmatpush1.bf16.xpose.msra.mxu0 0
      %1920 = vmatprep.subr.bf16.mxu0 0
      %1921 = vmatpush1.bf16.xpose.msra.mxu0 0
      %1922 = vmatprep.subr.bf16.mxu0 0
      %1923 = vmatpush1.bf16.xpose.msra.mxu0 0
      %1924 = vmatprep.subr.bf16.mxu0 0
      %1925 = vmatpush1.bf16.xpose.msra.mxu0 0
      %1926 = vmatprep.subr.bf16.mxu0 0
      %1927 = vmatpush1.bf16.xpose.msra.mxu0 0
      %1928 = vmatprep.subr.bf16.mxu0 0
      %1929 = vmatpush1.bf16.xpose.msra.mxu0 0
      %1930 = vmatprep.subr.bf16.mxu0 0
      %1931 = vmatpush1.bf16.xpose.msra.mxu0 0
      %1932 = vmatprep.subr.bf16.mxu0 0
      %1933 = vmatpush1.bf16.xpose.msra.mxu0 0
      %1934 = vmatprep.mubr.bf16.mxu0 0
      %1935 = vmatmul.mubr.bf16.gmra.mrb[0].mxu0 %v1897
      %v1936 = vpop.f32.mrb[0].mxu0
      %v1937 = vadd.f32 0.0, %v1936
      %v1938 = vpop.f32.mrb[0].mxu0
      %v1939 = vpop.f32.mrb[0].mxu0
      %v1940 = vpop.f32.mrb[0].mxu0
      %1941 = vdwg.mxu0
      %v1943 = vsel %vm1619, %v1058, 0
      %v1946 = vsel %vm1619, %v1338, 0
      %1948 = vmatprep.subr.bf16.mxu0 0
      %1949 = vmatpush1.bf16.xpose.msra.mxu0 %v1946
      %1950 = vmatprep.subr.bf16.mxu0 0
      %1951 = vmatpush1.bf16.xpose.msra.mxu0 0
      %1952 = vmatprep.subr.bf16.mxu0 0
      %1953 = vmatpush1.bf16.xpose.msra.mxu0 0
      %1954 = vmatprep.subr.bf16.mxu0 0
      %1955 = vmatpush1.bf16.xpose.msra.mxu0 0
      %1956 = vmatprep.subr.bf16.mxu0 0
      %1957 = vmatpush1.bf16.xpose.msra.mxu0 0
      %1958 = vmatprep.subr.bf16.mxu0 0
      %1959 = vmatpush1.bf16.xpose.msra.mxu0 0
      %1960 = vmatprep.subr.bf16.mxu0 0
      %1961 = vmatpush1.bf16.xpose.msra.mxu0 0
      %1962 = vmatprep.subr.bf16.mxu0 0
      %1963 = vmatpush1.bf16.xpose.msra.mxu0 0
      %1964 = vmatprep.subr.bf16.mxu0 0
      %1965 = vmatpush1.bf16.xpose.msra.mxu0 0
      %1966 = vmatprep.subr.bf16.mxu0 0
      %1967 = vmatpush1.bf16.xpose.msra.mxu0 0
      %1968 = vmatprep.subr.bf16.mxu0 0
      %1969 = vmatpush1.bf16.xpose.msra.mxu0 0
      %1970 = vmatprep.subr.bf16.mxu0 0
      %1971 = vmatpush1.bf16.xpose.msra.mxu0 0
      %1972 = vmatprep.subr.bf16.mxu0 0
      %1973 = vmatpush1.bf16.xpose.msra.mxu0 0
      %1974 = vmatprep.subr.bf16.mxu0 0
      %1975 = vmatpush1.bf16.xpose.msra.mxu0 0
      %1976 = vmatprep.subr.bf16.mxu0 0
      %1977 = vmatpush1.bf16.xpose.msra.mxu0 0
      %1978 = vmatprep.subr.bf16.mxu0 0
      %1979 = vmatpush1.bf16.xpose.msra.mxu0 0
      %1980 = vmatprep.mubr.bf16.mxu0 0
      %1981 = vmatmul.mubr.bf16.gmra.mrb[0].mxu0 %v1943
      %v1982 = vpop.f32.mrb[0].mxu0
      %v1983 = vadd.f32 0.0, %v1982
      %v1984 = vpop.f32.mrb[0].mxu0
      %v1985 = vpop.f32.mrb[0].mxu0
      %v1986 = vpop.f32.mrb[0].mxu0
      %1987 = vdwg.mxu0
      %v1988 = vmul.f32 %v1661, 0.35355338
      %v1989 = vmul.f32 %v1707, 0.35355338
      %v1990 = vmul.f32 %v1753, 0.35355338
      %v1991 = vmul.f32 %v1799, 0.35355338
      %v1992 = vmul.f32 %v1845, 0.35355338
      %v1993 = vmul.f32 %v1891, 0.35355338
      %v1994 = vmul.f32 %v1937, 0.35355338
      %v1995 = vmul.f32 %v1983, 0.35355338
      %v1996 = vlaneseq
      %v1997 = vshrl.u32 %v1996, 7
      %v1998 = vlaneseq
      %v1999 = vand.u32 %v1998, 127
      %vm2000 = vcmp.ge.s32.totalorder %v1997, %v1999
      %v2001 = vsel %vm2000, 1, 0
      %vm2002 = vcmp.eq.s32.totalorder %v2001, 1
      %v2003 = vsel %vm2002, %v1988, -1e+30
      %v2004 = vsel %vm2002, %v1989, -1e+30
      %v2005 = vsel %vm2002, %v1990, -1e+30
      %v2006 = vsel %vm2002, %v1991, -1e+30
      %v2007 = vsel %vm2002, %v1992, -1e+30
      %v2008 = vsel %vm2002, %v1993, -1e+30
      %v2009 = vsel %vm2002, %v1994, -1e+30
      %v2010 = vsel %vm2002, %v1995, -1e+30
      %v2011 = vsel %vm1619, %v2003, -inf
      %2012 = vmax.xlane.f32.xlu0 %v2011
      %v2013 = vpop.xlane.xlu0 %2012
      %v2014 = vsel %vm1619, %v2004, -inf
      %2015 = vmax.xlane.f32.xlu0 %v2014
      %v2016 = vpop.xlane.xlu0 %2015
      %v2017 = vsel %vm1619, %v2005, -inf
      %2018 = vmax.xlane.f32.xlu0 %v2017
      %v2019 = vpop.xlane.xlu0 %2018
      %v2020 = vsel %vm1619, %v2006, -inf
      %2021 = vmax.xlane.f32.xlu0 %v2020
      %v2022 = vpop.xlane.xlu0 %2021
      %v2023 = vsel %vm1619, %v2007, -inf
      %2024 = vmax.xlane.f32.xlu0 %v2023
      %v2025 = vpop.xlane.xlu0 %2024
      %v2026 = vsel %vm1619, %v2008, -inf
      %2027 = vmax.xlane.f32.xlu0 %v2026
      %v2028 = vpop.xlane.xlu0 %2027
      %v2029 = vsel %vm1619, %v2009, -inf
      %2030 = vmax.xlane.f32.xlu0 %v2029
      %v2031 = vpop.xlane.xlu0 %2030
      %v2032 = vsel %vm1619, %v2010, -inf
      %2033 = vmax.xlane.f32.xlu0 %v2032
      %v2034 = vpop.xlane.xlu0 %2033
      %v2035 = vsub.f32 %v2003, %v2013
      %v2036 = vsub.f32 %v2004, %v2016
      %v2037 = vsub.f32 %v2005, %v2019
      %v2038 = vsub.f32 %v2006, %v2022
      %v2039 = vsub.f32 %v2007, %v2025
      %v2040 = vsub.f32 %v2008, %v2028
      %v2041 = vsub.f32 %v2009, %v2031
      %v2042 = vsub.f32 %v2010, %v2034
      %v2043 = vmul.f32 %v2035, 1.442695
      %v2044 = vpow.pop %v2043
      %v2045 = vmul.f32 %v2036, 1.442695
      %v2046 = vpow.pop %v2045
      %v2047 = vmul.f32 %v2037, 1.442695
      %v2048 = vpow.pop %v2047
      %v2049 = vmul.f32 %v2038, 1.442695
      %v2050 = vpow.pop %v2049
      %v2051 = vmul.f32 %v2039, 1.442695
      %v2052 = vpow.pop %v2051
      %v2053 = vmul.f32 %v2040, 1.442695
      %v2054 = vpow.pop %v2053
      %v2055 = vmul.f32 %v2041, 1.442695
      %v2056 = vpow.pop %v2055
      %v2057 = vmul.f32 %v2042, 1.442695
      %v2058 = vpow.pop %v2057
      %v2059 = vsel %vm1619, %v2044, 0.0
      %2060 = vadd.xlane.f32.xlu0 %v2059
      %v2061 = vpop.xlane.xlu0 %2060
      %v2062 = vsel %vm1619, %v2046, 0.0
      %2063 = vadd.xlane.f32.xlu0 %v2062
      %v2064 = vpop.xlane.xlu0 %2063
      %v2065 = vsel %vm1619, %v2048, 0.0
      %2066 = vadd.xlane.f32.xlu0 %v2065
      %v2067 = vpop.xlane.xlu0 %2066
      %v2068 = vsel %vm1619, %v2050, 0.0
      %2069 = vadd.xlane.f32.xlu0 %v2068
      %v2070 = vpop.xlane.xlu0 %2069
      %v2071 = vsel %vm1619, %v2052, 0.0
      %2072 = vadd.xlane.f32.xlu0 %v2071
      %v2073 = vpop.xlane.xlu0 %2072
      %v2074 = vsel %vm1619, %v2054, 0.0
      %2075 = vadd.xlane.f32.xlu0 %v2074
      %v2076 = vpop.xlane.xlu0 %2075
      %v2077 = vsel %vm1619, %v2056, 0.0
      %2078 = vadd.xlane.f32.xlu0 %v2077
      %v2079 = vpop.xlane.xlu0 %2078
      %v2080 = vsel %vm1619, %v2058, 0.0
      %2081 = vadd.xlane.f32.xlu0 %v2080
      %v2082 = vpop.xlane.xlu0 %2081
      %v2083 = vrcp.pop %v2061
      %v2084 = vrcp.pop %v2064
      %v2085 = vrcp.pop %v2067
      %v2086 = vrcp.pop %v2070
      %v2087 = vrcp.pop %v2073
      %v2088 = vrcp.pop %v2076
      %v2089 = vrcp.pop %v2079
      %v2090 = vrcp.pop %v2082
      %v2091 = vmul.f32 %v2044, %v2083
      %v2092 = vmul.f32 %v2046, %v2084
      %v2093 = vmul.f32 %v2048, %v2085
      %v2094 = vmul.f32 %v2050, %v2086
      %v2095 = vmul.f32 %v2052, %v2087
      %v2096 = vmul.f32 %v2054, %v2088
      %v2097 = vmul.f32 %v2056, %v2089
      %v2098 = vmul.f32 %v2058, %v2090
      %v2099 = vpack.c.bf16 %v2091, %v2091
      %v2100 = vpack.c.bf16 %v2092, %v2092
      %v2101 = vpack.c.bf16 %v2093, %v2093
      %v2102 = vpack.c.bf16 %v2094, %v2094
      %v2103 = vpack.c.bf16 %v2095, %v2095
      %v2104 = vpack.c.bf16 %v2096, %v2096
      %v2105 = vpack.c.bf16 %v2097, %v2097
      %v2106 = vpack.c.bf16 %v2098, %v2098
      %v2108 = vsel %vm1619, %v2099, 0
      %vm2110 = vcmask 1043456
      %v2112 = vsel %vm2110, %v1597, 0
      %2114 = vmatprep.subr.bf16.mxu0 0
      %2115 = vmatpush1.bf16.msra.mxu0 %v2112
      %2116 = vmatprep.subr.bf16.mxu0 0
      %2117 = vmatpush1.bf16.msra.mxu0 0
      %2118 = vmatprep.subr.bf16.mxu0 0
      %2119 = vmatpush1.bf16.msra.mxu0 0
      %2120 = vmatprep.subr.bf16.mxu0 0
      %2121 = vmatpush1.bf16.msra.mxu0 0
      %2122 = vmatprep.subr.bf16.mxu0 0
      %2123 = vmatpush1.bf16.msra.mxu0 0
      %2124 = vmatprep.subr.bf16.mxu0 0
      %2125 = vmatpush1.bf16.msra.mxu0 0
      %2126 = vmatprep.subr.bf16.mxu0 0
      %2127 = vmatpush1.bf16.msra.mxu0 0
      %2128 = vmatprep.subr.bf16.mxu0 0
      %2129 = vmatpush1.bf16.msra.mxu0 0
      %2130 = vmatprep.subr.bf16.mxu0 0
      %2131 = vmatpush1.bf16.msra.mxu0 0
      %2132 = vmatprep.subr.bf16.mxu0 0
      %2133 = vmatpush1.bf16.msra.mxu0 0
      %2134 = vmatprep.subr.bf16.mxu0 0
      %2135 = vmatpush1.bf16.msra.mxu0 0
      %2136 = vmatprep.subr.bf16.mxu0 0
      %2137 = vmatpush1.bf16.msra.mxu0 0
      %2138 = vmatprep.subr.bf16.mxu0 0
      %2139 = vmatpush1.bf16.msra.mxu0 0
      %2140 = vmatprep.subr.bf16.mxu0 0
      %2141 = vmatpush1.bf16.msra.mxu0 0
      %2142 = vmatprep.subr.bf16.mxu0 0
      %2143 = vmatpush1.bf16.msra.mxu0 0
      %2144 = vmatprep.subr.bf16.mxu0 0
      %2145 = vmatpush1.bf16.msra.mxu0 0
      %2146 = vmatprep.mubr.bf16.mxu0 0
      %2147 = vmatmul.mubr.bf16.gmra.mrb[0].mxu0 %v2108
      %v2148 = vpop.f32.mrb[0].mxu0
      %v2149 = vadd.f32 0.0, %v2148
      %v2150 = vpop.f32.mrb[0].mxu0
      %v2151 = vpop.f32.mrb[0].mxu0
      %v2152 = vpop.f32.mrb[0].mxu0
      %2153 = vdwg.mxu0
      %v2155 = vsel %vm1619, %v2100, 0
      %v2158 = vsel %vm2110, %v1600, 0
      %2160 = vmatprep.subr.bf16.mxu0 0
      %2161 = vmatpush1.bf16.msra.mxu0 %v2158
      %2162 = vmatprep.subr.bf16.mxu0 0
      %2163 = vmatpush1.bf16.msra.mxu0 0
      %2164 = vmatprep.subr.bf16.mxu0 0
      %2165 = vmatpush1.bf16.msra.mxu0 0
      %2166 = vmatprep.subr.bf16.mxu0 0
      %2167 = vmatpush1.bf16.msra.mxu0 0
      %2168 = vmatprep.subr.bf16.mxu0 0
      %2169 = vmatpush1.bf16.msra.mxu0 0
      %2170 = vmatprep.subr.bf16.mxu0 0
      %2171 = vmatpush1.bf16.msra.mxu0 0
      %2172 = vmatprep.subr.bf16.mxu0 0
      %2173 = vmatpush1.bf16.msra.mxu0 0
      %2174 = vmatprep.subr.bf16.mxu0 0
      %2175 = vmatpush1.bf16.msra.mxu0 0
      %2176 = vmatprep.subr.bf16.mxu0 0
      %2177 = vmatpush1.bf16.msra.mxu0 0
      %2178 = vmatprep.subr.bf16.mxu0 0
      %2179 = vmatpush1.bf16.msra.mxu0 0
      %2180 = vmatprep.subr.bf16.mxu0 0
      %2181 = vmatpush1.bf16.msra.mxu0 0
      %2182 = vmatprep.subr.bf16.mxu0 0
      %2183 = vmatpush1.bf16.msra.mxu0 0
      %2184 = vmatprep.subr.bf16.mxu0 0
      %2185 = vmatpush1.bf16.msra.mxu0 0
      %2186 = vmatprep.subr.bf16.mxu0 0
      %2187 = vmatpush1.bf16.msra.mxu0 0
      %2188 = vmatprep.subr.bf16.mxu0 0
      %2189 = vmatpush1.bf16.msra.mxu0 0
      %2190 = vmatprep.subr.bf16.mxu0 0
      %2191 = vmatpush1.bf16.msra.mxu0 0
      %2192 = vmatprep.mubr.bf16.mxu0 0
      %2193 = vmatmul.mubr.bf16.gmra.mrb[0].mxu0 %v2155
      %v2194 = vpop.f32.mrb[0].mxu0
      %v2195 = vadd.f32 0.0, %v2194
      %v2196 = vpop.f32.mrb[0].mxu0
      %v2197 = vpop.f32.mrb[0].mxu0
      %v2198 = vpop.f32.mrb[0].mxu0
      %2199 = vdwg.mxu0
      %v2201 = vsel %vm1619, %v2101, 0
      %v2204 = vsel %vm2110, %v1603, 0
      %2206 = vmatprep.subr.bf16.mxu0 0
      %2207 = vmatpush1.bf16.msra.mxu0 %v2204
      %2208 = vmatprep.subr.bf16.mxu0 0
      %2209 = vmatpush1.bf16.msra.mxu0 0
      %2210 = vmatprep.subr.bf16.mxu0 0
      %2211 = vmatpush1.bf16.msra.mxu0 0
      %2212 = vmatprep.subr.bf16.mxu0 0
      %2213 = vmatpush1.bf16.msra.mxu0 0
      %2214 = vmatprep.subr.bf16.mxu0 0
      %2215 = vmatpush1.bf16.msra.mxu0 0
      %2216 = vmatprep.subr.bf16.mxu0 0
      %2217 = vmatpush1.bf16.msra.mxu0 0
      %2218 = vmatprep.subr.bf16.mxu0 0
      %2219 = vmatpush1.bf16.msra.mxu0 0
      %2220 = vmatprep.subr.bf16.mxu0 0
      %2221 = vmatpush1.bf16.msra.mxu0 0
      %2222 = vmatprep.subr.bf16.mxu0 0
      %2223 = vmatpush1.bf16.msra.mxu0 0
      %2224 = vmatprep.subr.bf16.mxu0 0
      %2225 = vmatpush1.bf16.msra.mxu0 0
      %2226 = vmatprep.subr.bf16.mxu0 0
      %2227 = vmatpush1.bf16.msra.mxu0 0
      %2228 = vmatprep.subr.bf16.mxu0 0
      %2229 = vmatpush1.bf16.msra.mxu0 0
      %2230 = vmatprep.subr.bf16.mxu0 0
      %2231 = vmatpush1.bf16.msra.mxu0 0
      %2232 = vmatprep.subr.bf16.mxu0 0
      %2233 = vmatpush1.bf16.msra.mxu0 0
      %2234 = vmatprep.subr.bf16.mxu0 0
      %2235 = vmatpush1.bf16.msra.mxu0 0
      %2236 = vmatprep.subr.bf16.mxu0 0
      %2237 = vmatpush1.bf16.msra.mxu0 0
      %2238 = vmatprep.mubr.bf16.mxu0 0
      %2239 = vmatmul.mubr.bf16.gmra.mrb[0].mxu0 %v2201
      %v2240 = vpop.f32.mrb[0].mxu0
      %v2241 = vadd.f32 0.0, %v2240
      %v2242 = vpop.f32.mrb[0].mxu0
      %v2243 = vpop.f32.mrb[0].mxu0
      %v2244 = vpop.f32.mrb[0].mxu0
      %2245 = vdwg.mxu0
      %v2247 = vsel %vm1619, %v2102, 0
      %v2250 = vsel %vm2110, %v1606, 0
      %2252 = vmatprep.subr.bf16.mxu0 0
      %2253 = vmatpush1.bf16.msra.mxu0 %v2250
      %2254 = vmatprep.subr.bf16.mxu0 0
      %2255 = vmatpush1.bf16.msra.mxu0 0
      %2256 = vmatprep.subr.bf16.mxu0 0
      %2257 = vmatpush1.bf16.msra.mxu0 0
      %2258 = vmatprep.subr.bf16.mxu0 0
      %2259 = vmatpush1.bf16.msra.mxu0 0
      %2260 = vmatprep.subr.bf16.mxu0 0
      %2261 = vmatpush1.bf16.msra.mxu0 0
      %2262 = vmatprep.subr.bf16.mxu0 0
      %2263 = vmatpush1.bf16.msra.mxu0 0
      %2264 = vmatprep.subr.bf16.mxu0 0
      %2265 = vmatpush1.bf16.msra.mxu0 0
      %2266 = vmatprep.subr.bf16.mxu0 0
      %2267 = vmatpush1.bf16.msra.mxu0 0
      %2268 = vmatprep.subr.bf16.mxu0 0
      %2269 = vmatpush1.bf16.msra.mxu0 0
      %2270 = vmatprep.subr.bf16.mxu0 0
      %2271 = vmatpush1.bf16.msra.mxu0 0
      %2272 = vmatprep.subr.bf16.mxu0 0
      %2273 = vmatpush1.bf16.msra.mxu0 0
      %2274 = vmatprep.subr.bf16.mxu0 0
      %2275 = vmatpush1.bf16.msra.mxu0 0
      %2276 = vmatprep.subr.bf16.mxu0 0
      %2277 = vmatpush1.bf16.msra.mxu0 0
      %2278 = vmatprep.subr.bf16.mxu0 0
      %2279 = vmatpush1.bf16.msra.mxu0 0
      %2280 = vmatprep.subr.bf16.mxu0 0
      %2281 = vmatpush1.bf16.msra.mxu0 0
      %2282 = vmatprep.subr.bf16.mxu0 0
      %2283 = vmatpush1.bf16.msra.mxu0 0
      %2284 = vmatprep.mubr.bf16.mxu0 0
      %2285 = vmatmul.mubr.bf16.gmra.mrb[0].mxu0 %v2247
      %v2286 = vpop.f32.mrb[0].mxu0
      %v2287 = vadd.f32 0.0, %v2286
      %v2288 = vpop.f32.mrb[0].mxu0
      %v2289 = vpop.f32.mrb[0].mxu0
      %v2290 = vpop.f32.mrb[0].mxu0
      %2291 = vdwg.mxu0
      %v2293 = vsel %vm1619, %v2103, 0
      %v2296 = vsel %vm2110, %v1609, 0
      %2298 = vmatprep.subr.bf16.mxu0 0
      %2299 = vmatpush1.bf16.msra.mxu0 %v2296
      %2300 = vmatprep.subr.bf16.mxu0 0
      %2301 = vmatpush1.bf16.msra.mxu0 0
      %2302 = vmatprep.subr.bf16.mxu0 0
      %2303 = vmatpush1.bf16.msra.mxu0 0
      %2304 = vmatprep.subr.bf16.mxu0 0
      %2305 = vmatpush1.bf16.msra.mxu0 0
      %2306 = vmatprep.subr.bf16.mxu0 0
      %2307 = vmatpush1.bf16.msra.mxu0 0
      %2308 = vmatprep.subr.bf16.mxu0 0
      %2309 = vmatpush1.bf16.msra.mxu0 0
      %2310 = vmatprep.subr.bf16.mxu0 0
      %2311 = vmatpush1.bf16.msra.mxu0 0
      %2312 = vmatprep.subr.bf16.mxu0 0
      %2313 = vmatpush1.bf16.msra.mxu0 0
      %2314 = vmatprep.subr.bf16.mxu0 0
      %2315 = vmatpush1.bf16.msra.mxu0 0
      %2316 = vmatprep.subr.bf16.mxu0 0
      %2317 = vmatpush1.bf16.msra.mxu0 0
      %2318 = vmatprep.subr.bf16.mxu0 0
      %2319 = vmatpush1.bf16.msra.mxu0 0
      %2320 = vmatprep.subr.bf16.mxu0 0
      %2321 = vmatpush1.bf16.msra.mxu0 0
      %2322 = vmatprep.subr.bf16.mxu0 0
      %2323 = vmatpush1.bf16.msra.mxu0 0
      %2324 = vmatprep.subr.bf16.mxu0 0
      %2325 = vmatpush1.bf16.msra.mxu0 0
      %2326 = vmatprep.subr.bf16.mxu0 0
      %2327 = vmatpush1.bf16.msra.mxu0 0
      %2328 = vmatprep.subr.bf16.mxu0 0
      %2329 = vmatpush1.bf16.msra.mxu0 0
      %2330 = vmatprep.mubr.bf16.mxu0 0
      %2331 = vmatmul.mubr.bf16.gmra.mrb[0].mxu0 %v2293
      %v2332 = vpop.f32.mrb[0].mxu0
      %v2333 = vadd.f32 0.0, %v2332
      %v2334 = vpop.f32.mrb[0].mxu0
      %v2335 = vpop.f32.mrb[0].mxu0
      %v2336 = vpop.f32.mrb[0].mxu0
      %2337 = vdwg.mxu0
      %v2339 = vsel %vm1619, %v2104, 0
      %v2342 = vsel %vm2110, %v1612, 0
      %2344 = vmatprep.subr.bf16.mxu0 0
      %2345 = vmatpush1.bf16.msra.mxu0 %v2342
      %2346 = vmatprep.subr.bf16.mxu0 0
      %2347 = vmatpush1.bf16.msra.mxu0 0
      %2348 = vmatprep.subr.bf16.mxu0 0
      %2349 = vmatpush1.bf16.msra.mxu0 0
      %2350 = vmatprep.subr.bf16.mxu0 0
      %2351 = vmatpush1.bf16.msra.mxu0 0
      %2352 = vmatprep.subr.bf16.mxu0 0
      %2353 = vmatpush1.bf16.msra.mxu0 0
      %2354 = vmatprep.subr.bf16.mxu0 0
      %2355 = vmatpush1.bf16.msra.mxu0 0
      %2356 = vmatprep.subr.bf16.mxu0 0
      %2357 = vmatpush1.bf16.msra.mxu0 0
      %2358 = vmatprep.subr.bf16.mxu0 0
      %2359 = vmatpush1.bf16.msra.mxu0 0
      %2360 = vmatprep.subr.bf16.mxu0 0
      %2361 = vmatpush1.bf16.msra.mxu0 0
      %2362 = vmatprep.subr.bf16.mxu0 0
      %2363 = vmatpush1.bf16.msra.mxu0 0
      %2364 = vmatprep.subr.bf16.mxu0 0
      %2365 = vmatpush1.bf16.msra.mxu0 0
      %2366 = vmatprep.subr.bf16.mxu0 0
      %2367 = vmatpush1.bf16.msra.mxu0 0
      %2368 = vmatprep.subr.bf16.mxu0 0
      %2369 = vmatpush1.bf16.msra.mxu0 0
      %2370 = vmatprep.subr.bf16.mxu0 0
      %2371 = vmatpush1.bf16.msra.mxu0 0
      %2372 = vmatprep.subr.bf16.mxu0 0
      %2373 = vmatpush1.bf16.msra.mxu0 0
      %2374 = vmatprep.subr.bf16.mxu0 0
      %2375 = vmatpush1.bf16.msra.mxu0 0
      %2376 = vmatprep.mubr.bf16.mxu0 0
      %2377 = vmatmul.mubr.bf16.gmra.mrb[0].mxu0 %v2339
      %v2378 = vpop.f32.mrb[0].mxu0
      %v2379 = vadd.f32 0.0, %v2378
      %v2380 = vpop.f32.mrb[0].mxu0
      %v2381 = vpop.f32.mrb[0].mxu0
      %v2382 = vpop.f32.mrb[0].mxu0
      %2383 = vdwg.mxu0
      %v2385 = vsel %vm1619, %v2105, 0
      %v2388 = vsel %vm2110, %v1615, 0
      %2390 = vmatprep.subr.bf16.mxu0 0
      %2391 = vmatpush1.bf16.msra.mxu0 %v2388
      %2392 = vmatprep.subr.bf16.mxu0 0
      %2393 = vmatpush1.bf16.msra.mxu0 0
      %2394 = vmatprep.subr.bf16.mxu0 0
      %2395 = vmatpush1.bf16.msra.mxu0 0
      %2396 = vmatprep.subr.bf16.mxu0 0
      %2397 = vmatpush1.bf16.msra.mxu0 0
      %2398 = vmatprep.subr.bf16.mxu0 0
      %2399 = vmatpush1.bf16.msra.mxu0 0
      %2400 = vmatprep.subr.bf16.mxu0 0
      %2401 = vmatpush1.bf16.msra.mxu0 0
      %2402 = vmatprep.subr.bf16.mxu0 0
      %2403 = vmatpush1.bf16.msra.mxu0 0
      %2404 = vmatprep.subr.bf16.mxu0 0
      %2405 = vmatpush1.bf16.msra.mxu0 0
      %2406 = vmatprep.subr.bf16.mxu0 0
      %2407 = vmatpush1.bf16.msra.mxu0 0
      %2408 = vmatprep.subr.bf16.mxu0 0
      %2409 = vmatpush1.bf16.msra.mxu0 0
      %2410 = vmatprep.subr.bf16.mxu0 0
      %2411 = vmatpush1.bf16.msra.mxu0 0
      %2412 = vmatprep.subr.bf16.mxu0 0
      %2413 = vmatpush1.bf16.msra.mxu0 0
      %2414 = vmatprep.subr.bf16.mxu0 0
      %2415 = vmatpush1.bf16.msra.mxu0 0
      %2416 = vmatprep.subr.bf16.mxu0 0
      %2417 = vmatpush1.bf16.msra.mxu0 0
      %2418 = vmatprep.subr.bf16.mxu0 0
      %2419 = vmatpush1.bf16.msra.mxu0 0
      %2420 = vmatprep.subr.bf16.mxu0 0
      %2421 = vmatpush1.bf16.msra.mxu0 0
      %2422 = vmatprep.mubr.bf16.mxu0 0
      %2423 = vmatmul.mubr.bf16.gmra.mrb[0].mxu0 %v2385
      %v2424 = vpop.f32.mrb[0].mxu0
      %v2425 = vadd.f32 0.0, %v2424
      %v2426 = vpop.f32.mrb[0].mxu0
      %v2427 = vpop.f32.mrb[0].mxu0
      %v2428 = vpop.f32.mrb[0].mxu0
      %2429 = vdwg.mxu0
      %v2431 = vsel %vm1619, %v2106, 0
      %v2434 = vsel %vm2110, %v1618, 0
      %2436 = vmatprep.subr.bf16.mxu0 0
      %2437 = vmatpush1.bf16.msra.mxu0 %v2434
      %2438 = vmatprep.subr.bf16.mxu0 0
      %2439 = vmatpush1.bf16.msra.mxu0 0
      %2440 = vmatprep.subr.bf16.mxu0 0
      %2441 = vmatpush1.bf16.msra.mxu0 0
      %2442 = vmatprep.subr.bf16.mxu0 0
      %2443 = vmatpush1.bf16.msra.mxu0 0
      %2444 = vmatprep.subr.bf16.mxu0 0
      %2445 = vmatpush1.bf16.msra.mxu0 0
      %2446 = vmatprep.subr.bf16.mxu0 0
      %2447 = vmatpush1.bf16.msra.mxu0 0
      %2448 = vmatprep.subr.bf16.mxu0 0
      %2449 = vmatpush1.bf16.msra.mxu0 0
      %2450 = vmatprep.subr.bf16.mxu0 0
      %2451 = vmatpush1.bf16.msra.mxu0 0
      %2452 = vmatprep.subr.bf16.mxu0 0
      %2453 = vmatpush1.bf16.msra.mxu0 0
      %2454 = vmatprep.subr.bf16.mxu0 0
      %2455 = vmatpush1.bf16.msra.mxu0 0
      %2456 = vmatprep.subr.bf16.mxu0 0
      %2457 = vmatpush1.bf16.msra.mxu0 0
      %2458 = vmatprep.subr.bf16.mxu0 0
      %2459 = vmatpush1.bf16.msra.mxu0 0
      %2460 = vmatprep.subr.bf16.mxu0 0
      %2461 = vmatpush1.bf16.msra.mxu0 0
      %2462 = vmatprep.subr.bf16.mxu0 0
      %2463 = vmatpush1.bf16.msra.mxu0 0
      %2464 = vmatprep.subr.bf16.mxu0 0
      %2465 = vmatpush1.bf16.msra.mxu0 0
      %2466 = vmatprep.subr.bf16.mxu0 0
      %2467 = vmatpush1.bf16.msra.mxu0 0
      %2468 = vmatprep.mubr.bf16.mxu0 0
      %2469 = vmatmul.mubr.bf16.gmra.mrb[0].mxu0 %v2431
      %v2470 = vpop.f32.mrb[0].mxu0
      %v2471 = vadd.f32 0.0, %v2470
      %v2472 = vpop.f32.mrb[0].mxu0
      %v2473 = vpop.f32.mrb[0].mxu0
      %v2474 = vpop.f32.mrb[0].mxu0
      %2475 = vdwg.mxu0
      %v2476 = vcombine.low %v2149, %v2241
      %v2477 = vcombine.high %v2149, %v2241
      %v2479 = vunpack.c.l.s4 1983009808
      %v2480 = vunpack.c.0.s8 %v2479
      %v2481 = vlaneseq
      %v2482 = vshrl.u32 %v2481, 7
      %v2483 = vsub.s32 %v2480, %v2482
      %v2484 = vrot.slane %v2476, %v2483
      %v2486 = vunpack.c.l.s4 1983009808
      %v2487 = vunpack.c.0.s8 %v2486
      %v2488 = vlaneseq
      %v2489 = vshrl.u32 %v2488, 7
      %v2490 = vsub.s32 %v2487, %v2489
      %v2491 = vrot.slane %v2477, %v2490
      %v2492 = vcombine.low %v2195, %v2287
      %v2493 = vcombine.high %v2195, %v2287
      %v2495 = vunpack.c.l.s4 1983009808
      %v2496 = vunpack.c.0.s8 %v2495
      %v2497 = vlaneseq
      %v2498 = vshrl.u32 %v2497, 7
      %v2499 = vsub.s32 %v2496, %v2498
      %v2500 = vrot.slane %v2492, %v2499
      %v2502 = vunpack.c.l.s4 1983009808
      %v2503 = vunpack.c.0.s8 %v2502
      %v2504 = vlaneseq
      %v2505 = vshrl.u32 %v2504, 7
      %v2506 = vsub.s32 %v2503, %v2505
      %v2507 = vrot.slane %v2493, %v2506
      %v2508 = vcombine.low %v2484, %v2500
      %v2509 = vcombine.high %v2484, %v2500
      %v2511 = vunpack.c.l.s4 1934713408
      %v2512 = vunpack.c.0.s8 %v2511
      %v2513 = vlaneseq
      %v2514 = vshrl.u32 %v2513, 7
      %v2515 = vsub.s32 %v2512, %v2514
      %v2516 = vrot.slane %v2508, %v2515
      %v2518 = vunpack.c.l.s4 1934713408
      %v2519 = vunpack.c.0.s8 %v2518
      %v2520 = vlaneseq
      %v2521 = vshrl.u32 %v2520, 7
      %v2522 = vsub.s32 %v2519, %v2521
      %v2523 = vrot.slane %v2509, %v2522
      %v2524 = vcombine.low %v2491, %v2507
      %v2525 = vcombine.high %v2491, %v2507
      %v2527 = vunpack.c.l.s4 1934713408
      %v2528 = vunpack.c.0.s8 %v2527
      %v2529 = vlaneseq
      %v2530 = vshrl.u32 %v2529, 7
      %v2531 = vsub.s32 %v2528, %v2530
      %v2532 = vrot.slane %v2524, %v2531
      %v2534 = vunpack.c.l.s4 1934713408
      %v2535 = vunpack.c.0.s8 %v2534
      %v2536 = vlaneseq
      %v2537 = vshrl.u32 %v2536, 7
      %v2538 = vsub.s32 %v2535, %v2537
      %v2539 = vrot.slane %v2525, %v2538
      %v2540 = vcombine.high %v2516, 0.0
      %v2541 = vcombine.high %v2523, 0.0
      %v2542 = vcombine.high %v2532, 0.0
      %v2543 = vcombine.high %v2539, 0.0
      %v2544 = vcombine.low %v2333, %v2425
      %v2545 = vcombine.high %v2333, %v2425
      %v2547 = vunpack.c.l.s4 1983009808
      %v2548 = vunpack.c.0.s8 %v2547
      %v2549 = vlaneseq
      %v2550 = vshrl.u32 %v2549, 7
      %v2551 = vsub.s32 %v2548, %v2550
      %v2552 = vrot.slane %v2544, %v2551
      %v2554 = vunpack.c.l.s4 1983009808
      %v2555 = vunpack.c.0.s8 %v2554
      %v2556 = vlaneseq
      %v2557 = vshrl.u32 %v2556, 7
      %v2558 = vsub.s32 %v2555, %v2557
      %v2559 = vrot.slane %v2545, %v2558
      %v2560 = vcombine.low %v2379, %v2471
      %v2561 = vcombine.high %v2379, %v2471
      %v2563 = vunpack.c.l.s4 1983009808
      %v2564 = vunpack.c.0.s8 %v2563
      %v2565 = vlaneseq
      %v2566 = vshrl.u32 %v2565, 7
      %v2567 = vsub.s32 %v2564, %v2566
      %v2568 = vrot.slane %v2560, %v2567
      %v2570 = vunpack.c.l.s4 1983009808
      %v2571 = vunpack.c.0.s8 %v2570
      %v2572 = vlaneseq
      %v2573 = vshrl.u32 %v2572, 7
      %v2574 = vsub.s32 %v2571, %v2573
      %v2575 = vrot.slane %v2561, %v2574
      %v2576 = vcombine.low %v2552, %v2568
      %v2577 = vcombine.high %v2552, %v2568
      %v2579 = vunpack.c.l.s4 1934713408
      %v2580 = vunpack.c.0.s8 %v2579
      %v2581 = vlaneseq
      %v2582 = vshrl.u32 %v2581, 7
      %v2583 = vsub.s32 %v2580, %v2582
      %v2584 = vrot.slane %v2576, %v2583
      %v2586 = vunpack.c.l.s4 1934713408
      %v2587 = vunpack.c.0.s8 %v2586
      %v2588 = vlaneseq
      %v2589 = vshrl.u32 %v2588, 7
      %v2590 = vsub.s32 %v2587, %v2589
      %v2591 = vrot.slane %v2577, %v2590
      %v2592 = vcombine.low %v2559, %v2575
      %v2593 = vcombine.high %v2559, %v2575
      %v2595 = vunpack.c.l.s4 1934713408
      %v2596 = vunpack.c.0.s8 %v2595
      %v2597 = vlaneseq
      %v2598 = vshrl.u32 %v2597, 7
      %v2599 = vsub.s32 %v2596, %v2598
      %v2600 = vrot.slane %v2592, %v2599
      %v2602 = vunpack.c.l.s4 1934713408
      %v2603 = vunpack.c.0.s8 %v2602
      %v2604 = vlaneseq
      %v2605 = vshrl.u32 %v2604, 7
      %v2606 = vsub.s32 %v2603, %v2605
      %v2607 = vrot.slane %v2593, %v2606
      %v2608 = vcombine.high %v2584, 0.0
      %v2609 = vcombine.high %v2591, 0.0
      %v2610 = vcombine.high %v2600, 0.0
      %v2611 = vcombine.high %v2607, 0.0
      %v2612 = vcombine.low %v2516, %v2523
      %v2614 = vunpack.c.l.s4 1983009808
      %v2615 = vunpack.c.0.s8 %v2614
      %v2616 = vlaneseq
      %v2617 = vshrl.u32 %v2616, 7
      %v2618 = vsub.s32 %v2615, %v2617
      %v2619 = vrot.slane %v2612, %v2618
      %v2620 = vcombine.low %v2540, %v2541
      %v2622 = vunpack.c.l.s4 1983009808
      %v2623 = vunpack.c.0.s8 %v2622
      %v2624 = vlaneseq
      %v2625 = vshrl.u32 %v2624, 7
      %v2626 = vsub.s32 %v2623, %v2625
      %v2627 = vrot.slane %v2620, %v2626
      %v2628 = vcombine.low %v2532, %v2539
      %v2630 = vunpack.c.l.s4 1983009808
      %v2631 = vunpack.c.0.s8 %v2630
      %v2632 = vlaneseq
      %v2633 = vshrl.u32 %v2632, 7
      %v2634 = vsub.s32 %v2631, %v2633
      %v2635 = vrot.slane %v2628, %v2634
      %v2636 = vcombine.low %v2542, %v2543
      %v2638 = vunpack.c.l.s4 1983009808
      %v2639 = vunpack.c.0.s8 %v2638
      %v2640 = vlaneseq
      %v2641 = vshrl.u32 %v2640, 7
      %v2642 = vsub.s32 %v2639, %v2641
      %v2643 = vrot.slane %v2636, %v2642
      %v2644 = vcombine.low %v2619, %v2627
      %v2645 = vcombine.high %v2619, %v2627
      %v2647 = vunpack.c.l.s4 1934713408
      %v2648 = vunpack.c.0.s8 %v2647
      %v2649 = vlaneseq
      %v2650 = vshrl.u32 %v2649, 7
      %v2651 = vsub.s32 %v2648, %v2650
      %v2652 = vrot.slane %v2644, %v2651
      %v2654 = vunpack.c.l.s4 1934713408
      %v2655 = vunpack.c.0.s8 %v2654
      %v2656 = vlaneseq
      %v2657 = vshrl.u32 %v2656, 7
      %v2658 = vsub.s32 %v2655, %v2657
      %v2659 = vrot.slane %v2645, %v2658
      %v2660 = vcombine.low %v2635, %v2643
      %v2661 = vcombine.high %v2635, %v2643
      %v2663 = vunpack.c.l.s4 1934713408
      %v2664 = vunpack.c.0.s8 %v2663
      %v2665 = vlaneseq
      %v2666 = vshrl.u32 %v2665, 7
      %v2667 = vsub.s32 %v2664, %v2666
      %v2668 = vrot.slane %v2660, %v2667
      %v2670 = vunpack.c.l.s4 1934713408
      %v2671 = vunpack.c.0.s8 %v2670
      %v2672 = vlaneseq
      %v2673 = vshrl.u32 %v2672, 7
      %v2674 = vsub.s32 %v2671, %v2673
      %v2675 = vrot.slane %v2661, %v2674
      %v2676 = vcombine.low %v2652, %v2668
      %v2677 = vcombine.high %v2652, %v2668
      %v2678 = vcombine.low %v2659, %v2675
      %v2679 = vcombine.high %v2659, %v2675
      %v2680 = vcombine.low %v2584, %v2591
      %v2682 = vunpack.c.l.s4 1983009808
      %v2683 = vunpack.c.0.s8 %v2682
      %v2684 = vlaneseq
      %v2685 = vshrl.u32 %v2684, 7
      %v2686 = vsub.s32 %v2683, %v2685
      %v2687 = vrot.slane %v2680, %v2686
      %v2688 = vcombine.low %v2608, %v2609
      %v2690 = vunpack.c.l.s4 1983009808
      %v2691 = vunpack.c.0.s8 %v2690
      %v2692 = vlaneseq
      %v2693 = vshrl.u32 %v2692, 7
      %v2694 = vsub.s32 %v2691, %v2693
      %v2695 = vrot.slane %v2688, %v2694
      %v2696 = vcombine.low %v2600, %v2607
      %v2698 = vunpack.c.l.s4 1983009808
      %v2699 = vunpack.c.0.s8 %v2698
      %v2700 = vlaneseq
      %v2701 = vshrl.u32 %v2700, 7
      %v2702 = vsub.s32 %v2699, %v2701
      %v2703 = vrot.slane %v2696, %v2702
      %v2704 = vcombine.low %v2610, %v2611
      %v2706 = vunpack.c.l.s4 1983009808
      %v2707 = vunpack.c.0.s8 %v2706
      %v2708 = vlaneseq
      %v2709 = vshrl.u32 %v2708, 7
      %v2710 = vsub.s32 %v2707, %v2709
      %v2711 = vrot.slane %v2704, %v2710
      %v2712 = vcombine.low %v2687, %v2695
      %v2713 = vcombine.high %v2687, %v2695
      %v2715 = vunpack.c.l.s4 1934713408
      %v2716 = vunpack.c.0.s8 %v2715
      %v2717 = vlaneseq
      %v2718 = vshrl.u32 %v2717, 7
      %v2719 = vsub.s32 %v2716, %v2718
      %v2720 = vrot.slane %v2712, %v2719
      %v2722 = vunpack.c.l.s4 1934713408
      %v2723 = vunpack.c.0.s8 %v2722
      %v2724 = vlaneseq
      %v2725 = vshrl.u32 %v2724, 7
      %v2726 = vsub.s32 %v2723, %v2725
      %v2727 = vrot.slane %v2713, %v2726
      %v2728 = vcombine.low %v2703, %v2711
      %v2729 = vcombine.high %v2703, %v2711
      %v2731 = vunpack.c.l.s4 1934713408
      %v2732 = vunpack.c.0.s8 %v2731
      %v2733 = vlaneseq
      %v2734 = vshrl.u32 %v2733, 7
      %v2735 = vsub.s32 %v2732, %v2734
      %v2736 = vrot.slane %v2728, %v2735
      %v2738 = vunpack.c.l.s4 1934713408
      %v2739 = vunpack.c.0.s8 %v2738
      %v2740 = vlaneseq
      %v2741 = vshrl.u32 %v2740, 7
      %v2742 = vsub.s32 %v2739, %v2741
      %v2743 = vrot.slane %v2729, %v2742
      %v2744 = vcombine.low %v2720, %v2736
      %v2745 = vcombine.high %v2720, %v2736
      %v2746 = vcombine.low %v2727, %v2743
      %v2747 = vcombine.high %v2727, %v2743
      %2750 = vrot.lane.b32.xlu0 %v2677, 8
      %v2751 = vpop.permute.xlu0 %2750
      %2752 = vrot.lane.b32.xlu0 %v2745, 8
      %v2753 = vpop.permute.xlu0 %2752
      %2758 = vrot.lane.b32.xlu0 %v2678, 16
      %v2759 = vpop.permute.xlu0 %2758
      %2760 = vrot.lane.b32.xlu0 %v2746, 16
      %v2761 = vpop.permute.xlu0 %2760
      %2766 = vrot.lane.b32.xlu0 %v2679, 24
      %v2767 = vpop.permute.xlu0 %2766
      %2768 = vrot.lane.b32.xlu0 %v2747, 24
      %v2769 = vpop.permute.xlu0 %2768
      %v2772 = vsel %vm1619, %v2676, %v2751
      %v2773 = vsel %vm1619, %v2744, %v2753
      %vm2774 = vcmask 130048
      %v2775 = vsel %vm2774, %v2772, %v2759
      %v2776 = vsel %vm2774, %v2773, %v2761
      %vm2777 = vcmask 195584
      %v2778 = vsel %vm2777, %v2775, %v2767
      %v2779 = vsel %vm2777, %v2776, %v2769
      %v2780 = vpack.c.bf16 %v2779, %v2778
      %v2781 = vld [vmem:[%s616] sm:$0xf]
      %v2782 = vld [vmem:[%s616 + $0x4] sm:$0xf]
      %v2783 = vld [vmem:[%s616 + $0x8] sm:$0xf]
      %v2784 = vld [vmem:[%s616 + $0xc] sm:$0xf]
      %v2785 = vld [vmem:[%s619] sm:$0x1]
      %v2786 = vunpack.c.l.bf16 %v2785
      %v2787 = vlaneseq
      %v2788 = vshrl.u32 %v2787, 7
      %v2789 = vsub.s32 0, %v2788
      %v2790 = vrot.slane %v2786, %v2789
      %v2795 = vunpack.c.l.b16 %v2781
      %v2796 = vunpack.c.l.b16 %v2782
      %v2797 = vunpack.c.l.b16 %v2783
      %v2798 = vunpack.c.l.b16 %v2784
      %v2799 = vpack.c.b16 %v2796, %v2795
      %v2800 = vpack.c.b16 %v2798, %v2797
      %v2804 = vsel %vm664, %v2780, 0
      %2806 = vmatprep.subr.bf16.mxu0 0
      %2807 = vmatpush1.bf16.msra.mxu0 %v2799
      %2808 = vmatprep.subr.bf16.mxu0 0
      %2809 = vmatpush1.bf16.msra.mxu0 %v2800
      %2810 = vmatprep.subr.bf16.mxu0 0
      %2811 = vmatpush1.bf16.msra.mxu0 0
      %2812 = vmatprep.subr.bf16.mxu0 0
      %2813 = vmatpush1.bf16.msra.mxu0 0
      %2814 = vmatprep.subr.bf16.mxu0 0
      %2815 = vmatpush1.bf16.msra.mxu0 0
      %2816 = vmatprep.subr.bf16.mxu0 0
      %2817 = vmatpush1.bf16.msra.mxu0 0
      %2818 = vmatprep.subr.bf16.mxu0 0
      %2819 = vmatpush1.bf16.msra.mxu0 0
      %2820 = vmatprep.subr.bf16.mxu0 0
      %2821 = vmatpush1.bf16.msra.mxu0 0
      %2822 = vmatprep.subr.bf16.mxu0 0
      %2823 = vmatpush1.bf16.msra.mxu0 0
      %2824 = vmatprep.subr.bf16.mxu0 0
      %2825 = vmatpush1.bf16.msra.mxu0 0
      %2826 = vmatprep.subr.bf16.mxu0 0
      %2827 = vmatpush1.bf16.msra.mxu0 0
      %2828 = vmatprep.subr.bf16.mxu0 0
      %2829 = vmatpush1.bf16.msra.mxu0 0
      %2830 = vmatprep.subr.bf16.mxu0 0
      %2831 = vmatpush1.bf16.msra.mxu0 0
      %2832 = vmatprep.subr.bf16.mxu0 0
      %2833 = vmatpush1.bf16.msra.mxu0 0
      %2834 = vmatprep.subr.bf16.mxu0 0
      %2835 = vmatpush1.bf16.msra.mxu0 0
      %2836 = vmatprep.subr.bf16.mxu0 0
      %2837 = vmatpush1.bf16.msra.mxu0 0
      %2838 = vmatprep.mubr.bf16.mxu0 0
      %2839 = vmatmul.mubr.bf16.gmra.mrb[0].mxu0 %v2804
      %v2840 = vpop.f32.mrb[0].mxu0
      %v2841 = vadd.f32 %v2790, %v2840
      %v2842 = vpop.f32.mrb[0].mxu0
      %v2843 = vpop.f32.mrb[0].mxu0
      %v2844 = vadd.f32 %v2790, %v2843
      %v2845 = vpop.f32.mrb[0].mxu0
      %2846 = vdwg.mxu0
      %v2847 = vadd.f32 %v660, %v2841
      %v2848 = vadd.f32 %v661, %v2844
      %v2849 = vld [vmem:[%s622] sm:$0x1]
      %v2850 = vld [vmem:[%s625] sm:$0x1]
      %v2851 = vsel %vm664, %v2847, 0.0
      %2852 = vadd.xlane.f32.xlu0 %v2851
      %v2853 = vpop.xlane.xlu0 %2852
      %v2854 = vsel %vm664, %v2848, 0.0
      %2855 = vadd.xlane.f32.xlu0 %v2854
      %v2856 = vpop.xlane.xlu0 %2855
      %v2857 = vmul.f32 %v2853, %v671
      %v2858 = vmul.f32 %v2856, %v671
      %v2859 = vsub.f32 %v2847, %v2857
      %v2860 = vsub.f32 %v2848, %v2858
      %v2861 = vmul.f32 %v2859, %v2859
      %v2862 = vmul.f32 %v2860, %v2860
      %v2863 = vsel %vm664, %v2861, 0.0
      %2864 = vadd.xlane.f32.xlu0 %v2863
      %v2865 = vpop.xlane.xlu0 %2864
      %v2866 = vsel %vm664, %v2862, 0.0
      %2867 = vadd.xlane.f32.xlu0 %v2866
      %v2868 = vpop.xlane.xlu0 %2867
      %v2869 = vmul.f32 %v2865, %v671
      %v2870 = vmul.f32 %v2868, %v671
      %v2871 = vadd.f32 %v2869, 1e-05
      %v2872 = vadd.f32 %v2870, 1e-05
      %v2873 = vrsqrt.pop %v2871
      %v2874 = vrsqrt.pop %v2872
      %v2875 = vmul.f32 %v2859, %v2873
      %v2876 = vmul.f32 %v2860, %v2874
      %v2877 = vunpack.c.l.bf16 %v2849
      %v2878 = vlaneseq
      %v2879 = vshrl.u32 %v2878, 7
      %v2880 = vsub.s32 0, %v2879
      %v2881 = vrot.slane %v2877, %v2880
      %v2882 = vmul.f32 %v2875, %v2881
      %v2883 = vmul.f32 %v2876, %v2881
      %v2884 = vunpack.c.l.bf16 %v2850
      %v2885 = vlaneseq
      %v2886 = vshrl.u32 %v2885, 7
      %v2887 = vsub.s32 0, %v2886
      %v2888 = vrot.slane %v2884, %v2887
      %v2889 = vadd.f32 %v2882, %v2888
      %v2890 = vadd.f32 %v2883, %v2888
      %v2891 = vpack.c.bf16 %v2890, %v2889
      %v2892 = vld [vmem:[%s630] sm:$0xf]
      %v2893 = vld [vmem:[%s630 + $0x4] sm:$0xf]
      %v2894 = vld [vmem:[%s630 + $0x8] sm:$0xf]
      %v2895 = vld [vmem:[%s630 + $0xc] sm:$0xf]
      %v2896 = vld [vmem:[%s633] sm:$0x1]
      %v2897 = vunpack.c.l.bf16 %v2896
      %v2898 = vlaneseq
      %v2899 = vshrl.u32 %v2898, 7
      %v2900 = vsub.s32 0, %v2899
      %v2901 = vrot.slane %v2897, %v2900
      %v2906 = vunpack.c.l.b16 %v2892
      %v2907 = vunpack.c.l.b16 %v2893
      %v2908 = vunpack.c.l.b16 %v2894
      %v2909 = vunpack.c.l.b16 %v2895
      %v2910 = vpack.c.b16 %v2907, %v2906
      %v2911 = vpack.c.b16 %v2909, %v2908
      %v2915 = vsel %vm664, %v2891, 0
      %2917 = vmatprep.subr.bf16.mxu0 0
      %2918 = vmatpush1.bf16.msra.mxu0 %v2910
      %2919 = vmatprep.subr.bf16.mxu0 0
      %2920 = vmatpush1.bf16.msra.mxu0 %v2911
      %2921 = vmatprep.subr.bf16.mxu0 0
      %2922 = vmatpush1.bf16.msra.mxu0 0
      %2923 = vmatprep.subr.bf16.mxu0 0
      %2924 = vmatpush1.bf16.msra.mxu0 0
      %2925 = vmatprep.subr.bf16.mxu0 0
      %2926 = vmatpush1.bf16.msra.mxu0 0
      %2927 = vmatprep.subr.bf16.mxu0 0
      %2928 = vmatpush1.bf16.msra.mxu0 0
      %2929 = vmatprep.subr.bf16.mxu0 0
      %2930 = vmatpush1.bf16.msra.mxu0 0
      %2931 = vmatprep.subr.bf16.mxu0 0
      %2932 = vmatpush1.bf16.msra.mxu0 0
      %2933 = vmatprep.subr.bf16.mxu0 0
      %2934 = vmatpush1.bf16.msra.mxu0 0
      %2935 = vmatprep.subr.bf16.mxu0 0
      %2936 = vmatpush1.bf16.msra.mxu0 0
      %2937 = vmatprep.subr.bf16.mxu0 0
      %2938 = vmatpush1.bf16.msra.mxu0 0
      %2939 = vmatprep.subr.bf16.mxu0 0
      %2940 = vmatpush1.bf16.msra.mxu0 0
      %2941 = vmatprep.subr.bf16.mxu0 0
      %2942 = vmatpush1.bf16.msra.mxu0 0
      %2943 = vmatprep.subr.bf16.mxu0 0
      %2944 = vmatpush1.bf16.msra.mxu0 0
      %2945 = vmatprep.subr.bf16.mxu0 0
      %2946 = vmatpush1.bf16.msra.mxu0 0
      %2947 = vmatprep.subr.bf16.mxu0 0
      %2948 = vmatpush1.bf16.msra.mxu0 0
      %2949 = vmatprep.mubr.bf16.mxu0 0
      %2950 = vmatmul.mubr.bf16.gmra.mrb[0].mxu0 %v2915
      %v2951 = vpop.f32.mrb[0].mxu0
      %v2952 = vadd.f32 %v2901, %v2951
      %v2953 = vpop.f32.mrb[0].mxu0
      %v2954 = vpop.f32.mrb[0].mxu0
      %v2955 = vadd.f32 %v2901, %v2954
      %v2956 = vpop.f32.mrb[0].mxu0
      %2957 = vdwg.mxu0
      %v2958 = vmul.f32 %v2952, %v2952
      %v2959 = vmul.f32 %v2955, %v2955
      %v2960 = vmul.f32 %v2952, %v2958
      %v2961 = vmul.f32 %v2955, %v2959
      %v2962 = vmul.f32 %v2960, 0.044715
      %v2963 = vmul.f32 %v2961, 0.044715
      %v2964 = vadd.f32 %v2952, %v2962
      %v2965 = vadd.f32 %v2955, %v2963
      %v2966 = vmul.f32 %v2964, 0.7978846
      %v2967 = vmul.f32 %v2965, 0.7978846
      %v2968 = vtanh.pop %v2966
      %v2969 = vtanh.pop %v2967
      %v2970 = vadd.f32 %v2968, 1.0
      %v2971 = vadd.f32 %v2969, 1.0
      %v2972 = vmul.f32 %v2970, 0.5
      %v2973 = vmul.f32 %v2971, 0.5
      %v2974 = vmul.f32 %v2952, %v2972
      %v2975 = vmul.f32 %v2955, %v2973
      %v2976 = vpack.c.bf16 %v2975, %v2974
      %v2977 = vld [vmem:[%s638] sm:$0xf]
      %v2978 = vld [vmem:[%s638 + $0x4] sm:$0xf]
      %v2979 = vld [vmem:[%s638 + $0x8] sm:$0xf]
      %v2980 = vld [vmem:[%s638 + $0xc] sm:$0xf]
      %v2981 = vld [vmem:[%s638 + $0x10] sm:$0xf]
      %v2982 = vld [vmem:[%s638 + $0x14] sm:$0xf]
      %v2983 = vld [vmem:[%s638 + $0x18] sm:$0xf]
      %v2984 = vld [vmem:[%s638 + $0x1c] sm:$0xf]
      %v2985 = vld [vmem:[%s638 + $0x20] sm:$0xf]
      %v2986 = vld [vmem:[%s638 + $0x24] sm:$0xf]
      %v2987 = vld [vmem:[%s638 + $0x28] sm:$0xf]
      %v2988 = vld [vmem:[%s638 + $0x2c] sm:$0xf]
      %v2989 = vld [vmem:[%s638 + $0x30] sm:$0xf]
      %v2990 = vld [vmem:[%s638 + $0x34] sm:$0xf]
      %v2991 = vld [vmem:[%s638 + $0x38] sm:$0xf]
      %v2992 = vld [vmem:[%s638 + $0x3c] sm:$0xf]
      %v2993 = vld [vmem:[%s641] sm:$0x1]
      %v2994 = vunpack.c.l.bf16 %v2993
      %v2995 = vlaneseq
      %v2996 = vshrl.u32 %v2995, 7
      %v2997 = vsub.s32 0, %v2996
      %v2998 = vrot.slane %v2994, %v2997
      %v3015 = vunpack.c.l.b16 %v2977
      %v3016 = vunpack.c.l.b16 %v2978
      %v3017 = vunpack.c.l.b16 %v2979
      %v3018 = vunpack.c.l.b16 %v2980
      %v3019 = vunpack.c.l.b16 %v2981
      %v3020 = vunpack.c.l.b16 %v2982
      %v3021 = vunpack.c.l.b16 %v2983
      %v3022 = vunpack.c.l.b16 %v2984
      %v3023 = vunpack.c.l.b16 %v2985
      %v3024 = vunpack.c.l.b16 %v2986
      %v3025 = vunpack.c.l.b16 %v2987
      %v3026 = vunpack.c.l.b16 %v2988
      %v3027 = vunpack.c.l.b16 %v2989
      %v3028 = vunpack.c.l.b16 %v2990
      %v3029 = vunpack.c.l.b16 %v2991
      %v3030 = vunpack.c.l.b16 %v2992
      %v3031 = vpack.c.b16 %v3016, %v3015
      %v3032 = vpack.c.b16 %v3018, %v3017
      %v3033 = vpack.c.b16 %v3020, %v3019
      %v3034 = vpack.c.b16 %v3022, %v3021
      %v3035 = vpack.c.b16 %v3024, %v3023
      %v3036 = vpack.c.b16 %v3026, %v3025
      %v3037 = vpack.c.b16 %v3028, %v3027
      %v3038 = vpack.c.b16 %v3030, %v3029
      %3047 = vmatprep.subr.bf16.mxu0 0
      %3048 = vmatpush1.bf16.msra.mxu0 %v3031
      %3049 = vmatprep.subr.bf16.mxu0 0
      %3050 = vmatpush1.bf16.msra.mxu0 %v3032
      %3051 = vmatprep.subr.bf16.mxu0 0
      %3052 = vmatpush1.bf16.msra.mxu0 %v3033
      %3053 = vmatprep.subr.bf16.mxu0 0
      %3054 = vmatpush1.bf16.msra.mxu0 %v3034
      %3055 = vmatprep.subr.bf16.mxu0 0
      %3056 = vmatpush1.bf16.msra.mxu0 %v3035
      %3057 = vmatprep.subr.bf16.mxu0 0
      %3058 = vmatpush1.bf16.msra.mxu0 %v3036
      %3059 = vmatprep.subr.bf16.mxu0 0
      %3060 = vmatpush1.bf16.msra.mxu0 %v3037
      %3061 = vmatprep.subr.bf16.mxu0 0
      %3062 = vmatpush1.bf16.msra.mxu0 %v3038
      %3063 = vmatprep.subr.bf16.mxu0 0
      %3064 = vmatpush1.bf16.msra.mxu0 0
      %3065 = vmatprep.subr.bf16.mxu0 0
      %3066 = vmatpush1.bf16.msra.mxu0 0
      %3067 = vmatprep.subr.bf16.mxu0 0
      %3068 = vmatpush1.bf16.msra.mxu0 0
      %3069 = vmatprep.subr.bf16.mxu0 0
      %3070 = vmatpush1.bf16.msra.mxu0 0
      %3071 = vmatprep.subr.bf16.mxu0 0
      %3072 = vmatpush1.bf16.msra.mxu0 0
      %3073 = vmatprep.subr.bf16.mxu0 0
      %3074 = vmatpush1.bf16.msra.mxu0 0
      %3075 = vmatprep.subr.bf16.mxu0 0
      %3076 = vmatpush1.bf16.msra.mxu0 0
      %3077 = vmatprep.subr.bf16.mxu0 0
      %3078 = vmatpush1.bf16.msra.mxu0 0
      %3079 = vmatprep.mubr.bf16.mxu0 0
      %3080 = vmatmul.mubr.bf16.gmra.mrb[0].mxu0 %v2976
      %v3081 = vpop.f32.mrb[0].mxu0
      %v3082 = vadd.f32 %v2998, %v3081
      %v3083 = vpop.f32.mrb[0].mxu0
      %v3084 = vpop.f32.mrb[0].mxu0
      %v3085 = vadd.f32 %v2998, %v3084
      %v3086 = vpop.f32.mrb[0].mxu0
      %3087 = vdwg.mxu0
      %v3088 = vadd.f32 %v2847, %v3082
      %v3089 = vadd.f32 %v2848, %v3085
      %v3090 = vpack.c.bf16 %v3088, %v3088
      %v3091 = vpack.c.bf16 %v3089, %v3089
      %vm3092 = vcmask 257024
      %3093 = vst.msk [vmem:[%s646] sm:$0xf] %vm3092, %v3090
      %3094 = vst.msk [vmem:[%s646 + $0x4] sm:$0xf] %vm3092, %v3091
      %s3095 = smul.u32 2, %s28
      %p3096 = scmp.lt.s32.totalorder %s3095, 1
      %s3097 = scalar_select %p3096, %s3095, 1
      %s3098 = smul.addr %s3097, 4
      %s3099 = scalar_lea.vmem %s13, %s3098
      // Predicated region
      $region77: #{autoregressive_forward.2} parent=71 // pred_check
        %p3100 = pneg %p392
      $region78: #{autoregressive_forward.2} parent=71 // pred_check_branch
        %3102 = sbr.rel (%p3100) target = $region80
      $region79: #{autoregressive_forward.2} parent=71 // pred_region
        %s3103 = smul.u32 2, %s28
      $region80: #{autoregressive_forward.2} parent=71 // pred_fallthru
        _
      // Predicated region
      $region81: #{autoregressive_forward.2} parent=71 // pred_check
        %p3104 = pneg %p392
      $region82: #{autoregressive_forward.2} parent=71 // pred_check_branch
        %3106 = sbr.rel (%p3104) target = $region84
      $region83: #{autoregressive_forward.2} parent=71 // pred_region
        %s3107 = smul.u32 2, %s28
        %p3108 = scmp.lt.s32.totalorder %s3107, 1
        %s3109 = scalar_select %p3108, %s3107, 1
        %s3110 = smul.addr %s3109, 4
        %s3111 = scalar_lea.vmem %s13, %s3110
      $region84: #{autoregressive_forward.2} parent=71 // pred_fallthru
        _
    $region72: #{autoregressive_forward.2} parent=5 // pred_fallthru
      _
    %p3112 = scmp.le.s32.totalorder 2, %s19
    // Predicated region
    $region85: #{autoregressive_forward.2} parent=5 // pred_check
      %p3113 = pneg %p3112
    $region86: #{autoregressive_forward.2} parent=5 // pred_check_branch
      %3115 = sbr.rel (%p3113) target = $region88
    $region87: #{autoregressive_forward.2} parent=5 // pred_region
      %s3116 = ssub.s32 %s19, 2
    $region88: #{autoregressive_forward.2} parent=5 // pred_fallthru
      _
  $region6: #{autoregressive_forward.2} parent=0 // loop_footer
    %s23 = sadd.s32 1, %s19
  $region7: #{autoregressive_forward.2} parent=0 // loop_footer_branch
    %18 = sbr.rel target = $region3
  $region8: #{autoregressive_forward.2} parent=0 // loop_exit
    _

</llo_original>
